<compile_context>
chip_gen: v5e
topology: v5e:2x2
jax: 0.10.0
libtpu: 0.0.40
codegen_flags: <defaults>
</compile_context>

<pallas_src>
import math

import numpy as np
import jax
import jax.numpy as jnp
from jax import lax
from jax.experimental import pallas as pl
from jax.experimental.pallas import tpu as pltpu

EMB = 64
NUM_CLASSES_PER_TOKEN = [15, 15, 15, 15, 15, 15, 15, 16]
NUM_HEADS = len(NUM_CLASSES_PER_TOKEN)          # 8
MAX_CLASSES = max(NUM_CLASSES_PER_TOKEN)        # 16 (per-head pad width)
H1 = EMB * 4                                    # 256
H2 = EMB * 2                                    # 128
OUT_W = NUM_HEADS * MAX_CLASSES                 # 128: lane-dense slab width

# Static column indices selecting the valid (un-padded) class columns out of
# the (B, 128) slab, in head order. One gather replaces 8 slices + a concat.
_VALID_COLS = np.concatenate(
    [h * MAX_CLASSES + np.arange(nc) for h, nc in enumerate(NUM_CLASSES_PER_TOKEN)]
).astype(np.int32)                              # length = 121


def _gelu_exact(x):
    # torch.nn.GELU() default: exact erf-based GELU (computed in f32).
    return 0.5 * x * (1.0 + lax.erf(x * (1.0 / math.sqrt(2.0))))


def fused_heads_kernel(x_ref, w1_ref, b1_ref, w2_ref, b2_ref, w3_ref, b3_ref, o_ref):
    """All 8 heads in one body; weights resident in VMEM.

    x_ref : (H, tB, 64)   bf16   head-major CLS tokens for this batch tile
    w*_ref: (H, ..., ...)  bf16   stacked per-head weights
    b*_ref: (H, 1, ...)    f32    stacked per-head biases
    o_ref : (tB, 128)      f32    head h occupies columns [16h, 16h+16)
    """
    outs = []
    for h in range(NUM_HEADS):                                     # static unroll (8)
        xh = x_ref[h]                                              # (tB, 64) bf16
        a1 = jnp.dot(xh, w1_ref[h], preferred_element_type=jnp.float32) + b1_ref[h]
        a1 = _gelu_exact(a1)                                       # (tB, 256) f32
        # Dropout == identity in eval mode.
        a2 = jnp.dot(a1.astype(jnp.bfloat16), w2_ref[h],
                     preferred_element_type=jnp.float32) + b2_ref[h]
        a2 = _gelu_exact(a2)                                       # (tB, 128) f32
        o = jnp.dot(a2.astype(jnp.bfloat16), w3_ref[h],
                    preferred_element_type=jnp.float32) + b3_ref[h]  # (tB, 16) f32
        outs.append(o)
    # Pack the 8 sub-lane-wide head outputs into one 128-lane tile and store
    # once (unmasked store, dense HBM writeback).
    o_ref[...] = jnp.concatenate(outs, axis=-1).astype(o_ref.dtype)


def classification_head_forward(x, params, *, batch_tile=256):
    """x: (B, S, EMB) float32. Returns (B, sum(NUM_CLASSES_PER_TOKEN)) float32."""
    w1, b1, w2, b2, w3, b3 = params
    B, S, E = x.shape
    assert E == EMB

    # Token selection (same semantics as the PyTorch slicing/concat).
    cls_first = x[:, : NUM_HEADS // 2, :]
    cls_last = x[:, -(NUM_HEADS // 2):, :]
    cls_tokens = jnp.concatenate([cls_first, cls_last], axis=1)       # (B, 8, 64)
    assert cls_tokens.shape[1] == NUM_HEADS, "need at least NUM_HEADS//2 tokens"
    xt = jnp.transpose(cls_tokens, (1, 0, 2)).astype(jnp.bfloat16)    # (8, B, 64)

    # bf16 weights halve the weight DMA bytes; accumulation stays f32 on MXU.
    w1b, w2b, w3b = (w.astype(jnp.bfloat16) for w in (w1, w2, w3))

    # Batch tiling: a single full-B block for small B; otherwise pad B to a
    # multiple of `batch_tile` (multiple of 8) and shard the batch axis across
    # TensorCores ("parallel").
    if B <= batch_tile:
        tB, Bp = B, B
    else:
        tB = batch_tile
        Bp = ((B + tB - 1) // tB) * tB
        xt = jnp.pad(xt, ((0, 0), (0, Bp - B), (0, 0)))
    num_tiles = Bp // tB

    out = pl.pallas_call(
        fused_heads_kernel,
        out_shape=jax.ShapeDtypeStruct((Bp, OUT_W), jnp.float32),
        grid=(num_tiles,),
        in_specs=[
            pl.BlockSpec((NUM_HEADS, tB, EMB), lambda i: (0, i, 0)),
            # Constant index maps -> weights/biases stay resident across tiles.
            pl.BlockSpec((NUM_HEADS, EMB, H1), lambda i: (0, 0, 0)),
            pl.BlockSpec((NUM_HEADS, 1, H1), lambda i: (0, 0, 0)),
            pl.BlockSpec((NUM_HEADS, H1, H2), lambda i: (0, 0, 0)),
            pl.BlockSpec((NUM_HEADS, 1, H2), lambda i: (0, 0, 0)),
            pl.BlockSpec((NUM_HEADS, H2, MAX_CLASSES), lambda i: (0, 0, 0)),
            pl.BlockSpec((NUM_HEADS, 1, MAX_CLASSES), lambda i: (0, 0, 0)),
        ],
        out_specs=pl.BlockSpec((tB, OUT_W), lambda i: (i, 0)),
        compiler_params=pltpu.CompilerParams(dimension_semantics=("parallel",)),
    )(xt, w1b, b1, w2b, b2, w3b, b3)

    # Strip per-head padding with a single static column gather.
    return jnp.take(out[:B], jnp.asarray(_VALID_COLS), axis=1)


def init_params(key):
    """Deterministic synthetic parameters, stacked per head (padded to MAX_CLASSES)."""
    keys = jax.random.split(key, 6 * NUM_HEADS)
    w1_l, b1_l, w2_l, b2_l, w3_l, b3_l = [], [], [], [], [], []
    for h, nc in enumerate(NUM_CLASSES_PER_TOKEN):
        k = keys[6 * h: 6 * h + 6]
        w1_l.append(jax.random.normal(k[0], (EMB, H1), jnp.float32) * 0.02)
        b1_l.append(jax.random.normal(k[1], (1, H1), jnp.float32) * 0.02)
        w2_l.append(jax.random.normal(k[2], (H1, H2), jnp.float32) * 0.02)
        b2_l.append(jax.random.normal(k[3], (1, H2), jnp.float32) * 0.02)
        w3 = jax.random.normal(k[4], (H2, nc), jnp.float32) * 0.02
        b3 = jax.random.normal(k[5], (1, nc), jnp.float32) * 0.02
        w3_l.append(jnp.pad(w3, ((0, 0), (0, MAX_CLASSES - nc))))
        b3_l.append(jnp.pad(b3, ((0, 0), (0, MAX_CLASSES - nc))))
    return (
        jnp.stack(w1_l), jnp.stack(b1_l),
        jnp.stack(w2_l), jnp.stack(b2_l),
        jnp.stack(w3_l), jnp.stack(b3_l),
    )


def reference_forward(x, params):
    """Pure-JAX f32 reference mirroring the PyTorch forward (eval mode)."""
    w1, b1, w2, b2, w3, b3 = params
    cls_first = x[:, : NUM_HEADS // 2, :]
    cls_last = x[:, -(NUM_HEADS // 2):, :]
    cls_tokens = jnp.concatenate([cls_first, cls_last], axis=1)
    outs = []
    for i, nc in enumerate(NUM_CLASSES_PER_TOKEN):
        t = cls_tokens[:, i, :]
        h = _gelu_exact(t @ w1[i] + b1[i])
        h = _gelu_exact(h @ w2[i] + b2[i])
        o = h @ w3[i] + b3[i]
        outs.append(o[:, :nc])
    return jnp.concatenate(outs, axis=-1)


if __name__ == "__main__":
    key = jax.random.PRNGKey(0)
    k_x, k_p = jax.random.split(key)

    B, S = 2, 12                                   # seq >= NUM_HEADS
    x = jax.random.normal(k_x, (B, S, EMB), jnp.float32)
    params = init_params(k_p)

    fwd = jax.jit(classification_head_forward)
    out = jax.block_until_ready(fwd(x, params))

    ref = reference_forward(x, params)
    assert out.shape == (B, sum(NUM_CLASSES_PER_TOKEN)), out.shape
    assert jnp.allclose(out, ref, atol=1e-2, rtol=1e-2), \
        float(jnp.max(jnp.abs(out - ref)))

    print("KERNEL_OK")
</pallas_src>

<mosaic_0001>
module attributes {stable_mosaic.version = 11 : i64} {
  func.func @fused_heads_kernel(%arg0: i32, %arg1: memref<8x2x64xbf16, #tpu.memory_space<vmem>>, %arg2: memref<8x64x256xbf16, #tpu.memory_space<vmem>>, %arg3: memref<8x1x256xf32, #tpu.memory_space<vmem>>, %arg4: memref<8x256x128xbf16, #tpu.memory_space<vmem>>, %arg5: memref<8x1x128xf32, #tpu.memory_space<vmem>>, %arg6: memref<8x128x16xbf16, #tpu.memory_space<vmem>>, %arg7: memref<8x1x16xf32, #tpu.memory_space<vmem>>, %arg8: memref<2x128xf32, #tpu.memory_space<vmem>>) attributes {dimension_semantics = [#tpu.dimension_semantics<parallel>], iteration_bounds = array<i64: 1>, scalar_prefetch = 0 : i64, scratch_operands = 0 : i64, tpu.core_type = #tpu.core_type<tc>, window_params = [{transform_indices = @transform_0, window_bounds = array<i64: 8, 2, 64>}, {pipeline_mode = #tpu.pipeline_mode<synchronous>, transform_indices = @transform_1, window_bounds = array<i64: 8, 64, 256>}, {pipeline_mode = #tpu.pipeline_mode<synchronous>, transform_indices = @transform_2, window_bounds = array<i64: 8, 1, 256>}, {pipeline_mode = #tpu.pipeline_mode<synchronous>, transform_indices = @transform_3, window_bounds = array<i64: 8, 256, 128>}, {pipeline_mode = #tpu.pipeline_mode<synchronous>, transform_indices = @transform_4, window_bounds = array<i64: 8, 1, 128>}, {pipeline_mode = #tpu.pipeline_mode<synchronous>, transform_indices = @transform_5, window_bounds = array<i64: 8, 128, 16>}, {pipeline_mode = #tpu.pipeline_mode<synchronous>, transform_indices = @transform_6, window_bounds = array<i64: 8, 1, 16>}, {transform_indices = @transform_7, window_bounds = array<i64: 2, 128>}]} {
    %c0 = arith.constant 0 : index
    %c0_0 = arith.constant 0 : index
    %c0_1 = arith.constant 0 : index
    %0 = vector.load %arg1[%c0, %c0_0, %c0_1] : memref<8x2x64xbf16, #tpu.memory_space<vmem>>, vector<1x2x64xbf16>
    %1 = vector.shape_cast %0 : vector<1x2x64xbf16> to vector<2x64xbf16>
    %c0_2 = arith.constant 0 : index
    %c0_3 = arith.constant 0 : index
    %c0_4 = arith.constant 0 : index
    %2 = vector.load %arg2[%c0_2, %c0_3, %c0_4] : memref<8x64x256xbf16, #tpu.memory_space<vmem>>, vector<1x64x256xbf16>
    %3 = vector.shape_cast %2 : vector<1x64x256xbf16> to vector<64x256xbf16>
    %cst = arith.constant dense<0.000000e+00> : vector<2x256xf32>
    %4 = tpu.matmul %1, %3, %cst {dimension_numbers = #tpu.dot_dimension_numbers<[1], [0], [0], [1], [0, 0, 1, 1], [], []>} : vector<2x64xbf16>, vector<64x256xbf16>, vector<2x256xf32> -> vector<2x256xf32>
    %c0_5 = arith.constant 0 : index
    %c0_6 = arith.constant 0 : index
    %c0_7 = arith.constant 0 : index
    %5 = vector.load %arg3[%c0_5, %c0_6, %c0_7] : memref<8x1x256xf32, #tpu.memory_space<vmem>>, vector<1x1x256xf32>
    %6 = vector.shape_cast %5 : vector<1x1x256xf32> to vector<1x256xf32>
    %7 = vector.broadcast %6 : vector<1x256xf32> to vector<2x256xf32>
    %8 = arith.addf %4, %7 : vector<2x256xf32>
    %cst_8 = arith.constant 5.000000e-01 : f32
    %9 = vector.broadcast %cst_8 : f32 to vector<2x256xf32>
    %10 = arith.mulf %9, %8 : vector<2x256xf32>
    %cst_9 = arith.constant 0.707106769 : f32
    %11 = vector.broadcast %cst_9 : f32 to vector<2x256xf32>
    %12 = arith.mulf %8, %11 : vector<2x256xf32>
    %13 = math.erf %12 : vector<2x256xf32>
    %cst_10 = arith.constant 1.000000e+00 : f32
    %14 = vector.broadcast %cst_10 : f32 to vector<2x256xf32>
    %15 = arith.addf %14, %13 : vector<2x256xf32>
    %16 = arith.mulf %10, %15 : vector<2x256xf32>
    %17 = arith.truncf %16 : vector<2x256xf32> to vector<2x256xbf16>
    %c0_11 = arith.constant 0 : index
    %c0_12 = arith.constant 0 : index
    %c0_13 = arith.constant 0 : index
    %18 = vector.load %arg4[%c0_11, %c0_12, %c0_13] : memref<8x256x128xbf16, #tpu.memory_space<vmem>>, vector<1x256x128xbf16>
    %19 = vector.shape_cast %18 : vector<1x256x128xbf16> to vector<256x128xbf16>
    %cst_14 = arith.constant dense<0.000000e+00> : vector<2x128xf32>
    %20 = tpu.matmul %17, %19, %cst_14 {dimension_numbers = #tpu.dot_dimension_numbers<[1], [0], [0], [1], [0, 0, 1, 1], [], []>} : vector<2x256xbf16>, vector<256x128xbf16>, vector<2x128xf32> -> vector<2x128xf32>
    %c0_15 = arith.constant 0 : index
    %c0_16 = arith.constant 0 : index
    %c0_17 = arith.constant 0 : index
    %21 = vector.load %arg5[%c0_15, %c0_16, %c0_17] : memref<8x1x128xf32, #tpu.memory_space<vmem>>, vector<1x1x128xf32>
    %22 = vector.shape_cast %21 : vector<1x1x128xf32> to vector<1x128xf32>
    %23 = vector.broadcast %22 : vector<1x128xf32> to vector<2x128xf32>
    %24 = arith.addf %20, %23 : vector<2x128xf32>
    %cst_18 = arith.constant 5.000000e-01 : f32
    %25 = vector.broadcast %cst_18 : f32 to vector<2x128xf32>
    %26 = arith.mulf %25, %24 : vector<2x128xf32>
    %cst_19 = arith.constant 0.707106769 : f32
    %27 = vector.broadcast %cst_19 : f32 to vector<2x128xf32>
    %28 = arith.mulf %24, %27 : vector<2x128xf32>
    %29 = math.erf %28 : vector<2x128xf32>
    %cst_20 = arith.constant 1.000000e+00 : f32
    %30 = vector.broadcast %cst_20 : f32 to vector<2x128xf32>
    %31 = arith.addf %30, %29 : vector<2x128xf32>
    %32 = arith.mulf %26, %31 : vector<2x128xf32>
    %33 = arith.truncf %32 : vector<2x128xf32> to vector<2x128xbf16>
    %c0_21 = arith.constant 0 : index
    %c0_22 = arith.constant 0 : index
    %c0_23 = arith.constant 0 : index
    %34 = vector.load %arg6[%c0_21, %c0_22, %c0_23] : memref<8x128x16xbf16, #tpu.memory_space<vmem>>, vector<1x128x16xbf16>
    %35 = vector.shape_cast %34 : vector<1x128x16xbf16> to vector<128x16xbf16>
    %cst_24 = arith.constant dense<0.000000e+00> : vector<2x16xf32>
    %36 = tpu.matmul %33, %35, %cst_24 {dimension_numbers = #tpu.dot_dimension_numbers<[1], [0], [0], [1], [0, 0, 1, 1], [], []>} : vector<2x128xbf16>, vector<128x16xbf16>, vector<2x16xf32> -> vector<2x16xf32>
    %c0_25 = arith.constant 0 : index
    %c0_26 = arith.constant 0 : index
    %c0_27 = arith.constant 0 : index
    %37 = vector.load %arg7[%c0_25, %c0_26, %c0_27] : memref<8x1x16xf32, #tpu.memory_space<vmem>>, vector<1x1x16xf32>
    %38 = vector.shape_cast %37 : vector<1x1x16xf32> to vector<1x16xf32>
    %39 = vector.broadcast %38 : vector<1x16xf32> to vector<2x16xf32>
    %40 = arith.addf %36, %39 : vector<2x16xf32>
    %c1 = arith.constant 1 : index
    %c0_28 = arith.constant 0 : index
    %c0_29 = arith.constant 0 : index
    %41 = vector.load %arg1[%c1, %c0_28, %c0_29] : memref<8x2x64xbf16, #tpu.memory_space<vmem>>, vector<1x2x64xbf16>
    %42 = vector.shape_cast %41 : vector<1x2x64xbf16> to vector<2x64xbf16>
    %c1_30 = arith.constant 1 : index
    %c0_31 = arith.constant 0 : index
    %c0_32 = arith.constant 0 : index
    %43 = vector.load %arg2[%c1_30, %c0_31, %c0_32] : memref<8x64x256xbf16, #tpu.memory_space<vmem>>, vector<1x64x256xbf16>
    %44 = vector.shape_cast %43 : vector<1x64x256xbf16> to vector<64x256xbf16>
    %cst_33 = arith.constant dense<0.000000e+00> : vector<2x256xf32>
    %45 = tpu.matmul %42, %44, %cst_33 {dimension_numbers = #tpu.dot_dimension_numbers<[1], [0], [0], [1], [0, 0, 1, 1], [], []>} : vector<2x64xbf16>, vector<64x256xbf16>, vector<2x256xf32> -> vector<2x256xf32>
    %c1_34 = arith.constant 1 : index
    %c0_35 = arith.constant 0 : index
    %c0_36 = arith.constant 0 : index
    %46 = vector.load %arg3[%c1_34, %c0_35, %c0_36] : memref<8x1x256xf32, #tpu.memory_space<vmem>>, vector<1x1x256xf32>
    %47 = vector.shape_cast %46 : vector<1x1x256xf32> to vector<1x256xf32>
    %48 = vector.broadcast %47 : vector<1x256xf32> to vector<2x256xf32>
    %49 = arith.addf %45, %48 : vector<2x256xf32>
    %cst_37 = arith.constant 5.000000e-01 : f32
    %50 = vector.broadcast %cst_37 : f32 to vector<2x256xf32>
    %51 = arith.mulf %50, %49 : vector<2x256xf32>
    %cst_38 = arith.constant 0.707106769 : f32
    %52 = vector.broadcast %cst_38 : f32 to vector<2x256xf32>
    %53 = arith.mulf %49, %52 : vector<2x256xf32>
    %54 = math.erf %53 : vector<2x256xf32>
    %cst_39 = arith.constant 1.000000e+00 : f32
    %55 = vector.broadcast %cst_39 : f32 to vector<2x256xf32>
    %56 = arith.addf %55, %54 : vector<2x256xf32>
    %57 = arith.mulf %51, %56 : vector<2x256xf32>
    %58 = arith.truncf %57 : vector<2x256xf32> to vector<2x256xbf16>
    %c1_40 = arith.constant 1 : index
    %c0_41 = arith.constant 0 : index
    %c0_42 = arith.constant 0 : index
    %59 = vector.load %arg4[%c1_40, %c0_41, %c0_42] : memref<8x256x128xbf16, #tpu.memory_space<vmem>>, vector<1x256x128xbf16>
    %60 = vector.shape_cast %59 : vector<1x256x128xbf16> to vector<256x128xbf16>
    %cst_43 = arith.constant dense<0.000000e+00> : vector<2x128xf32>
    %61 = tpu.matmul %58, %60, %cst_43 {dimension_numbers = #tpu.dot_dimension_numbers<[1], [0], [0], [1], [0, 0, 1, 1], [], []>} : vector<2x256xbf16>, vector<256x128xbf16>, vector<2x128xf32> -> vector<2x128xf32>
    %c1_44 = arith.constant 1 : index
    %c0_45 = arith.constant 0 : index
    %c0_46 = arith.constant 0 : index
    %62 = vector.load %arg5[%c1_44, %c0_45, %c0_46] : memref<8x1x128xf32, #tpu.memory_space<vmem>>, vector<1x1x128xf32>
    %63 = vector.shape_cast %62 : vector<1x1x128xf32> to vector<1x128xf32>
    %64 = vector.broadcast %63 : vector<1x128xf32> to vector<2x128xf32>
    %65 = arith.addf %61, %64 : vector<2x128xf32>
    %cst_47 = arith.constant 5.000000e-01 : f32
    %66 = vector.broadcast %cst_47 : f32 to vector<2x128xf32>
    %67 = arith.mulf %66, %65 : vector<2x128xf32>
    %cst_48 = arith.constant 0.707106769 : f32
    %68 = vector.broadcast %cst_48 : f32 to vector<2x128xf32>
    %69 = arith.mulf %65, %68 : vector<2x128xf32>
    %70 = math.erf %69 : vector<2x128xf32>
    %cst_49 = arith.constant 1.000000e+00 : f32
    %71 = vector.broadcast %cst_49 : f32 to vector<2x128xf32>
    %72 = arith.addf %71, %70 : vector<2x128xf32>
    %73 = arith.mulf %67, %72 : vector<2x128xf32>
    %74 = arith.truncf %73 : vector<2x128xf32> to vector<2x128xbf16>
    %c1_50 = arith.constant 1 : index
    %c0_51 = arith.constant 0 : index
    %c0_52 = arith.constant 0 : index
    %75 = vector.load %arg6[%c1_50, %c0_51, %c0_52] : memref<8x128x16xbf16, #tpu.memory_space<vmem>>, vector<1x128x16xbf16>
    %76 = vector.shape_cast %75 : vector<1x128x16xbf16> to vector<128x16xbf16>
    %cst_53 = arith.constant dense<0.000000e+00> : vector<2x16xf32>
    %77 = tpu.matmul %74, %76, %cst_53 {dimension_numbers = #tpu.dot_dimension_numbers<[1], [0], [0], [1], [0, 0, 1, 1], [], []>} : vector<2x128xbf16>, vector<128x16xbf16>, vector<2x16xf32> -> vector<2x16xf32>
    %c1_54 = arith.constant 1 : index
    %c0_55 = arith.constant 0 : index
    %c0_56 = arith.constant 0 : index
    %78 = vector.load %arg7[%c1_54, %c0_55, %c0_56] : memref<8x1x16xf32, #tpu.memory_space<vmem>>, vector<1x1x16xf32>
    %79 = vector.shape_cast %78 : vector<1x1x16xf32> to vector<1x16xf32>
    %80 = vector.broadcast %79 : vector<1x16xf32> to vector<2x16xf32>
    %81 = arith.addf %77, %80 : vector<2x16xf32>
    %c2 = arith.constant 2 : index
    %c0_57 = arith.constant 0 : index
    %c0_58 = arith.constant 0 : index
    %82 = vector.load %arg1[%c2, %c0_57, %c0_58] : memref<8x2x64xbf16, #tpu.memory_space<vmem>>, vector<1x2x64xbf16>
    %83 = vector.shape_cast %82 : vector<1x2x64xbf16> to vector<2x64xbf16>
    %c2_59 = arith.constant 2 : index
    %c0_60 = arith.constant 0 : index
    %c0_61 = arith.constant 0 : index
    %84 = vector.load %arg2[%c2_59, %c0_60, %c0_61] : memref<8x64x256xbf16, #tpu.memory_space<vmem>>, vector<1x64x256xbf16>
    %85 = vector.shape_cast %84 : vector<1x64x256xbf16> to vector<64x256xbf16>
    %cst_62 = arith.constant dense<0.000000e+00> : vector<2x256xf32>
    %86 = tpu.matmul %83, %85, %cst_62 {dimension_numbers = #tpu.dot_dimension_numbers<[1], [0], [0], [1], [0, 0, 1, 1], [], []>} : vector<2x64xbf16>, vector<64x256xbf16>, vector<2x256xf32> -> vector<2x256xf32>
    %c2_63 = arith.constant 2 : index
    %c0_64 = arith.constant 0 : index
    %c0_65 = arith.constant 0 : index
    %87 = vector.load %arg3[%c2_63, %c0_64, %c0_65] : memref<8x1x256xf32, #tpu.memory_space<vmem>>, vector<1x1x256xf32>
    %88 = vector.shape_cast %87 : vector<1x1x256xf32> to vector<1x256xf32>
    %89 = vector.broadcast %88 : vector<1x256xf32> to vector<2x256xf32>
    %90 = arith.addf %86, %89 : vector<2x256xf32>
    %cst_66 = arith.constant 5.000000e-01 : f32
    %91 = vector.broadcast %cst_66 : f32 to vector<2x256xf32>
    %92 = arith.mulf %91, %90 : vector<2x256xf32>
    %cst_67 = arith.constant 0.707106769 : f32
    %93 = vector.broadcast %cst_67 : f32 to vector<2x256xf32>
    %94 = arith.mulf %90, %93 : vector<2x256xf32>
    %95 = math.erf %94 : vector<2x256xf32>
    %cst_68 = arith.constant 1.000000e+00 : f32
    %96 = vector.broadcast %cst_68 : f32 to vector<2x256xf32>
    %97 = arith.addf %96, %95 : vector<2x256xf32>
    %98 = arith.mulf %92, %97 : vector<2x256xf32>
    %99 = arith.truncf %98 : vector<2x256xf32> to vector<2x256xbf16>
    %c2_69 = arith.constant 2 : index
    %c0_70 = arith.constant 0 : index
    %c0_71 = arith.constant 0 : index
    %100 = vector.load %arg4[%c2_69, %c0_70, %c0_71] : memref<8x256x128xbf16, #tpu.memory_space<vmem>>, vector<1x256x128xbf16>
    %101 = vector.shape_cast %100 : vector<1x256x128xbf16> to vector<256x128xbf16>
    %cst_72 = arith.constant dense<0.000000e+00> : vector<2x128xf32>
    %102 = tpu.matmul %99, %101, %cst_72 {dimension_numbers = #tpu.dot_dimension_numbers<[1], [0], [0], [1], [0, 0, 1, 1], [], []>} : vector<2x256xbf16>, vector<256x128xbf16>, vector<2x128xf32> -> vector<2x128xf32>
    %c2_73 = arith.constant 2 : index
    %c0_74 = arith.constant 0 : index
    %c0_75 = arith.constant 0 : index
    %103 = vector.load %arg5[%c2_73, %c0_74, %c0_75] : memref<8x1x128xf32, #tpu.memory_space<vmem>>, vector<1x1x128xf32>
    %104 = vector.shape_cast %103 : vector<1x1x128xf32> to vector<1x128xf32>
    %105 = vector.broadcast %104 : vector<1x128xf32> to vector<2x128xf32>
    %106 = arith.addf %102, %105 : vector<2x128xf32>
    %cst_76 = arith.constant 5.000000e-01 : f32
    %107 = vector.broadcast %cst_76 : f32 to vector<2x128xf32>
    %108 = arith.mulf %107, %106 : vector<2x128xf32>
    %cst_77 = arith.constant 0.707106769 : f32
    %109 = vector.broadcast %cst_77 : f32 to vector<2x128xf32>
    %110 = arith.mulf %106, %109 : vector<2x128xf32>
    %111 = math.erf %110 : vector<2x128xf32>
    %cst_78 = arith.constant 1.000000e+00 : f32
    %112 = vector.broadcast %cst_78 : f32 to vector<2x128xf32>
    %113 = arith.addf %112, %111 : vector<2x128xf32>
    %114 = arith.mulf %108, %113 : vector<2x128xf32>
    %115 = arith.truncf %114 : vector<2x128xf32> to vector<2x128xbf16>
    %c2_79 = arith.constant 2 : index
    %c0_80 = arith.constant 0 : index
    %c0_81 = arith.constant 0 : index
    %116 = vector.load %arg6[%c2_79, %c0_80, %c0_81] : memref<8x128x16xbf16, #tpu.memory_space<vmem>>, vector<1x128x16xbf16>
    %117 = vector.shape_cast %116 : vector<1x128x16xbf16> to vector<128x16xbf16>
    %cst_82 = arith.constant dense<0.000000e+00> : vector<2x16xf32>
    %118 = tpu.matmul %115, %117, %cst_82 {dimension_numbers = #tpu.dot_dimension_numbers<[1], [0], [0], [1], [0, 0, 1, 1], [], []>} : vector<2x128xbf16>, vector<128x16xbf16>, vector<2x16xf32> -> vector<2x16xf32>
    %c2_83 = arith.constant 2 : index
    %c0_84 = arith.constant 0 : index
    %c0_85 = arith.constant 0 : index
    %119 = vector.load %arg7[%c2_83, %c0_84, %c0_85] : memref<8x1x16xf32, #tpu.memory_space<vmem>>, vector<1x1x16xf32>
    %120 = vector.shape_cast %119 : vector<1x1x16xf32> to vector<1x16xf32>
    %121 = vector.broadcast %120 : vector<1x16xf32> to vector<2x16xf32>
    %122 = arith.addf %118, %121 : vector<2x16xf32>
    %c3 = arith.constant 3 : index
    %c0_86 = arith.constant 0 : index
    %c0_87 = arith.constant 0 : index
    %123 = vector.load %arg1[%c3, %c0_86, %c0_87] : memref<8x2x64xbf16, #tpu.memory_space<vmem>>, vector<1x2x64xbf16>
    %124 = vector.shape_cast %123 : vector<1x2x64xbf16> to vector<2x64xbf16>
    %c3_88 = arith.constant 3 : index
    %c0_89 = arith.constant 0 : index
    %c0_90 = arith.constant 0 : index
    %125 = vector.load %arg2[%c3_88, %c0_89, %c0_90] : memref<8x64x256xbf16, #tpu.memory_space<vmem>>, vector<1x64x256xbf16>
    %126 = vector.shape_cast %125 : vector<1x64x256xbf16> to vector<64x256xbf16>
    %cst_91 = arith.constant dense<0.000000e+00> : vector<2x256xf32>
    %127 = tpu.matmul %124, %126, %cst_91 {dimension_numbers = #tpu.dot_dimension_numbers<[1], [0], [0], [1], [0, 0, 1, 1], [], []>} : vector<2x64xbf16>, vector<64x256xbf16>, vector<2x256xf32> -> vector<2x256xf32>
    %c3_92 = arith.constant 3 : index
    %c0_93 = arith.constant 0 : index
    %c0_94 = arith.constant 0 : index
    %128 = vector.load %arg3[%c3_92, %c0_93, %c0_94] : memref<8x1x256xf32, #tpu.memory_space<vmem>>, vector<1x1x256xf32>
    %129 = vector.shape_cast %128 : vector<1x1x256xf32> to vector<1x256xf32>
    %130 = vector.broadcast %129 : vector<1x256xf32> to vector<2x256xf32>
    %131 = arith.addf %127, %130 : vector<2x256xf32>
    %cst_95 = arith.constant 5.000000e-01 : f32
    %132 = vector.broadcast %cst_95 : f32 to vector<2x256xf32>
    %133 = arith.mulf %132, %131 : vector<2x256xf32>
    %cst_96 = arith.constant 0.707106769 : f32
    %134 = vector.broadcast %cst_96 : f32 to vector<2x256xf32>
    %135 = arith.mulf %131, %134 : vector<2x256xf32>
    %136 = math.erf %135 : vector<2x256xf32>
    %cst_97 = arith.constant 1.000000e+00 : f32
    %137 = vector.broadcast %cst_97 : f32 to vector<2x256xf32>
    %138 = arith.addf %137, %136 : vector<2x256xf32>
    %139 = arith.mulf %133, %138 : vector<2x256xf32>
    %140 = arith.truncf %139 : vector<2x256xf32> to vector<2x256xbf16>
    %c3_98 = arith.constant 3 : index
    %c0_99 = arith.constant 0 : index
    %c0_100 = arith.constant 0 : index
    %141 = vector.load %arg4[%c3_98, %c0_99, %c0_100] : memref<8x256x128xbf16, #tpu.memory_space<vmem>>, vector<1x256x128xbf16>
    %142 = vector.shape_cast %141 : vector<1x256x128xbf16> to vector<256x128xbf16>
    %cst_101 = arith.constant dense<0.000000e+00> : vector<2x128xf32>
    %143 = tpu.matmul %140, %142, %cst_101 {dimension_numbers = #tpu.dot_dimension_numbers<[1], [0], [0], [1], [0, 0, 1, 1], [], []>} : vector<2x256xbf16>, vector<256x128xbf16>, vector<2x128xf32> -> vector<2x128xf32>
    %c3_102 = arith.constant 3 : index
    %c0_103 = arith.constant 0 : index
    %c0_104 = arith.constant 0 : index
    %144 = vector.load %arg5[%c3_102, %c0_103, %c0_104] : memref<8x1x128xf32, #tpu.memory_space<vmem>>, vector<1x1x128xf32>
    %145 = vector.shape_cast %144 : vector<1x1x128xf32> to vector<1x128xf32>
    %146 = vector.broadcast %145 : vector<1x128xf32> to vector<2x128xf32>
    %147 = arith.addf %143, %146 : vector<2x128xf32>
    %cst_105 = arith.constant 5.000000e-01 : f32
    %148 = vector.broadcast %cst_105 : f32 to vector<2x128xf32>
    %149 = arith.mulf %148, %147 : vector<2x128xf32>
    %cst_106 = arith.constant 0.707106769 : f32
    %150 = vector.broadcast %cst_106 : f32 to vector<2x128xf32>
    %151 = arith.mulf %147, %150 : vector<2x128xf32>
    %152 = math.erf %151 : vector<2x128xf32>
    %cst_107 = arith.constant 1.000000e+00 : f32
    %153 = vector.broadcast %cst_107 : f32 to vector<2x128xf32>
    %154 = arith.addf %153, %152 : vector<2x128xf32>
    %155 = arith.mulf %149, %154 : vector<2x128xf32>
    %156 = arith.truncf %155 : vector<2x128xf32> to vector<2x128xbf16>
    %c3_108 = arith.constant 3 : index
    %c0_109 = arith.constant 0 : index
    %c0_110 = arith.constant 0 : index
    %157 = vector.load %arg6[%c3_108, %c0_109, %c0_110] : memref<8x128x16xbf16, #tpu.memory_space<vmem>>, vector<1x128x16xbf16>
    %158 = vector.shape_cast %157 : vector<1x128x16xbf16> to vector<128x16xbf16>
    %cst_111 = arith.constant dense<0.000000e+00> : vector<2x16xf32>
    %159 = tpu.matmul %156, %158, %cst_111 {dimension_numbers = #tpu.dot_dimension_numbers<[1], [0], [0], [1], [0, 0, 1, 1], [], []>} : vector<2x128xbf16>, vector<128x16xbf16>, vector<2x16xf32> -> vector<2x16xf32>
    %c3_112 = arith.constant 3 : index
    %c0_113 = arith.constant 0 : index
    %c0_114 = arith.constant 0 : index
    %160 = vector.load %arg7[%c3_112, %c0_113, %c0_114] : memref<8x1x16xf32, #tpu.memory_space<vmem>>, vector<1x1x16xf32>
    %161 = vector.shape_cast %160 : vector<1x1x16xf32> to vector<1x16xf32>
    %162 = vector.broadcast %161 : vector<1x16xf32> to vector<2x16xf32>
    %163 = arith.addf %159, %162 : vector<2x16xf32>
    %c4 = arith.constant 4 : index
    %c0_115 = arith.constant 0 : index
    %c0_116 = arith.constant 0 : index
    %164 = vector.load %arg1[%c4, %c0_115, %c0_116] : memref<8x2x64xbf16, #tpu.memory_space<vmem>>, vector<1x2x64xbf16>
    %165 = vector.shape_cast %164 : vector<1x2x64xbf16> to vector<2x64xbf16>
    %c4_117 = arith.constant 4 : index
    %c0_118 = arith.constant 0 : index
    %c0_119 = arith.constant 0 : index
    %166 = vector.load %arg2[%c4_117, %c0_118, %c0_119] : memref<8x64x256xbf16, #tpu.memory_space<vmem>>, vector<1x64x256xbf16>
    %167 = vector.shape_cast %166 : vector<1x64x256xbf16> to vector<64x256xbf16>
    %cst_120 = arith.constant dense<0.000000e+00> : vector<2x256xf32>
    %168 = tpu.matmul %165, %167, %cst_120 {dimension_numbers = #tpu.dot_dimension_numbers<[1], [0], [0], [1], [0, 0, 1, 1], [], []>} : vector<2x64xbf16>, vector<64x256xbf16>, vector<2x256xf32> -> vector<2x256xf32>
    %c4_121 = arith.constant 4 : index
    %c0_122 = arith.constant 0 : index
    %c0_123 = arith.constant 0 : index
    %169 = vector.load %arg3[%c4_121, %c0_122, %c0_123] : memref<8x1x256xf32, #tpu.memory_space<vmem>>, vector<1x1x256xf32>
    %170 = vector.shape_cast %169 : vector<1x1x256xf32> to vector<1x256xf32>
    %171 = vector.broadcast %170 : vector<1x256xf32> to vector<2x256xf32>
    %172 = arith.addf %168, %171 : vector<2x256xf32>
    %cst_124 = arith.constant 5.000000e-01 : f32
    %173 = vector.broadcast %cst_124 : f32 to vector<2x256xf32>
    %174 = arith.mulf %173, %172 : vector<2x256xf32>
    %cst_125 = arith.constant 0.707106769 : f32
    %175 = vector.broadcast %cst_125 : f32 to vector<2x256xf32>
    %176 = arith.mulf %172, %175 : vector<2x256xf32>
    %177 = math.erf %176 : vector<2x256xf32>
    %cst_126 = arith.constant 1.000000e+00 : f32
    %178 = vector.broadcast %cst_126 : f32 to vector<2x256xf32>
    %179 = arith.addf %178, %177 : vector<2x256xf32>
    %180 = arith.mulf %174, %179 : vector<2x256xf32>
    %181 = arith.truncf %180 : vector<2x256xf32> to vector<2x256xbf16>
    %c4_127 = arith.constant 4 : index
    %c0_128 = arith.constant 0 : index
    %c0_129 = arith.constant 0 : index
    %182 = vector.load %arg4[%c4_127, %c0_128, %c0_129] : memref<8x256x128xbf16, #tpu.memory_space<vmem>>, vector<1x256x128xbf16>
    %183 = vector.shape_cast %182 : vector<1x256x128xbf16> to vector<256x128xbf16>
    %cst_130 = arith.constant dense<0.000000e+00> : vector<2x128xf32>
    %184 = tpu.matmul %181, %183, %cst_130 {dimension_numbers = #tpu.dot_dimension_numbers<[1], [0], [0], [1], [0, 0, 1, 1], [], []>} : vector<2x256xbf16>, vector<256x128xbf16>, vector<2x128xf32> -> vector<2x128xf32>
    %c4_131 = arith.constant 4 : index
    %c0_132 = arith.constant 0 : index
    %c0_133 = arith.constant 0 : index
    %185 = vector.load %arg5[%c4_131, %c0_132, %c0_133] : memref<8x1x128xf32, #tpu.memory_space<vmem>>, vector<1x1x128xf32>
    %186 = vector.shape_cast %185 : vector<1x1x128xf32> to vector<1x128xf32>
    %187 = vector.broadcast %186 : vector<1x128xf32> to vector<2x128xf32>
    %188 = arith.addf %184, %187 : vector<2x128xf32>
    %cst_134 = arith.constant 5.000000e-01 : f32
    %189 = vector.broadcast %cst_134 : f32 to vector<2x128xf32>
    %190 = arith.mulf %189, %188 : vector<2x128xf32>
    %cst_135 = arith.constant 0.707106769 : f32
    %191 = vector.broadcast %cst_135 : f32 to vector<2x128xf32>
    %192 = arith.mulf %188, %191 : vector<2x128xf32>
    %193 = math.erf %192 : vector<2x128xf32>
    %cst_136 = arith.constant 1.000000e+00 : f32
    %194 = vector.broadcast %cst_136 : f32 to vector<2x128xf32>
    %195 = arith.addf %194, %193 : vector<2x128xf32>
    %196 = arith.mulf %190, %195 : vector<2x128xf32>
    %197 = arith.truncf %196 : vector<2x128xf32> to vector<2x128xbf16>
    %c4_137 = arith.constant 4 : index
    %c0_138 = arith.constant 0 : index
    %c0_139 = arith.constant 0 : index
    %198 = vector.load %arg6[%c4_137, %c0_138, %c0_139] : memref<8x128x16xbf16, #tpu.memory_space<vmem>>, vector<1x128x16xbf16>
    %199 = vector.shape_cast %198 : vector<1x128x16xbf16> to vector<128x16xbf16>
    %cst_140 = arith.constant dense<0.000000e+00> : vector<2x16xf32>
    %200 = tpu.matmul %197, %199, %cst_140 {dimension_numbers = #tpu.dot_dimension_numbers<[1], [0], [0], [1], [0, 0, 1, 1], [], []>} : vector<2x128xbf16>, vector<128x16xbf16>, vector<2x16xf32> -> vector<2x16xf32>
    %c4_141 = arith.constant 4 : index
    %c0_142 = arith.constant 0 : index
    %c0_143 = arith.constant 0 : index
    %201 = vector.load %arg7[%c4_141, %c0_142, %c0_143] : memref<8x1x16xf32, #tpu.memory_space<vmem>>, vector<1x1x16xf32>
    %202 = vector.shape_cast %201 : vector<1x1x16xf32> to vector<1x16xf32>
    %203 = vector.broadcast %202 : vector<1x16xf32> to vector<2x16xf32>
    %204 = arith.addf %200, %203 : vector<2x16xf32>
    %c5 = arith.constant 5 : index
    %c0_144 = arith.constant 0 : index
    %c0_145 = arith.constant 0 : index
    %205 = vector.load %arg1[%c5, %c0_144, %c0_145] : memref<8x2x64xbf16, #tpu.memory_space<vmem>>, vector<1x2x64xbf16>
    %206 = vector.shape_cast %205 : vector<1x2x64xbf16> to vector<2x64xbf16>
    %c5_146 = arith.constant 5 : index
    %c0_147 = arith.constant 0 : index
    %c0_148 = arith.constant 0 : index
    %207 = vector.load %arg2[%c5_146, %c0_147, %c0_148] : memref<8x64x256xbf16, #tpu.memory_space<vmem>>, vector<1x64x256xbf16>
    %208 = vector.shape_cast %207 : vector<1x64x256xbf16> to vector<64x256xbf16>
    %cst_149 = arith.constant dense<0.000000e+00> : vector<2x256xf32>
    %209 = tpu.matmul %206, %208, %cst_149 {dimension_numbers = #tpu.dot_dimension_numbers<[1], [0], [0], [1], [0, 0, 1, 1], [], []>} : vector<2x64xbf16>, vector<64x256xbf16>, vector<2x256xf32> -> vector<2x256xf32>
    %c5_150 = arith.constant 5 : index
    %c0_151 = arith.constant 0 : index
    %c0_152 = arith.constant 0 : index
    %210 = vector.load %arg3[%c5_150, %c0_151, %c0_152] : memref<8x1x256xf32, #tpu.memory_space<vmem>>, vector<1x1x256xf32>
    %211 = vector.shape_cast %210 : vector<1x1x256xf32> to vector<1x256xf32>
    %212 = vector.broadcast %211 : vector<1x256xf32> to vector<2x256xf32>
    %213 = arith.addf %209, %212 : vector<2x256xf32>
    %cst_153 = arith.constant 5.000000e-01 : f32
    %214 = vector.broadcast %cst_153 : f32 to vector<2x256xf32>
    %215 = arith.mulf %214, %213 : vector<2x256xf32>
    %cst_154 = arith.constant 0.707106769 : f32
    %216 = vector.broadcast %cst_154 : f32 to vector<2x256xf32>
    %217 = arith.mulf %213, %216 : vector<2x256xf32>
    %218 = math.erf %217 : vector<2x256xf32>
    %cst_155 = arith.constant 1.000000e+00 : f32
    %219 = vector.broadcast %cst_155 : f32 to vector<2x256xf32>
    %220 = arith.addf %219, %218 : vector<2x256xf32>
    %221 = arith.mulf %215, %220 : vector<2x256xf32>
    %222 = arith.truncf %221 : vector<2x256xf32> to vector<2x256xbf16>
    %c5_156 = arith.constant 5 : index
    %c0_157 = arith.constant 0 : index
    %c0_158 = arith.constant 0 : index
    %223 = vector.load %arg4[%c5_156, %c0_157, %c0_158] : memref<8x256x128xbf16, #tpu.memory_space<vmem>>, vector<1x256x128xbf16>
    %224 = vector.shape_cast %223 : vector<1x256x128xbf16> to vector<256x128xbf16>
    %cst_159 = arith.constant dense<0.000000e+00> : vector<2x128xf32>
    %225 = tpu.matmul %222, %224, %cst_159 {dimension_numbers = #tpu.dot_dimension_numbers<[1], [0], [0], [1], [0, 0, 1, 1], [], []>} : vector<2x256xbf16>, vector<256x128xbf16>, vector<2x128xf32> -> vector<2x128xf32>
    %c5_160 = arith.constant 5 : index
    %c0_161 = arith.constant 0 : index
    %c0_162 = arith.constant 0 : index
    %226 = vector.load %arg5[%c5_160, %c0_161, %c0_162] : memref<8x1x128xf32, #tpu.memory_space<vmem>>, vector<1x1x128xf32>
    %227 = vector.shape_cast %226 : vector<1x1x128xf32> to vector<1x128xf32>
    %228 = vector.broadcast %227 : vector<1x128xf32> to vector<2x128xf32>
    %229 = arith.addf %225, %228 : vector<2x128xf32>
    %cst_163 = arith.constant 5.000000e-01 : f32
    %230 = vector.broadcast %cst_163 : f32 to vector<2x128xf32>
    %231 = arith.mulf %230, %229 : vector<2x128xf32>
    %cst_164 = arith.constant 0.707106769 : f32
    %232 = vector.broadcast %cst_164 : f32 to vector<2x128xf32>
    %233 = arith.mulf %229, %232 : vector<2x128xf32>
    %234 = math.erf %233 : vector<2x128xf32>
    %cst_165 = arith.constant 1.000000e+00 : f32
    %235 = vector.broadcast %cst_165 : f32 to vector<2x128xf32>
    %236 = arith.addf %235, %234 : vector<2x128xf32>
    %237 = arith.mulf %231, %236 : vector<2x128xf32>
    %238 = arith.truncf %237 : vector<2x128xf32> to vector<2x128xbf16>
    %c5_166 = arith.constant 5 : index
    %c0_167 = arith.constant 0 : index
    %c0_168 = arith.constant 0 : index
    %239 = vector.load %arg6[%c5_166, %c0_167, %c0_168] : memref<8x128x16xbf16, #tpu.memory_space<vmem>>, vector<1x128x16xbf16>
    %240 = vector.shape_cast %239 : vector<1x128x16xbf16> to vector<128x16xbf16>
    %cst_169 = arith.constant dense<0.000000e+00> : vector<2x16xf32>
    %241 = tpu.matmul %238, %240, %cst_169 {dimension_numbers = #tpu.dot_dimension_numbers<[1], [0], [0], [1], [0, 0, 1, 1], [], []>} : vector<2x128xbf16>, vector<128x16xbf16>, vector<2x16xf32> -> vector<2x16xf32>
    %c5_170 = arith.constant 5 : index
    %c0_171 = arith.constant 0 : index
    %c0_172 = arith.constant 0 : index
    %242 = vector.load %arg7[%c5_170, %c0_171, %c0_172] : memref<8x1x16xf32, #tpu.memory_space<vmem>>, vector<1x1x16xf32>
    %243 = vector.shape_cast %242 : vector<1x1x16xf32> to vector<1x16xf32>
    %244 = vector.broadcast %243 : vector<1x16xf32> to vector<2x16xf32>
    %245 = arith.addf %241, %244 : vector<2x16xf32>
    %c6 = arith.constant 6 : index
    %c0_173 = arith.constant 0 : index
    %c0_174 = arith.constant 0 : index
    %246 = vector.load %arg1[%c6, %c0_173, %c0_174] : memref<8x2x64xbf16, #tpu.memory_space<vmem>>, vector<1x2x64xbf16>
    %247 = vector.shape_cast %246 : vector<1x2x64xbf16> to vector<2x64xbf16>
    %c6_175 = arith.constant 6 : index
    %c0_176 = arith.constant 0 : index
    %c0_177 = arith.constant 0 : index
    %248 = vector.load %arg2[%c6_175, %c0_176, %c0_177] : memref<8x64x256xbf16, #tpu.memory_space<vmem>>, vector<1x64x256xbf16>
    %249 = vector.shape_cast %248 : vector<1x64x256xbf16> to vector<64x256xbf16>
    %cst_178 = arith.constant dense<0.000000e+00> : vector<2x256xf32>
    %250 = tpu.matmul %247, %249, %cst_178 {dimension_numbers = #tpu.dot_dimension_numbers<[1], [0], [0], [1], [0, 0, 1, 1], [], []>} : vector<2x64xbf16>, vector<64x256xbf16>, vector<2x256xf32> -> vector<2x256xf32>
    %c6_179 = arith.constant 6 : index
    %c0_180 = arith.constant 0 : index
    %c0_181 = arith.constant 0 : index
    %251 = vector.load %arg3[%c6_179, %c0_180, %c0_181] : memref<8x1x256xf32, #tpu.memory_space<vmem>>, vector<1x1x256xf32>
    %252 = vector.shape_cast %251 : vector<1x1x256xf32> to vector<1x256xf32>
    %253 = vector.broadcast %252 : vector<1x256xf32> to vector<2x256xf32>
    %254 = arith.addf %250, %253 : vector<2x256xf32>
    %cst_182 = arith.constant 5.000000e-01 : f32
    %255 = vector.broadcast %cst_182 : f32 to vector<2x256xf32>
    %256 = arith.mulf %255, %254 : vector<2x256xf32>
    %cst_183 = arith.constant 0.707106769 : f32
    %257 = vector.broadcast %cst_183 : f32 to vector<2x256xf32>
    %258 = arith.mulf %254, %257 : vector<2x256xf32>
    %259 = math.erf %258 : vector<2x256xf32>
    %cst_184 = arith.constant 1.000000e+00 : f32
    %260 = vector.broadcast %cst_184 : f32 to vector<2x256xf32>
    %261 = arith.addf %260, %259 : vector<2x256xf32>
    %262 = arith.mulf %256, %261 : vector<2x256xf32>
    %263 = arith.truncf %262 : vector<2x256xf32> to vector<2x256xbf16>
    %c6_185 = arith.constant 6 : index
    %c0_186 = arith.constant 0 : index
    %c0_187 = arith.constant 0 : index
    %264 = vector.load %arg4[%c6_185, %c0_186, %c0_187] : memref<8x256x128xbf16, #tpu.memory_space<vmem>>, vector<1x256x128xbf16>
    %265 = vector.shape_cast %264 : vector<1x256x128xbf16> to vector<256x128xbf16>
    %cst_188 = arith.constant dense<0.000000e+00> : vector<2x128xf32>
    %266 = tpu.matmul %263, %265, %cst_188 {dimension_numbers = #tpu.dot_dimension_numbers<[1], [0], [0], [1], [0, 0, 1, 1], [], []>} : vector<2x256xbf16>, vector<256x128xbf16>, vector<2x128xf32> -> vector<2x128xf32>
    %c6_189 = arith.constant 6 : index
    %c0_190 = arith.constant 0 : index
    %c0_191 = arith.constant 0 : index
    %267 = vector.load %arg5[%c6_189, %c0_190, %c0_191] : memref<8x1x128xf32, #tpu.memory_space<vmem>>, vector<1x1x128xf32>
    %268 = vector.shape_cast %267 : vector<1x1x128xf32> to vector<1x128xf32>
    %269 = vector.broadcast %268 : vector<1x128xf32> to vector<2x128xf32>
    %270 = arith.addf %266, %269 : vector<2x128xf32>
    %cst_192 = arith.constant 5.000000e-01 : f32
    %271 = vector.broadcast %cst_192 : f32 to vector<2x128xf32>
    %272 = arith.mulf %271, %270 : vector<2x128xf32>
    %cst_193 = arith.constant 0.707106769 : f32
    %273 = vector.broadcast %cst_193 : f32 to vector<2x128xf32>
    %274 = arith.mulf %270, %273 : vector<2x128xf32>
    %275 = math.erf %274 : vector<2x128xf32>
    %cst_194 = arith.constant 1.000000e+00 : f32
    %276 = vector.broadcast %cst_194 : f32 to vector<2x128xf32>
    %277 = arith.addf %276, %275 : vector<2x128xf32>
    %278 = arith.mulf %272, %277 : vector<2x128xf32>
    %279 = arith.truncf %278 : vector<2x128xf32> to vector<2x128xbf16>
    %c6_195 = arith.constant 6 : index
    %c0_196 = arith.constant 0 : index
    %c0_197 = arith.constant 0 : index
    %280 = vector.load %arg6[%c6_195, %c0_196, %c0_197] : memref<8x128x16xbf16, #tpu.memory_space<vmem>>, vector<1x128x16xbf16>
    %281 = vector.shape_cast %280 : vector<1x128x16xbf16> to vector<128x16xbf16>
    %cst_198 = arith.constant dense<0.000000e+00> : vector<2x16xf32>
    %282 = tpu.matmul %279, %281, %cst_198 {dimension_numbers = #tpu.dot_dimension_numbers<[1], [0], [0], [1], [0, 0, 1, 1], [], []>} : vector<2x128xbf16>, vector<128x16xbf16>, vector<2x16xf32> -> vector<2x16xf32>
    %c6_199 = arith.constant 6 : index
    %c0_200 = arith.constant 0 : index
    %c0_201 = arith.constant 0 : index
    %283 = vector.load %arg7[%c6_199, %c0_200, %c0_201] : memref<8x1x16xf32, #tpu.memory_space<vmem>>, vector<1x1x16xf32>
    %284 = vector.shape_cast %283 : vector<1x1x16xf32> to vector<1x16xf32>
    %285 = vector.broadcast %284 : vector<1x16xf32> to vector<2x16xf32>
    %286 = arith.addf %282, %285 : vector<2x16xf32>
    %c7 = arith.constant 7 : index
    %c0_202 = arith.constant 0 : index
    %c0_203 = arith.constant 0 : index
    %287 = vector.load %arg1[%c7, %c0_202, %c0_203] : memref<8x2x64xbf16, #tpu.memory_space<vmem>>, vector<1x2x64xbf16>
    %288 = vector.shape_cast %287 : vector<1x2x64xbf16> to vector<2x64xbf16>
    %c7_204 = arith.constant 7 : index
    %c0_205 = arith.constant 0 : index
    %c0_206 = arith.constant 0 : index
    %289 = vector.load %arg2[%c7_204, %c0_205, %c0_206] : memref<8x64x256xbf16, #tpu.memory_space<vmem>>, vector<1x64x256xbf16>
    %290 = vector.shape_cast %289 : vector<1x64x256xbf16> to vector<64x256xbf16>
    %cst_207 = arith.constant dense<0.000000e+00> : vector<2x256xf32>
    %291 = tpu.matmul %288, %290, %cst_207 {dimension_numbers = #tpu.dot_dimension_numbers<[1], [0], [0], [1], [0, 0, 1, 1], [], []>} : vector<2x64xbf16>, vector<64x256xbf16>, vector<2x256xf32> -> vector<2x256xf32>
    %c7_208 = arith.constant 7 : index
    %c0_209 = arith.constant 0 : index
    %c0_210 = arith.constant 0 : index
    %292 = vector.load %arg3[%c7_208, %c0_209, %c0_210] : memref<8x1x256xf32, #tpu.memory_space<vmem>>, vector<1x1x256xf32>
    %293 = vector.shape_cast %292 : vector<1x1x256xf32> to vector<1x256xf32>
    %294 = vector.broadcast %293 : vector<1x256xf32> to vector<2x256xf32>
    %295 = arith.addf %291, %294 : vector<2x256xf32>
    %cst_211 = arith.constant 5.000000e-01 : f32
    %296 = vector.broadcast %cst_211 : f32 to vector<2x256xf32>
    %297 = arith.mulf %296, %295 : vector<2x256xf32>
    %cst_212 = arith.constant 0.707106769 : f32
    %298 = vector.broadcast %cst_212 : f32 to vector<2x256xf32>
    %299 = arith.mulf %295, %298 : vector<2x256xf32>
    %300 = math.erf %299 : vector<2x256xf32>
    %cst_213 = arith.constant 1.000000e+00 : f32
    %301 = vector.broadcast %cst_213 : f32 to vector<2x256xf32>
    %302 = arith.addf %301, %300 : vector<2x256xf32>
    %303 = arith.mulf %297, %302 : vector<2x256xf32>
    %304 = arith.truncf %303 : vector<2x256xf32> to vector<2x256xbf16>
    %c7_214 = arith.constant 7 : index
    %c0_215 = arith.constant 0 : index
    %c0_216 = arith.constant 0 : index
    %305 = vector.load %arg4[%c7_214, %c0_215, %c0_216] : memref<8x256x128xbf16, #tpu.memory_space<vmem>>, vector<1x256x128xbf16>
    %306 = vector.shape_cast %305 : vector<1x256x128xbf16> to vector<256x128xbf16>
    %cst_217 = arith.constant dense<0.000000e+00> : vector<2x128xf32>
    %307 = tpu.matmul %304, %306, %cst_217 {dimension_numbers = #tpu.dot_dimension_numbers<[1], [0], [0], [1], [0, 0, 1, 1], [], []>} : vector<2x256xbf16>, vector<256x128xbf16>, vector<2x128xf32> -> vector<2x128xf32>
    %c7_218 = arith.constant 7 : index
    %c0_219 = arith.constant 0 : index
    %c0_220 = arith.constant 0 : index
    %308 = vector.load %arg5[%c7_218, %c0_219, %c0_220] : memref<8x1x128xf32, #tpu.memory_space<vmem>>, vector<1x1x128xf32>
    %309 = vector.shape_cast %308 : vector<1x1x128xf32> to vector<1x128xf32>
    %310 = vector.broadcast %309 : vector<1x128xf32> to vector<2x128xf32>
    %311 = arith.addf %307, %310 : vector<2x128xf32>
    %cst_221 = arith.constant 5.000000e-01 : f32
    %312 = vector.broadcast %cst_221 : f32 to vector<2x128xf32>
    %313 = arith.mulf %312, %311 : vector<2x128xf32>
    %cst_222 = arith.constant 0.707106769 : f32
    %314 = vector.broadcast %cst_222 : f32 to vector<2x128xf32>
    %315 = arith.mulf %311, %314 : vector<2x128xf32>
    %316 = math.erf %315 : vector<2x128xf32>
    %cst_223 = arith.constant 1.000000e+00 : f32
    %317 = vector.broadcast %cst_223 : f32 to vector<2x128xf32>
    %318 = arith.addf %317, %316 : vector<2x128xf32>
    %319 = arith.mulf %313, %318 : vector<2x128xf32>
    %320 = arith.truncf %319 : vector<2x128xf32> to vector<2x128xbf16>
    %c7_224 = arith.constant 7 : index
    %c0_225 = arith.constant 0 : index
    %c0_226 = arith.constant 0 : index
    %321 = vector.load %arg6[%c7_224, %c0_225, %c0_226] : memref<8x128x16xbf16, #tpu.memory_space<vmem>>, vector<1x128x16xbf16>
    %322 = vector.shape_cast %321 : vector<1x128x16xbf16> to vector<128x16xbf16>
    %cst_227 = arith.constant dense<0.000000e+00> : vector<2x16xf32>
    %323 = tpu.matmul %320, %322, %cst_227 {dimension_numbers = #tpu.dot_dimension_numbers<[1], [0], [0], [1], [0, 0, 1, 1], [], []>} : vector<2x128xbf16>, vector<128x16xbf16>, vector<2x16xf32> -> vector<2x16xf32>
    %c7_228 = arith.constant 7 : index
    %c0_229 = arith.constant 0 : index
    %c0_230 = arith.constant 0 : index
    %324 = vector.load %arg7[%c7_228, %c0_229, %c0_230] : memref<8x1x16xf32, #tpu.memory_space<vmem>>, vector<1x1x16xf32>
    %325 = vector.shape_cast %324 : vector<1x1x16xf32> to vector<1x16xf32>
    %326 = vector.broadcast %325 : vector<1x16xf32> to vector<2x16xf32>
    %327 = arith.addf %323, %326 : vector<2x16xf32>
    %328 = tpu.concatenate %40, %81, %122, %163, %204, %245, %286, %327 in 1 : vector<2x16xf32>, vector<2x16xf32>, vector<2x16xf32>, vector<2x16xf32>, vector<2x16xf32>, vector<2x16xf32>, vector<2x16xf32>, vector<2x16xf32> -> vector<2x128xf32>
    %c0_231 = arith.constant 0 : index
    %c0_232 = arith.constant 0 : index
    %329 = vector.load %arg8[%c0_231, %c0_232] : memref<2x128xf32, #tpu.memory_space<vmem>>, vector<2x128xf32>
    tpu.vector_store %arg8[%c0_231, %c0_232], %328 {strides = array<i32>} : memref<2x128xf32, #tpu.memory_space<vmem>>, vector<2x128xf32>,
    return
  }
  func.func @transform_0(%arg0: i32) -> (i32, i32, i32) {
    %c0_i32 = arith.constant 0 : i32
    %c0_i32_0 = arith.constant 0 : i32
    %c0_i32_1 = arith.constant 0 : i32
    return %c0_i32, %arg0, %c0_i32_0 : i32, i32, i32
  }
  func.func @transform_1(%arg0: i32) -> (i32, i32, i32) {
    %c0_i32 = arith.constant 0 : i32
    %c0_i32_0 = arith.constant 0 : i32
    %c0_i32_1 = arith.constant 0 : i32
    %c0_i32_2 = arith.constant 0 : i32
    return %c0_i32, %c0_i32_0, %c0_i32_1 : i32, i32, i32
  }
  func.func @transform_2(%arg0: i32) -> (i32, i32, i32) {
    %c0_i32 = arith.constant 0 : i32
    %c0_i32_0 = arith.constant 0 : i32
    %c0_i32_1 = arith.constant 0 : i32
    %c0_i32_2 = arith.constant 0 : i32
    return %c0_i32, %c0_i32_0, %c0_i32_1 : i32, i32, i32
  }
  func.func @transform_3(%arg0: i32) -> (i32, i32, i32) {
    %c0_i32 = arith.constant 0 : i32
    %c0_i32_0 = arith.constant 0 : i32
    %c0_i32_1 = arith.constant 0 : i32
    %c0_i32_2 = arith.constant 0 : i32
    return %c0_i32, %c0_i32_0, %c0_i32_1 : i32, i32, i32
  }
  func.func @transform_4(%arg0: i32) -> (i32, i32, i32) {
    %c0_i32 = arith.constant 0 : i32
    %c0_i32_0 = arith.constant 0 : i32
    %c0_i32_1 = arith.constant 0 : i32
    %c0_i32_2 = arith.constant 0 : i32
    return %c0_i32, %c0_i32_0, %c0_i32_1 : i32, i32, i32
  }
  func.func @transform_5(%arg0: i32) -> (i32, i32, i32) {
    %c0_i32 = arith.constant 0 : i32
    %c0_i32_0 = arith.constant 0 : i32
    %c0_i32_1 = arith.constant 0 : i32
    %c0_i32_2 = arith.constant 0 : i32
    return %c0_i32, %c0_i32_0, %c0_i32_1 : i32, i32, i32
  }
  func.func @transform_6(%arg0: i32) -> (i32, i32, i32) {
    %c0_i32 = arith.constant 0 : i32
    %c0_i32_0 = arith.constant 0 : i32
    %c0_i32_1 = arith.constant 0 : i32
    %c0_i32_2 = arith.constant 0 : i32
    return %c0_i32, %c0_i32_0, %c0_i32_1 : i32, i32, i32
  }
  func.func @transform_7(%arg0: i32) -> (i32, i32) {
    %c0_i32 = arith.constant 0 : i32
    %c0_i32_0 = arith.constant 0 : i32
    return %arg0, %c0_i32 : i32, i32
  }
}

</mosaic_0001>

<llo_original>
// kernel: classification_head_forward.1
$region0: #{classification_head_forward.1}
  #allocation0 [shape = 'u32[]', space=smem, size = 0x4, offset = 0x4, fixed_abs, tag = 'smem constant byte address 0x4 - core index']
  #allocation1 [shape = 'u32[72,128]{1,0:T(1,128)}', space=vmem, size = 0x9000, scoped, tag = 'internal scratch']
  %s0 = inlined_call_operand.vmem [shape: bf16[8,2,64], index: 0, kind: input, shape index: {}]
  %s1 = inlined_call_operand.vmem [shape: bf16[8,64,256], index: 1, kind: input, shape index: {}]
  %s2 = inlined_call_operand.vmem [shape: f32[8,1,256], index: 2, kind: input, shape index: {}]
  %s3 = inlined_call_operand.vmem [shape: bf16[8,256,128], index: 3, kind: input, shape index: {}]
  %s4 = inlined_call_operand.vmem [shape: f32[8,1,128], index: 4, kind: input, shape index: {}]
  %s5 = inlined_call_operand.vmem [shape: bf16[8,128,16], index: 5, kind: input, shape index: {}]
  %s6 = inlined_call_operand.vmem [shape: f32[8,1,16], index: 6, kind: input, shape index: {}]
  %s7 = inlined_call_operand.vmem [shape: f32[2,128], index: 7, kind: output, shape index: {}]
  %s8 = sld [smem:[#allocation0]]
  $region38: #{classification_head_forward.1} parent=0
    _
  %s10 = ssub.s32 1, %s8
  %s11 = scalar_select 0, %s10, %s8
  // Predicated region
  $region2: #{classification_head_forward.1} parent=0 // pred_check
    _
  $region3: #{classification_head_forward.1} parent=0 // pred_check_branch
    %13 = sbr.rel (0) target = $region5
  $region4: #{classification_head_forward.1} parent=0 // pred_region
    _
  $region5: #{classification_head_forward.1} parent=0 // pred_fallthru
    _
  // Predicated region
  $region6: #{classification_head_forward.1} parent=0 // pred_check
    _
  $region7: #{classification_head_forward.1} parent=0 // pred_check_branch
    %15 = sbr.rel (0) target = $region9
  $region8: #{classification_head_forward.1} parent=0 // pred_region
    _
  $region9: #{classification_head_forward.1} parent=0 // pred_fallthru
    _
  // Predicated region
  $region10: #{classification_head_forward.1} parent=0 // pred_check
    _
  $region11: #{classification_head_forward.1} parent=0 // pred_check_branch
    %17 = sbr.rel (0) target = $region13
  $region12: #{classification_head_forward.1} parent=0 // pred_region
    _
  $region13: #{classification_head_forward.1} parent=0 // pred_fallthru
    _
  // Predicated region
  $region14: #{classification_head_forward.1} parent=0 // pred_check
    _
  $region15: #{classification_head_forward.1} parent=0 // pred_check_branch
    %19 = sbr.rel (0) target = $region17
  $region16: #{classification_head_forward.1} parent=0 // pred_region
    _
  $region17: #{classification_head_forward.1} parent=0 // pred_fallthru
    _
  // Predicated region
  $region18: #{classification_head_forward.1} parent=0 // pred_check
    _
  $region19: #{classification_head_forward.1} parent=0 // pred_check_branch
    %21 = sbr.rel (0) target = $region21
  $region20: #{classification_head_forward.1} parent=0 // pred_region
    _
  $region21: #{classification_head_forward.1} parent=0 // pred_fallthru
    _
  // Predicated region
  $region22: #{classification_head_forward.1} parent=0 // pred_check
    _
  $region23: #{classification_head_forward.1} parent=0 // pred_check_branch
    %23 = sbr.rel (0) target = $region25
  $region24: #{classification_head_forward.1} parent=0 // pred_region
    _
  $region25: #{classification_head_forward.1} parent=0 // pred_fallthru
    _
  // Predicated region
  $region26: #{classification_head_forward.1} parent=0 // pred_check
    _
  $region27: #{classification_head_forward.1} parent=0 // pred_check_branch
    %25 = sbr.rel (0) target = $region29
  $region28: #{classification_head_forward.1} parent=0 // pred_region
    _
  $region29: #{classification_head_forward.1} parent=0 // pred_fallthru
    _
  %v27 = vld [vmem:[%s0] sm:$0x1]
  %v28 = vld [vmem:[%s1] sm:$0xff]
  %v29 = vld [vmem:[%s1 + $0x8] sm:$0xff]
  %v30 = vld [vmem:[%s1 + $0x10] sm:$0xff]
  %v31 = vld [vmem:[%s1 + $0x18] sm:$0xff]
  %v32 = vld [vmem:[%s1 + $0x20] sm:$0xff]
  %v33 = vld [vmem:[%s1 + $0x28] sm:$0xff]
  %v34 = vld [vmem:[%s1 + $0x30] sm:$0xff]
  %v35 = vld [vmem:[%s1 + $0x38] sm:$0xff]
  %v36 = vld [vmem:[%s2] sm:$0x3]
  %v38 = vperm.slane %v36, 0
  %v39 = vperm.slane %v36, 1
  %v50 = vunpack.c.l.b16 %v28
  %v51 = vunpack.c.h.b16 %v28
  %v52 = vunpack.c.l.b16 %v29
  %v53 = vunpack.c.h.b16 %v29
  %v54 = vunpack.c.l.b16 %v30
  %v55 = vunpack.c.h.b16 %v30
  %v56 = vunpack.c.l.b16 %v31
  %v57 = vunpack.c.h.b16 %v31
  %v58 = vunpack.c.l.b16 %v32
  %v59 = vunpack.c.h.b16 %v32
  %v60 = vunpack.c.l.b16 %v33
  %v61 = vunpack.c.h.b16 %v33
  %v62 = vunpack.c.l.b16 %v34
  %v63 = vunpack.c.h.b16 %v34
  %v64 = vunpack.c.l.b16 %v35
  %v65 = vunpack.c.h.b16 %v35
  %v66 = vpack.c.b16 %v52, %v50
  %v67 = vpack.c.b16 %v53, %v51
  %v68 = vpack.c.b16 %v56, %v54
  %v69 = vpack.c.b16 %v57, %v55
  %v70 = vpack.c.b16 %v60, %v58
  %v71 = vpack.c.b16 %v61, %v59
  %v72 = vpack.c.b16 %v64, %v62
  %v73 = vpack.c.b16 %v65, %v63
  %vm82 = vcmask 523264
  %v84 = vsel %vm82, %v27, 0
  %86 = vmatpush.bf16.msra.mxu0 0
  %87 = vmatpush.bf16.msra.mxu0 0
  %88 = vmatpush.bf16.msra.mxu0 0
  %89 = vmatpush.bf16.msra.mxu0 0
  %90 = vmatpush.bf16.msra.mxu0 %v72
  %91 = vmatpush.bf16.msra.mxu0 %v70
  %92 = vmatpush.bf16.msra.mxu0 %v68
  %93 = vmatpush.bf16.msra.mxu0 %v66
  %94 = vmatmul.bf16.gmra.mxu0 %v84
  %v95 = vpop.f32.mrf.mxu0
  %v96 = vadd.f32 %v38, %v95
  %v97 = vpop.f32.mrf.mxu0
  %98 = vdwg.mxu0
  %99 = vmatpush.bf16.msra.mxu0 0
  %100 = vmatpush.bf16.msra.mxu0 0
  %101 = vmatpush.bf16.msra.mxu0 0
  %102 = vmatpush.bf16.msra.mxu0 0
  %103 = vmatpush.bf16.msra.mxu0 %v73
  %104 = vmatpush.bf16.msra.mxu0 %v71
  %105 = vmatpush.bf16.msra.mxu0 %v69
  %106 = vmatpush.bf16.msra.mxu0 %v67
  %107 = vmatmul.bf16.gmra.mxu0 %v84
  %v108 = vpop.f32.mrf.mxu0
  %v109 = vadd.f32 %v39, %v108
  %v110 = vpop.f32.mrf.mxu0
  %111 = vdwg.mxu0
  %v112 = vmul.f32 %v96, 0.5
  %v113 = vmul.f32 %v109, 0.5
  %v114 = vmul.f32 %v96, 0.70710677
  %v115 = vmul.f32 %v109, 0.70710677
  %v116 = vmul.f32 %v114, %v114
  %v117 = vmin.f32 16.0, %v116
  %v118 = vmul.f32 %v117, 2.1237322e-06
  %v119 = vadd.f32 %v118, 0.00028619796
  %v120 = vmul.f32 %v117, %v119
  %v121 = vadd.f32 %v120, 0.0036580483
  %v122 = vmul.f32 %v117, %v121
  %v123 = vadd.f32 %v122, 0.05243302
  %v124 = vmul.f32 %v117, %v123
  %v125 = vadd.f32 %v124, 0.18741608
  %v126 = vmul.f32 %v117, %v125
  %v127 = vadd.f32 %v126, 1.1283791
  %v128 = vmul.f32 %v114, %v127
  %v129 = vmul.f32 %v117, 3.8918573e-05
  %v130 = vadd.f32 %v129, 0.001143296
  %v131 = vmul.f32 %v117, %v130
  %v132 = vadd.f32 %v131, 0.014752088
  %v133 = vmul.f32 %v117, %v132
  %v134 = vadd.f32 %v133, 0.112945676
  %v135 = vmul.f32 %v117, %v134
  %v136 = vadd.f32 %v135, 0.4994258
  %v137 = vmul.f32 %v117, %v136
  %v138 = vadd.f32 %v137, 1.0
  %v139 = vrcp.pop %v138
  %v140 = vmul.f32 %v138, %v139
  %v141 = vsub.f32 1.0, %v140
  %v142 = vmul.f32 %v139, %v141
  %v143 = vadd.f32 %v139, %v142
  %vm144 = vweird.f32 %v138
  %vm145 = vweird.f32 %v139
  %vm146 = vmor %vm144, %vm145
  %v147 = vsel %vm146, %v139, %v143
  %v148 = vand.u32 2147483647, %v138
  %vm149 = vcmp.eq.f32.partialorder %v148, 8.507059e+37
  %v150 = vand.u32 %v138, 2147483648
  %v151 = vor.u32 1.1754944e-38, %v150
  %v152 = vsel %vm149, %v151, %v147
  %v153 = vmul.f32 %v128, %v152
  %v154 = vmin.f32 %v153, 1.0
  %v155 = vmax.f32 %v154, -1.0
  %v156 = vmul.f32 %v115, %v115
  %v157 = vmin.f32 16.0, %v156
  %v158 = vmul.f32 %v157, 2.1237322e-06
  %v159 = vadd.f32 %v158, 0.00028619796
  %v160 = vmul.f32 %v157, %v159
  %v161 = vadd.f32 %v160, 0.0036580483
  %v162 = vmul.f32 %v157, %v161
  %v163 = vadd.f32 %v162, 0.05243302
  %v164 = vmul.f32 %v157, %v163
  %v165 = vadd.f32 %v164, 0.18741608
  %v166 = vmul.f32 %v157, %v165
  %v167 = vadd.f32 %v166, 1.1283791
  %v168 = vmul.f32 %v115, %v167
  %v169 = vmul.f32 %v157, 3.8918573e-05
  %v170 = vadd.f32 %v169, 0.001143296
  %v171 = vmul.f32 %v157, %v170
  %v172 = vadd.f32 %v171, 0.014752088
  %v173 = vmul.f32 %v157, %v172
  %v174 = vadd.f32 %v173, 0.112945676
  %v175 = vmul.f32 %v157, %v174
  %v176 = vadd.f32 %v175, 0.4994258
  %v177 = vmul.f32 %v157, %v176
  %v178 = vadd.f32 %v177, 1.0
  %v179 = vrcp.pop %v178
  %v180 = vmul.f32 %v178, %v179
  %v181 = vsub.f32 1.0, %v180
  %v182 = vmul.f32 %v179, %v181
  %v183 = vadd.f32 %v179, %v182
  %vm184 = vweird.f32 %v178
  %vm185 = vweird.f32 %v179
  %vm186 = vmor %vm184, %vm185
  %v187 = vsel %vm186, %v179, %v183
  %v188 = vand.u32 2147483647, %v178
  %vm189 = vcmp.eq.f32.partialorder %v188, 8.507059e+37
  %v190 = vand.u32 %v178, 2147483648
  %v191 = vor.u32 1.1754944e-38, %v190
  %v192 = vsel %vm189, %v191, %v187
  %v193 = vmul.f32 %v168, %v192
  %v194 = vmin.f32 %v193, 1.0
  %v195 = vmax.f32 %v194, -1.0
  %v196 = vadd.f32 %v155, 1.0
  %v197 = vadd.f32 %v195, 1.0
  %v198 = vmul.f32 %v112, %v196
  %v199 = vmul.f32 %v113, %v197
  %v200 = vpack.c.bf16 %v198, %v198
  %v201 = vpack.c.bf16 %v199, %v199
  %v202 = vld [vmem:[%s3] sm:$0xf]
  %v203 = vld [vmem:[%s3 + $0x4] sm:$0xf]
  %v204 = vld [vmem:[%s3 + $0x8] sm:$0xf]
  %v205 = vld [vmem:[%s3 + $0xc] sm:$0xf]
  %v206 = vld [vmem:[%s3 + $0x10] sm:$0xf]
  %v207 = vld [vmem:[%s3 + $0x14] sm:$0xf]
  %v208 = vld [vmem:[%s3 + $0x18] sm:$0xf]
  %v209 = vld [vmem:[%s3 + $0x1c] sm:$0xf]
  %v210 = vld [vmem:[%s3 + $0x20] sm:$0xf]
  %v211 = vld [vmem:[%s3 + $0x24] sm:$0xf]
  %v212 = vld [vmem:[%s3 + $0x28] sm:$0xf]
  %v213 = vld [vmem:[%s3 + $0x2c] sm:$0xf]
  %v214 = vld [vmem:[%s3 + $0x30] sm:$0xf]
  %v215 = vld [vmem:[%s3 + $0x34] sm:$0xf]
  %v216 = vld [vmem:[%s3 + $0x38] sm:$0xf]
  %v217 = vld [vmem:[%s3 + $0x3c] sm:$0xf]
  %v218 = vld [vmem:[%s3 + $0x40] sm:$0xf]
  %v219 = vld [vmem:[%s3 + $0x44] sm:$0xf]
  %v220 = vld [vmem:[%s3 + $0x48] sm:$0xf]
  %v221 = vld [vmem:[%s3 + $0x4c] sm:$0xf]
  %v222 = vld [vmem:[%s3 + $0x50] sm:$0xf]
  %v223 = vld [vmem:[%s3 + $0x54] sm:$0xf]
  %v224 = vld [vmem:[%s3 + $0x58] sm:$0xf]
  %v225 = vld [vmem:[%s3 + $0x5c] sm:$0xf]
  %v226 = vld [vmem:[%s3 + $0x60] sm:$0xf]
  %v227 = vld [vmem:[%s3 + $0x64] sm:$0xf]
  %v228 = vld [vmem:[%s3 + $0x68] sm:$0xf]
  %v229 = vld [vmem:[%s3 + $0x6c] sm:$0xf]
  %v230 = vld [vmem:[%s3 + $0x70] sm:$0xf]
  %v231 = vld [vmem:[%s3 + $0x74] sm:$0xf]
  %v232 = vld [vmem:[%s3 + $0x78] sm:$0xf]
  %v233 = vld [vmem:[%s3 + $0x7c] sm:$0xf]
  %v234 = vld [vmem:[%s4] sm:$0x1]
  %v236 = vperm.slane %v234, 0
  %v270 = vunpack.c.l.b16 %v202
  %v271 = vunpack.c.l.b16 %v203
  %v272 = vunpack.c.l.b16 %v204
  %v273 = vunpack.c.l.b16 %v205
  %v274 = vunpack.c.l.b16 %v206
  %v275 = vunpack.c.l.b16 %v207
  %v276 = vunpack.c.l.b16 %v208
  %v277 = vunpack.c.l.b16 %v209
  %v278 = vunpack.c.l.b16 %v210
  %v279 = vunpack.c.l.b16 %v211
  %v280 = vunpack.c.l.b16 %v212
  %v281 = vunpack.c.l.b16 %v213
  %v282 = vunpack.c.l.b16 %v214
  %v283 = vunpack.c.l.b16 %v215
  %v284 = vunpack.c.l.b16 %v216
  %v285 = vunpack.c.l.b16 %v217
  %v286 = vunpack.c.l.b16 %v218
  %v287 = vunpack.c.l.b16 %v219
  %v288 = vunpack.c.l.b16 %v220
  %v289 = vunpack.c.l.b16 %v221
  %v290 = vunpack.c.l.b16 %v222
  %v291 = vunpack.c.l.b16 %v223
  %v292 = vunpack.c.l.b16 %v224
  %v293 = vunpack.c.l.b16 %v225
  %v294 = vunpack.c.l.b16 %v226
  %v295 = vunpack.c.l.b16 %v227
  %v296 = vunpack.c.l.b16 %v228
  %v297 = vunpack.c.l.b16 %v229
  %v298 = vunpack.c.l.b16 %v230
  %v299 = vunpack.c.l.b16 %v231
  %v300 = vunpack.c.l.b16 %v232
  %v301 = vunpack.c.l.b16 %v233
  %v302 = vpack.c.b16 %v271, %v270
  %v303 = vpack.c.b16 %v273, %v272
  %v304 = vpack.c.b16 %v275, %v274
  %v305 = vpack.c.b16 %v277, %v276
  %v306 = vpack.c.b16 %v279, %v278
  %v307 = vpack.c.b16 %v281, %v280
  %v308 = vpack.c.b16 %v283, %v282
  %v309 = vpack.c.b16 %v285, %v284
  %v310 = vpack.c.b16 %v287, %v286
  %v311 = vpack.c.b16 %v289, %v288
  %v312 = vpack.c.b16 %v291, %v290
  %v313 = vpack.c.b16 %v293, %v292
  %v314 = vpack.c.b16 %v295, %v294
  %v315 = vpack.c.b16 %v297, %v296
  %v316 = vpack.c.b16 %v299, %v298
  %v317 = vpack.c.b16 %v301, %v300
  %334 = vmatpush.bf16.msra.mxu0 %v309
  %335 = vmatpush.bf16.msra.mxu0 %v308
  %336 = vmatpush.bf16.msra.mxu0 %v307
  %337 = vmatpush.bf16.msra.mxu0 %v306
  %338 = vmatpush.bf16.msra.mxu0 %v305
  %339 = vmatpush.bf16.msra.mxu0 %v304
  %340 = vmatpush.bf16.msra.mxu0 %v303
  %341 = vmatpush.bf16.msra.mxu0 %v302
  %342 = vmatmul.bf16.gmra.mxu0 %v200
  %v343 = vpop.f32.mrf.mxu0
  %v344 = vadd.f32 %v236, %v343
  %v345 = vpop.f32.mrf.mxu0
  %346 = vdwg.mxu0
  %347 = vmatpush.bf16.msra.mxu0 %v317
  %348 = vmatpush.bf16.msra.mxu0 %v316
  %349 = vmatpush.bf16.msra.mxu0 %v315
  %350 = vmatpush.bf16.msra.mxu0 %v314
  %351 = vmatpush.bf16.msra.mxu0 %v313
  %352 = vmatpush.bf16.msra.mxu0 %v312
  %353 = vmatpush.bf16.msra.mxu0 %v311
  %354 = vmatpush.bf16.msra.mxu0 %v310
  %355 = vmatmul.bf16.gmra.mxu0 %v201
  %v356 = vpop.f32.mrf.mxu0
  %v357 = vadd.f32 %v344, %v356
  %v358 = vpop.f32.mrf.mxu0
  %359 = vdwg.mxu0
  %v360 = vmul.f32 %v357, 0.5
  %v361 = vmul.f32 %v357, 0.70710677
  %v362 = vmul.f32 %v361, %v361
  %v363 = vmin.f32 16.0, %v362
  %v364 = vmul.f32 %v363, 2.1237322e-06
  %v365 = vadd.f32 %v364, 0.00028619796
  %v366 = vmul.f32 %v363, %v365
  %v367 = vadd.f32 %v366, 0.0036580483
  %v368 = vmul.f32 %v363, %v367
  %v369 = vadd.f32 %v368, 0.05243302
  %v370 = vmul.f32 %v363, %v369
  %v371 = vadd.f32 %v370, 0.18741608
  %v372 = vmul.f32 %v363, %v371
  %v373 = vadd.f32 %v372, 1.1283791
  %v374 = vmul.f32 %v361, %v373
  %v375 = vmul.f32 %v363, 3.8918573e-05
  %v376 = vadd.f32 %v375, 0.001143296
  %v377 = vmul.f32 %v363, %v376
  %v378 = vadd.f32 %v377, 0.014752088
  %v379 = vmul.f32 %v363, %v378
  %v380 = vadd.f32 %v379, 0.112945676
  %v381 = vmul.f32 %v363, %v380
  %v382 = vadd.f32 %v381, 0.4994258
  %v383 = vmul.f32 %v363, %v382
  %v384 = vadd.f32 %v383, 1.0
  %v385 = vrcp.pop %v384
  %v386 = vmul.f32 %v384, %v385
  %v387 = vsub.f32 1.0, %v386
  %v388 = vmul.f32 %v385, %v387
  %v389 = vadd.f32 %v385, %v388
  %vm390 = vweird.f32 %v384
  %vm391 = vweird.f32 %v385
  %vm392 = vmor %vm390, %vm391
  %v393 = vsel %vm392, %v385, %v389
  %v394 = vand.u32 2147483647, %v384
  %vm395 = vcmp.eq.f32.partialorder %v394, 8.507059e+37
  %v396 = vand.u32 %v384, 2147483648
  %v397 = vor.u32 1.1754944e-38, %v396
  %v398 = vsel %vm395, %v397, %v393
  %v399 = vmul.f32 %v374, %v398
  %v400 = vmin.f32 %v399, 1.0
  %v401 = vmax.f32 %v400, -1.0
  %v402 = vadd.f32 %v401, 1.0
  %v403 = vmul.f32 %v360, %v402
  %v404 = vpack.c.bf16 %v403, %v403
  %v405 = vld [vmem:[%s5] sm:$0xf]
  %v406 = vld [vmem:[%s5 + $0x4] sm:$0xf]
  %v407 = vld [vmem:[%s5 + $0x8] sm:$0xf]
  %v408 = vld [vmem:[%s5 + $0xc] sm:$0xf]
  %v409 = vld [vmem:[%s5 + $0x10] sm:$0xf]
  %v410 = vld [vmem:[%s5 + $0x14] sm:$0xf]
  %v411 = vld [vmem:[%s5 + $0x18] sm:$0xf]
  %v412 = vld [vmem:[%s5 + $0x1c] sm:$0xf]
  %v413 = vld [vmem:[%s5 + $0x20] sm:$0xf]
  %v414 = vld [vmem:[%s5 + $0x24] sm:$0xf]
  %v415 = vld [vmem:[%s5 + $0x28] sm:$0xf]
  %v416 = vld [vmem:[%s5 + $0x2c] sm:$0xf]
  %v417 = vld [vmem:[%s5 + $0x30] sm:$0xf]
  %v418 = vld [vmem:[%s5 + $0x34] sm:$0xf]
  %v419 = vld [vmem:[%s5 + $0x38] sm:$0xf]
  %v420 = vld [vmem:[%s5 + $0x3c] sm:$0xf]
  %v421 = vld [vmem:[%s6] sm:$0x1]
  %v423 = vperm.slane %v421, 0
  %v441 = vunpack.c.l.b16 %v405
  %v442 = vunpack.c.l.b16 %v406
  %v443 = vunpack.c.l.b16 %v407
  %v444 = vunpack.c.l.b16 %v408
  %v445 = vunpack.c.l.b16 %v409
  %v446 = vunpack.c.l.b16 %v410
  %v447 = vunpack.c.l.b16 %v411
  %v448 = vunpack.c.l.b16 %v412
  %v449 = vunpack.c.l.b16 %v413
  %v450 = vunpack.c.l.b16 %v414
  %v451 = vunpack.c.l.b16 %v415
  %v452 = vunpack.c.l.b16 %v416
  %v453 = vunpack.c.l.b16 %v417
  %v454 = vunpack.c.l.b16 %v418
  %v455 = vunpack.c.l.b16 %v419
  %v456 = vunpack.c.l.b16 %v420
  %v457 = vpack.c.b16 %v442, %v441
  %v458 = vpack.c.b16 %v444, %v443
  %v459 = vpack.c.b16 %v446, %v445
  %v460 = vpack.c.b16 %v448, %v447
  %v461 = vpack.c.b16 %v450, %v449
  %v462 = vpack.c.b16 %v452, %v451
  %v463 = vpack.c.b16 %v454, %v453
  %v464 = vpack.c.b16 %v456, %v455
  %473 = vmatpush.bf16.msra.mxu0 %v464
  %474 = vmatpush.bf16.msra.mxu0 %v463
  %475 = vmatpush.bf16.msra.mxu0 %v462
  %476 = vmatpush.bf16.msra.mxu0 %v461
  %477 = vmatpush.bf16.msra.mxu0 %v460
  %478 = vmatpush.bf16.msra.mxu0 %v459
  %479 = vmatpush.bf16.msra.mxu0 %v458
  %480 = vmatpush.bf16.msra.mxu0 %v457
  %481 = vmatmul.bf16.gmra.mxu0 %v404
  %v482 = vpop.f32.mrf.mxu0
  %v483 = vadd.f32 %v423, %v482
  %v484 = vpop.f32.mrf.mxu0
  %485 = vdwg.mxu0
  %s486 = scalar_lea.vmem %s0, 1
  %v487 = vld [vmem:[%s486] sm:$0x1]
  %s488 = scalar_lea.vmem %s1, 64
  %v489 = vld [vmem:[%s488] sm:$0xff]
  %v490 = vld [vmem:[%s488 + $0x8] sm:$0xff]
  %v491 = vld [vmem:[%s488 + $0x10] sm:$0xff]
  %v492 = vld [vmem:[%s488 + $0x18] sm:$0xff]
  %v493 = vld [vmem:[%s488 + $0x20] sm:$0xff]
  %v494 = vld [vmem:[%s488 + $0x28] sm:$0xff]
  %v495 = vld [vmem:[%s488 + $0x30] sm:$0xff]
  %v496 = vld [vmem:[%s488 + $0x38] sm:$0xff]
  %s497 = scalar_lea.vmem %s2, 2
  %v498 = vld [vmem:[%s497] sm:$0x3]
  %v500 = vperm.slane %v498, 0
  %v501 = vperm.slane %v498, 1
  %v512 = vunpack.c.l.b16 %v489
  %v513 = vunpack.c.h.b16 %v489
  %v514 = vunpack.c.l.b16 %v490
  %v515 = vunpack.c.h.b16 %v490
  %v516 = vunpack.c.l.b16 %v491
  %v517 = vunpack.c.h.b16 %v491
  %v518 = vunpack.c.l.b16 %v492
  %v519 = vunpack.c.h.b16 %v492
  %v520 = vunpack.c.l.b16 %v493
  %v521 = vunpack.c.h.b16 %v493
  %v522 = vunpack.c.l.b16 %v494
  %v523 = vunpack.c.h.b16 %v494
  %v524 = vunpack.c.l.b16 %v495
  %v525 = vunpack.c.h.b16 %v495
  %v526 = vunpack.c.l.b16 %v496
  %v527 = vunpack.c.h.b16 %v496
  %v528 = vpack.c.b16 %v514, %v512
  %v529 = vpack.c.b16 %v515, %v513
  %v530 = vpack.c.b16 %v518, %v516
  %v531 = vpack.c.b16 %v519, %v517
  %v532 = vpack.c.b16 %v522, %v520
  %v533 = vpack.c.b16 %v523, %v521
  %v534 = vpack.c.b16 %v526, %v524
  %v535 = vpack.c.b16 %v527, %v525
  %v545 = vsel %vm82, %v487, 0
  %547 = vmatpush.bf16.msra.mxu0 0
  %548 = vmatpush.bf16.msra.mxu0 0
  %549 = vmatpush.bf16.msra.mxu0 0
  %550 = vmatpush.bf16.msra.mxu0 0
  %551 = vmatpush.bf16.msra.mxu0 %v534
  %552 = vmatpush.bf16.msra.mxu0 %v532
  %553 = vmatpush.bf16.msra.mxu0 %v530
  %554 = vmatpush.bf16.msra.mxu0 %v528
  %555 = vmatmul.bf16.gmra.mxu0 %v545
  %v556 = vpop.f32.mrf.mxu0
  %v557 = vadd.f32 %v500, %v556
  %v558 = vpop.f32.mrf.mxu0
  %559 = vdwg.mxu0
  %560 = vmatpush.bf16.msra.mxu0 0
  %561 = vmatpush.bf16.msra.mxu0 0
  %562 = vmatpush.bf16.msra.mxu0 0
  %563 = vmatpush.bf16.msra.mxu0 0
  %564 = vmatpush.bf16.msra.mxu0 %v535
  %565 = vmatpush.bf16.msra.mxu0 %v533
  %566 = vmatpush.bf16.msra.mxu0 %v531
  %567 = vmatpush.bf16.msra.mxu0 %v529
  %568 = vmatmul.bf16.gmra.mxu0 %v545
  %v569 = vpop.f32.mrf.mxu0
  %v570 = vadd.f32 %v501, %v569
  %v571 = vpop.f32.mrf.mxu0
  %572 = vdwg.mxu0
  %v573 = vmul.f32 %v557, 0.5
  %v574 = vmul.f32 %v570, 0.5
  %v575 = vmul.f32 %v557, 0.70710677
  %v576 = vmul.f32 %v570, 0.70710677
  %v577 = vmul.f32 %v575, %v575
  %v578 = vmin.f32 16.0, %v577
  %v579 = vmul.f32 %v578, 2.1237322e-06
  %v580 = vadd.f32 %v579, 0.00028619796
  %v581 = vmul.f32 %v578, %v580
  %v582 = vadd.f32 %v581, 0.0036580483
  %v583 = vmul.f32 %v578, %v582
  %v584 = vadd.f32 %v583, 0.05243302
  %v585 = vmul.f32 %v578, %v584
  %v586 = vadd.f32 %v585, 0.18741608
  %v587 = vmul.f32 %v578, %v586
  %v588 = vadd.f32 %v587, 1.1283791
  %v589 = vmul.f32 %v575, %v588
  %v590 = vmul.f32 %v578, 3.8918573e-05
  %v591 = vadd.f32 %v590, 0.001143296
  %v592 = vmul.f32 %v578, %v591
  %v593 = vadd.f32 %v592, 0.014752088
  %v594 = vmul.f32 %v578, %v593
  %v595 = vadd.f32 %v594, 0.112945676
  %v596 = vmul.f32 %v578, %v595
  %v597 = vadd.f32 %v596, 0.4994258
  %v598 = vmul.f32 %v578, %v597
  %v599 = vadd.f32 %v598, 1.0
  %v600 = vrcp.pop %v599
  %v601 = vmul.f32 %v599, %v600
  %v602 = vsub.f32 1.0, %v601
  %v603 = vmul.f32 %v600, %v602
  %v604 = vadd.f32 %v600, %v603
  %vm605 = vweird.f32 %v599
  %vm606 = vweird.f32 %v600
  %vm607 = vmor %vm605, %vm606
  %v608 = vsel %vm607, %v600, %v604
  %v609 = vand.u32 2147483647, %v599
  %vm610 = vcmp.eq.f32.partialorder %v609, 8.507059e+37
  %v611 = vand.u32 %v599, 2147483648
  %v612 = vor.u32 1.1754944e-38, %v611
  %v613 = vsel %vm610, %v612, %v608
  %v614 = vmul.f32 %v589, %v613
  %v615 = vmin.f32 %v614, 1.0
  %v616 = vmax.f32 %v615, -1.0
  %v617 = vmul.f32 %v576, %v576
  %v618 = vmin.f32 16.0, %v617
  %v619 = vmul.f32 %v618, 2.1237322e-06
  %v620 = vadd.f32 %v619, 0.00028619796
  %v621 = vmul.f32 %v618, %v620
  %v622 = vadd.f32 %v621, 0.0036580483
  %v623 = vmul.f32 %v618, %v622
  %v624 = vadd.f32 %v623, 0.05243302
  %v625 = vmul.f32 %v618, %v624
  %v626 = vadd.f32 %v625, 0.18741608
  %v627 = vmul.f32 %v618, %v626
  %v628 = vadd.f32 %v627, 1.1283791
  %v629 = vmul.f32 %v576, %v628
  %v630 = vmul.f32 %v618, 3.8918573e-05
  %v631 = vadd.f32 %v630, 0.001143296
  %v632 = vmul.f32 %v618, %v631
  %v633 = vadd.f32 %v632, 0.014752088
  %v634 = vmul.f32 %v618, %v633
  %v635 = vadd.f32 %v634, 0.112945676
  %v636 = vmul.f32 %v618, %v635
  %v637 = vadd.f32 %v636, 0.4994258
  %v638 = vmul.f32 %v618, %v637
  %v639 = vadd.f32 %v638, 1.0
  %v640 = vrcp.pop %v639
  %v641 = vmul.f32 %v639, %v640
  %v642 = vsub.f32 1.0, %v641
  %v643 = vmul.f32 %v640, %v642
  %v644 = vadd.f32 %v640, %v643
  %vm645 = vweird.f32 %v639
  %vm646 = vweird.f32 %v640
  %vm647 = vmor %vm645, %vm646
  %v648 = vsel %vm647, %v640, %v644
  %v649 = vand.u32 2147483647, %v639
  %vm650 = vcmp.eq.f32.partialorder %v649, 8.507059e+37
  %v651 = vand.u32 %v639, 2147483648
  %v652 = vor.u32 1.1754944e-38, %v651
  %v653 = vsel %vm650, %v652, %v648
  %v654 = vmul.f32 %v629, %v653
  %v655 = vmin.f32 %v654, 1.0
  %v656 = vmax.f32 %v655, -1.0
  %v657 = vadd.f32 %v616, 1.0
  %v658 = vadd.f32 %v656, 1.0
  %v659 = vmul.f32 %v573, %v657
  %v660 = vmul.f32 %v574, %v658
  %v661 = vpack.c.bf16 %v659, %v659
  %v662 = vpack.c.bf16 %v660, %v660
  %s663 = scalar_lea.vmem %s3, 128
  %v664 = vld [vmem:[%s663] sm:$0xf]
  %v665 = vld [vmem:[%s663 + $0x4] sm:$0xf]
  %v666 = vld [vmem:[%s663 + $0x8] sm:$0xf]
  %v667 = vld [vmem:[%s663 + $0xc] sm:$0xf]
  %v668 = vld [vmem:[%s663 + $0x10] sm:$0xf]
  %v669 = vld [vmem:[%s663 + $0x14] sm:$0xf]
  %v670 = vld [vmem:[%s663 + $0x18] sm:$0xf]
  %v671 = vld [vmem:[%s663 + $0x1c] sm:$0xf]
  %v672 = vld [vmem:[%s663 + $0x20] sm:$0xf]
  %v673 = vld [vmem:[%s663 + $0x24] sm:$0xf]
  %v674 = vld [vmem:[%s663 + $0x28] sm:$0xf]
  %v675 = vld [vmem:[%s663 + $0x2c] sm:$0xf]
  %v676 = vld [vmem:[%s663 + $0x30] sm:$0xf]
  %v677 = vld [vmem:[%s663 + $0x34] sm:$0xf]
  %v678 = vld [vmem:[%s663 + $0x38] sm:$0xf]
  %v679 = vld [vmem:[%s663 + $0x3c] sm:$0xf]
  %v680 = vld [vmem:[%s663 + $0x40] sm:$0xf]
  %v681 = vld [vmem:[%s663 + $0x44] sm:$0xf]
  %v682 = vld [vmem:[%s663 + $0x48] sm:$0xf]
  %v683 = vld [vmem:[%s663 + $0x4c] sm:$0xf]
  %v684 = vld [vmem:[%s663 + $0x50] sm:$0xf]
  %v685 = vld [vmem:[%s663 + $0x54] sm:$0xf]
  %v686 = vld [vmem:[%s663 + $0x58] sm:$0xf]
  %v687 = vld [vmem:[%s663 + $0x5c] sm:$0xf]
  %v688 = vld [vmem:[%s663 + $0x60] sm:$0xf]
  %v689 = vld [vmem:[%s663 + $0x64] sm:$0xf]
  %v690 = vld [vmem:[%s663 + $0x68] sm:$0xf]
  %v691 = vld [vmem:[%s663 + $0x6c] sm:$0xf]
  %v692 = vld [vmem:[%s663 + $0x70] sm:$0xf]
  %v693 = vld [vmem:[%s663 + $0x74] sm:$0xf]
  %v694 = vld [vmem:[%s663 + $0x78] sm:$0xf]
  %v695 = vld [vmem:[%s663 + $0x7c] sm:$0xf]
  %s696 = scalar_lea.vmem %s4, 1
  %v697 = vld [vmem:[%s696] sm:$0x1]
  %v699 = vperm.slane %v697, 0
  %v733 = vunpack.c.l.b16 %v664
  %v734 = vunpack.c.l.b16 %v665
  %v735 = vunpack.c.l.b16 %v666
  %v736 = vunpack.c.l.b16 %v667
  %v737 = vunpack.c.l.b16 %v668
  %v738 = vunpack.c.l.b16 %v669
  %v739 = vunpack.c.l.b16 %v670
  %v740 = vunpack.c.l.b16 %v671
  %v741 = vunpack.c.l.b16 %v672
  %v742 = vunpack.c.l.b16 %v673
  %v743 = vunpack.c.l.b16 %v674
  %v744 = vunpack.c.l.b16 %v675
  %v745 = vunpack.c.l.b16 %v676
  %v746 = vunpack.c.l.b16 %v677
  %v747 = vunpack.c.l.b16 %v678
  %v748 = vunpack.c.l.b16 %v679
  %v749 = vunpack.c.l.b16 %v680
  %v750 = vunpack.c.l.b16 %v681
  %v751 = vunpack.c.l.b16 %v682
  %v752 = vunpack.c.l.b16 %v683
  %v753 = vunpack.c.l.b16 %v684
  %v754 = vunpack.c.l.b16 %v685
  %v755 = vunpack.c.l.b16 %v686
  %v756 = vunpack.c.l.b16 %v687
  %v757 = vunpack.c.l.b16 %v688
  %v758 = vunpack.c.l.b16 %v689
  %v759 = vunpack.c.l.b16 %v690
  %v760 = vunpack.c.l.b16 %v691
  %v761 = vunpack.c.l.b16 %v692
  %v762 = vunpack.c.l.b16 %v693
  %v763 = vunpack.c.l.b16 %v694
  %v764 = vunpack.c.l.b16 %v695
  %v765 = vpack.c.b16 %v734, %v733
  %v766 = vpack.c.b16 %v736, %v735
  %v767 = vpack.c.b16 %v738, %v737
  %v768 = vpack.c.b16 %v740, %v739
  %v769 = vpack.c.b16 %v742, %v741
  %v770 = vpack.c.b16 %v744, %v743
  %v771 = vpack.c.b16 %v746, %v745
  %v772 = vpack.c.b16 %v748, %v747
  %v773 = vpack.c.b16 %v750, %v749
  %v774 = vpack.c.b16 %v752, %v751
  %v775 = vpack.c.b16 %v754, %v753
  %v776 = vpack.c.b16 %v756, %v755
  %v777 = vpack.c.b16 %v758, %v757
  %v778 = vpack.c.b16 %v760, %v759
  %v779 = vpack.c.b16 %v762, %v761
  %v780 = vpack.c.b16 %v764, %v763
  %797 = vmatpush.bf16.msra.mxu0 %v772
  %798 = vmatpush.bf16.msra.mxu0 %v771
  %799 = vmatpush.bf16.msra.mxu0 %v770
  %800 = vmatpush.bf16.msra.mxu0 %v769
  %801 = vmatpush.bf16.msra.mxu0 %v768
  %802 = vmatpush.bf16.msra.mxu0 %v767
  %803 = vmatpush.bf16.msra.mxu0 %v766
  %804 = vmatpush.bf16.msra.mxu0 %v765
  %805 = vmatmul.bf16.gmra.mxu0 %v661
  %v806 = vpop.f32.mrf.mxu0
  %v807 = vadd.f32 %v699, %v806
  %v808 = vpop.f32.mrf.mxu0
  %809 = vdwg.mxu0
  %810 = vmatpush.bf16.msra.mxu0 %v780
  %811 = vmatpush.bf16.msra.mxu0 %v779
  %812 = vmatpush.bf16.msra.mxu0 %v778
  %813 = vmatpush.bf16.msra.mxu0 %v777
  %814 = vmatpush.bf16.msra.mxu0 %v776
  %815 = vmatpush.bf16.msra.mxu0 %v775
  %816 = vmatpush.bf16.msra.mxu0 %v774
  %817 = vmatpush.bf16.msra.mxu0 %v773
  %818 = vmatmul.bf16.gmra.mxu0 %v662
  %v819 = vpop.f32.mrf.mxu0
  %v820 = vadd.f32 %v807, %v819
  %v821 = vpop.f32.mrf.mxu0
  %822 = vdwg.mxu0
  %v823 = vmul.f32 %v820, 0.5
  %v824 = vmul.f32 %v820, 0.70710677
  %v825 = vmul.f32 %v824, %v824
  %v826 = vmin.f32 16.0, %v825
  %v827 = vmul.f32 %v826, 2.1237322e-06
  %v828 = vadd.f32 %v827, 0.00028619796
  %v829 = vmul.f32 %v826, %v828
  %v830 = vadd.f32 %v829, 0.0036580483
  %v831 = vmul.f32 %v826, %v830
  %v832 = vadd.f32 %v831, 0.05243302
  %v833 = vmul.f32 %v826, %v832
  %v834 = vadd.f32 %v833, 0.18741608
  %v835 = vmul.f32 %v826, %v834
  %v836 = vadd.f32 %v835, 1.1283791
  %v837 = vmul.f32 %v824, %v836
  %v838 = vmul.f32 %v826, 3.8918573e-05
  %v839 = vadd.f32 %v838, 0.001143296
  %v840 = vmul.f32 %v826, %v839
  %v841 = vadd.f32 %v840, 0.014752088
  %v842 = vmul.f32 %v826, %v841
  %v843 = vadd.f32 %v842, 0.112945676
  %v844 = vmul.f32 %v826, %v843
  %v845 = vadd.f32 %v844, 0.4994258
  %v846 = vmul.f32 %v826, %v845
  %v847 = vadd.f32 %v846, 1.0
  %v848 = vrcp.pop %v847
  %v849 = vmul.f32 %v847, %v848
  %v850 = vsub.f32 1.0, %v849
  %v851 = vmul.f32 %v848, %v850
  %v852 = vadd.f32 %v848, %v851
  %vm853 = vweird.f32 %v847
  %vm854 = vweird.f32 %v848
  %vm855 = vmor %vm853, %vm854
  %v856 = vsel %vm855, %v848, %v852
  %v857 = vand.u32 2147483647, %v847
  %vm858 = vcmp.eq.f32.partialorder %v857, 8.507059e+37
  %v859 = vand.u32 %v847, 2147483648
  %v860 = vor.u32 1.1754944e-38, %v859
  %v861 = vsel %vm858, %v860, %v856
  %v862 = vmul.f32 %v837, %v861
  %v863 = vmin.f32 %v862, 1.0
  %v864 = vmax.f32 %v863, -1.0
  %v865 = vadd.f32 %v864, 1.0
  %v866 = vmul.f32 %v823, %v865
  %v867 = vpack.c.bf16 %v866, %v866
  %s868 = scalar_lea.vmem %s5, 64
  %v869 = vld [vmem:[%s868] sm:$0xf]
  %v870 = vld [vmem:[%s868 + $0x4] sm:$0xf]
  %v871 = vld [vmem:[%s868 + $0x8] sm:$0xf]
  %v872 = vld [vmem:[%s868 + $0xc] sm:$0xf]
  %v873 = vld [vmem:[%s868 + $0x10] sm:$0xf]
  %v874 = vld [vmem:[%s868 + $0x14] sm:$0xf]
  %v875 = vld [vmem:[%s868 + $0x18] sm:$0xf]
  %v876 = vld [vmem:[%s868 + $0x1c] sm:$0xf]
  %v877 = vld [vmem:[%s868 + $0x20] sm:$0xf]
  %v878 = vld [vmem:[%s868 + $0x24] sm:$0xf]
  %v879 = vld [vmem:[%s868 + $0x28] sm:$0xf]
  %v880 = vld [vmem:[%s868 + $0x2c] sm:$0xf]
  %v881 = vld [vmem:[%s868 + $0x30] sm:$0xf]
  %v882 = vld [vmem:[%s868 + $0x34] sm:$0xf]
  %v883 = vld [vmem:[%s868 + $0x38] sm:$0xf]
  %v884 = vld [vmem:[%s868 + $0x3c] sm:$0xf]
  %s885 = scalar_lea.vmem %s6, 1
  %v886 = vld [vmem:[%s885] sm:$0x1]
  %v888 = vperm.slane %v886, 0
  %v906 = vunpack.c.l.b16 %v869
  %v907 = vunpack.c.l.b16 %v870
  %v908 = vunpack.c.l.b16 %v871
  %v909 = vunpack.c.l.b16 %v872
  %v910 = vunpack.c.l.b16 %v873
  %v911 = vunpack.c.l.b16 %v874
  %v912 = vunpack.c.l.b16 %v875
  %v913 = vunpack.c.l.b16 %v876
  %v914 = vunpack.c.l.b16 %v877
  %v915 = vunpack.c.l.b16 %v878
  %v916 = vunpack.c.l.b16 %v879
  %v917 = vunpack.c.l.b16 %v880
  %v918 = vunpack.c.l.b16 %v881
  %v919 = vunpack.c.l.b16 %v882
  %v920 = vunpack.c.l.b16 %v883
  %v921 = vunpack.c.l.b16 %v884
  %v922 = vpack.c.b16 %v907, %v906
  %v923 = vpack.c.b16 %v909, %v908
  %v924 = vpack.c.b16 %v911, %v910
  %v925 = vpack.c.b16 %v913, %v912
  %v926 = vpack.c.b16 %v915, %v914
  %v927 = vpack.c.b16 %v917, %v916
  %v928 = vpack.c.b16 %v919, %v918
  %v929 = vpack.c.b16 %v921, %v920
  %938 = vmatpush.bf16.msra.mxu0 %v929
  %939 = vmatpush.bf16.msra.mxu0 %v928
  %940 = vmatpush.bf16.msra.mxu0 %v927
  %941 = vmatpush.bf16.msra.mxu0 %v926
  %942 = vmatpush.bf16.msra.mxu0 %v925
  %943 = vmatpush.bf16.msra.mxu0 %v924
  %944 = vmatpush.bf16.msra.mxu0 %v923
  %945 = vmatpush.bf16.msra.mxu0 %v922
  %946 = vmatmul.bf16.gmra.mxu0 %v867
  %v947 = vpop.f32.mrf.mxu0
  %v948 = vadd.f32 %v888, %v947
  %v949 = vpop.f32.mrf.mxu0
  %950 = vdwg.mxu0
  %s951 = scalar_lea.vmem %s0, 2
  %v952 = vld [vmem:[%s951] sm:$0x1]
  %s953 = scalar_lea.vmem %s1, 128
  %v954 = vld [vmem:[%s953] sm:$0xff]
  %v955 = vld [vmem:[%s953 + $0x8] sm:$0xff]
  %v956 = vld [vmem:[%s953 + $0x10] sm:$0xff]
  %v957 = vld [vmem:[%s953 + $0x18] sm:$0xff]
  %v958 = vld [vmem:[%s953 + $0x20] sm:$0xff]
  %v959 = vld [vmem:[%s953 + $0x28] sm:$0xff]
  %v960 = vld [vmem:[%s953 + $0x30] sm:$0xff]
  %v961 = vld [vmem:[%s953 + $0x38] sm:$0xff]
  %s962 = scalar_lea.vmem %s2, 4
  %v963 = vld [vmem:[%s962] sm:$0x3]
  %v965 = vperm.slane %v963, 0
  %v966 = vperm.slane %v963, 1
  %v977 = vunpack.c.l.b16 %v954
  %v978 = vunpack.c.h.b16 %v954
  %v979 = vunpack.c.l.b16 %v955
  %v980 = vunpack.c.h.b16 %v955
  %v981 = vunpack.c.l.b16 %v956
  %v982 = vunpack.c.h.b16 %v956
  %v983 = vunpack.c.l.b16 %v957
  %v984 = vunpack.c.h.b16 %v957
  %v985 = vunpack.c.l.b16 %v958
  %v986 = vunpack.c.h.b16 %v958
  %v987 = vunpack.c.l.b16 %v959
  %v988 = vunpack.c.h.b16 %v959
  %v989 = vunpack.c.l.b16 %v960
  %v990 = vunpack.c.h.b16 %v960
  %v991 = vunpack.c.l.b16 %v961
  %v992 = vunpack.c.h.b16 %v961
  %v993 = vpack.c.b16 %v979, %v977
  %v994 = vpack.c.b16 %v980, %v978
  %v995 = vpack.c.b16 %v983, %v981
  %v996 = vpack.c.b16 %v984, %v982
  %v997 = vpack.c.b16 %v987, %v985
  %v998 = vpack.c.b16 %v988, %v986
  %v999 = vpack.c.b16 %v991, %v989
  %v1000 = vpack.c.b16 %v992, %v990
  %v1010 = vsel %vm82, %v952, 0
  %1012 = vmatpush.bf16.msra.mxu0 0
  %1013 = vmatpush.bf16.msra.mxu0 0
  %1014 = vmatpush.bf16.msra.mxu0 0
  %1015 = vmatpush.bf16.msra.mxu0 0
  %1016 = vmatpush.bf16.msra.mxu0 %v999
  %1017 = vmatpush.bf16.msra.mxu0 %v997
  %1018 = vmatpush.bf16.msra.mxu0 %v995
  %1019 = vmatpush.bf16.msra.mxu0 %v993
  %1020 = vmatmul.bf16.gmra.mxu0 %v1010
  %v1021 = vpop.f32.mrf.mxu0
  %v1022 = vadd.f32 %v965, %v1021
  %v1023 = vpop.f32.mrf.mxu0
  %1024 = vdwg.mxu0
  %1025 = vmatpush.bf16.msra.mxu0 0
  %1026 = vmatpush.bf16.msra.mxu0 0
  %1027 = vmatpush.bf16.msra.mxu0 0
  %1028 = vmatpush.bf16.msra.mxu0 0
  %1029 = vmatpush.bf16.msra.mxu0 %v1000
  %1030 = vmatpush.bf16.msra.mxu0 %v998
  %1031 = vmatpush.bf16.msra.mxu0 %v996
  %1032 = vmatpush.bf16.msra.mxu0 %v994
  %1033 = vmatmul.bf16.gmra.mxu0 %v1010
  %v1034 = vpop.f32.mrf.mxu0
  %v1035 = vadd.f32 %v966, %v1034
  %v1036 = vpop.f32.mrf.mxu0
  %1037 = vdwg.mxu0
  %v1038 = vmul.f32 %v1022, 0.5
  %v1039 = vmul.f32 %v1035, 0.5
  %v1040 = vmul.f32 %v1022, 0.70710677
  %v1041 = vmul.f32 %v1035, 0.70710677
  %v1042 = vmul.f32 %v1040, %v1040
  %v1043 = vmin.f32 16.0, %v1042
  %v1044 = vmul.f32 %v1043, 2.1237322e-06
  %v1045 = vadd.f32 %v1044, 0.00028619796
  %v1046 = vmul.f32 %v1043, %v1045
  %v1047 = vadd.f32 %v1046, 0.0036580483
  %v1048 = vmul.f32 %v1043, %v1047
  %v1049 = vadd.f32 %v1048, 0.05243302
  %v1050 = vmul.f32 %v1043, %v1049
  %v1051 = vadd.f32 %v1050, 0.18741608
  %v1052 = vmul.f32 %v1043, %v1051
  %v1053 = vadd.f32 %v1052, 1.1283791
  %v1054 = vmul.f32 %v1040, %v1053
  %v1055 = vmul.f32 %v1043, 3.8918573e-05
  %v1056 = vadd.f32 %v1055, 0.001143296
  %v1057 = vmul.f32 %v1043, %v1056
  %v1058 = vadd.f32 %v1057, 0.014752088
  %v1059 = vmul.f32 %v1043, %v1058
  %v1060 = vadd.f32 %v1059, 0.112945676
  %v1061 = vmul.f32 %v1043, %v1060
  %v1062 = vadd.f32 %v1061, 0.4994258
  %v1063 = vmul.f32 %v1043, %v1062
  %v1064 = vadd.f32 %v1063, 1.0
  %v1065 = vrcp.pop %v1064
  %v1066 = vmul.f32 %v1064, %v1065
  %v1067 = vsub.f32 1.0, %v1066
  %v1068 = vmul.f32 %v1065, %v1067
  %v1069 = vadd.f32 %v1065, %v1068
  %vm1070 = vweird.f32 %v1064
  %vm1071 = vweird.f32 %v1065
  %vm1072 = vmor %vm1070, %vm1071
  %v1073 = vsel %vm1072, %v1065, %v1069
  %v1074 = vand.u32 2147483647, %v1064
  %vm1075 = vcmp.eq.f32.partialorder %v1074, 8.507059e+37
  %v1076 = vand.u32 %v1064, 2147483648
  %v1077 = vor.u32 1.1754944e-38, %v1076
  %v1078 = vsel %vm1075, %v1077, %v1073
  %v1079 = vmul.f32 %v1054, %v1078
  %v1080 = vmin.f32 %v1079, 1.0
  %v1081 = vmax.f32 %v1080, -1.0
  %v1082 = vmul.f32 %v1041, %v1041
  %v1083 = vmin.f32 16.0, %v1082
  %v1084 = vmul.f32 %v1083, 2.1237322e-06
  %v1085 = vadd.f32 %v1084, 0.00028619796
  %v1086 = vmul.f32 %v1083, %v1085
  %v1087 = vadd.f32 %v1086, 0.0036580483
  %v1088 = vmul.f32 %v1083, %v1087
  %v1089 = vadd.f32 %v1088, 0.05243302
  %v1090 = vmul.f32 %v1083, %v1089
  %v1091 = vadd.f32 %v1090, 0.18741608
  %v1092 = vmul.f32 %v1083, %v1091
  %v1093 = vadd.f32 %v1092, 1.1283791
  %v1094 = vmul.f32 %v1041, %v1093
  %v1095 = vmul.f32 %v1083, 3.8918573e-05
  %v1096 = vadd.f32 %v1095, 0.001143296
  %v1097 = vmul.f32 %v1083, %v1096
  %v1098 = vadd.f32 %v1097, 0.014752088
  %v1099 = vmul.f32 %v1083, %v1098
  %v1100 = vadd.f32 %v1099, 0.112945676
  %v1101 = vmul.f32 %v1083, %v1100
  %v1102 = vadd.f32 %v1101, 0.4994258
  %v1103 = vmul.f32 %v1083, %v1102
  %v1104 = vadd.f32 %v1103, 1.0
  %v1105 = vrcp.pop %v1104
  %v1106 = vmul.f32 %v1104, %v1105
  %v1107 = vsub.f32 1.0, %v1106
  %v1108 = vmul.f32 %v1105, %v1107
  %v1109 = vadd.f32 %v1105, %v1108
  %vm1110 = vweird.f32 %v1104
  %vm1111 = vweird.f32 %v1105
  %vm1112 = vmor %vm1110, %vm1111
  %v1113 = vsel %vm1112, %v1105, %v1109
  %v1114 = vand.u32 2147483647, %v1104
  %vm1115 = vcmp.eq.f32.partialorder %v1114, 8.507059e+37
  %v1116 = vand.u32 %v1104, 2147483648
  %v1117 = vor.u32 1.1754944e-38, %v1116
  %v1118 = vsel %vm1115, %v1117, %v1113
  %v1119 = vmul.f32 %v1094, %v1118
  %v1120 = vmin.f32 %v1119, 1.0
  %v1121 = vmax.f32 %v1120, -1.0
  %v1122 = vadd.f32 %v1081, 1.0
  %v1123 = vadd.f32 %v1121, 1.0
  %v1124 = vmul.f32 %v1038, %v1122
  %v1125 = vmul.f32 %v1039, %v1123
  %v1126 = vpack.c.bf16 %v1124, %v1124
  %v1127 = vpack.c.bf16 %v1125, %v1125
  %s1128 = scalar_lea.vmem %s3, 256
  %v1129 = vld [vmem:[%s1128] sm:$0xf]
  %v1130 = vld [vmem:[%s1128 + $0x4] sm:$0xf]
  %v1131 = vld [vmem:[%s1128 + $0x8] sm:$0xf]
  %v1132 = vld [vmem:[%s1128 + $0xc] sm:$0xf]
  %v1133 = vld [vmem:[%s1128 + $0x10] sm:$0xf]
  %v1134 = vld [vmem:[%s1128 + $0x14] sm:$0xf]
  %v1135 = vld [vmem:[%s1128 + $0x18] sm:$0xf]
  %v1136 = vld [vmem:[%s1128 + $0x1c] sm:$0xf]
  %v1137 = vld [vmem:[%s1128 + $0x20] sm:$0xf]
  %v1138 = vld [vmem:[%s1128 + $0x24] sm:$0xf]
  %v1139 = vld [vmem:[%s1128 + $0x28] sm:$0xf]
  %v1140 = vld [vmem:[%s1128 + $0x2c] sm:$0xf]
  %v1141 = vld [vmem:[%s1128 + $0x30] sm:$0xf]
  %v1142 = vld [vmem:[%s1128 + $0x34] sm:$0xf]
  %v1143 = vld [vmem:[%s1128 + $0x38] sm:$0xf]
  %v1144 = vld [vmem:[%s1128 + $0x3c] sm:$0xf]
  %v1145 = vld [vmem:[%s1128 + $0x40] sm:$0xf]
  %v1146 = vld [vmem:[%s1128 + $0x44] sm:$0xf]
  %v1147 = vld [vmem:[%s1128 + $0x48] sm:$0xf]
  %v1148 = vld [vmem:[%s1128 + $0x4c] sm:$0xf]
  %v1149 = vld [vmem:[%s1128 + $0x50] sm:$0xf]
  %v1150 = vld [vmem:[%s1128 + $0x54] sm:$0xf]
  %v1151 = vld [vmem:[%s1128 + $0x58] sm:$0xf]
  %v1152 = vld [vmem:[%s1128 + $0x5c] sm:$0xf]
  %v1153 = vld [vmem:[%s1128 + $0x60] sm:$0xf]
  %v1154 = vld [vmem:[%s1128 + $0x64] sm:$0xf]
  %v1155 = vld [vmem:[%s1128 + $0x68] sm:$0xf]
  %v1156 = vld [vmem:[%s1128 + $0x6c] sm:$0xf]
  %v1157 = vld [vmem:[%s1128 + $0x70] sm:$0xf]
  %v1158 = vld [vmem:[%s1128 + $0x74] sm:$0xf]
  %v1159 = vld [vmem:[%s1128 + $0x78] sm:$0xf]
  %v1160 = vld [vmem:[%s1128 + $0x7c] sm:$0xf]
  %s1161 = scalar_lea.vmem %s4, 2
  %v1162 = vld [vmem:[%s1161] sm:$0x1]
  %v1164 = vperm.slane %v1162, 0
  %v1198 = vunpack.c.l.b16 %v1129
  %v1199 = vunpack.c.l.b16 %v1130
  %v1200 = vunpack.c.l.b16 %v1131
  %v1201 = vunpack.c.l.b16 %v1132
  %v1202 = vunpack.c.l.b16 %v1133
  %v1203 = vunpack.c.l.b16 %v1134
  %v1204 = vunpack.c.l.b16 %v1135
  %v1205 = vunpack.c.l.b16 %v1136
  %v1206 = vunpack.c.l.b16 %v1137
  %v1207 = vunpack.c.l.b16 %v1138
  %v1208 = vunpack.c.l.b16 %v1139
  %v1209 = vunpack.c.l.b16 %v1140
  %v1210 = vunpack.c.l.b16 %v1141
  %v1211 = vunpack.c.l.b16 %v1142
  %v1212 = vunpack.c.l.b16 %v1143
  %v1213 = vunpack.c.l.b16 %v1144
  %v1214 = vunpack.c.l.b16 %v1145
  %v1215 = vunpack.c.l.b16 %v1146
  %v1216 = vunpack.c.l.b16 %v1147
  %v1217 = vunpack.c.l.b16 %v1148
  %v1218 = vunpack.c.l.b16 %v1149
  %v1219 = vunpack.c.l.b16 %v1150
  %v1220 = vunpack.c.l.b16 %v1151
  %v1221 = vunpack.c.l.b16 %v1152
  %v1222 = vunpack.c.l.b16 %v1153
  %v1223 = vunpack.c.l.b16 %v1154
  %v1224 = vunpack.c.l.b16 %v1155
  %v1225 = vunpack.c.l.b16 %v1156
  %v1226 = vunpack.c.l.b16 %v1157
  %v1227 = vunpack.c.l.b16 %v1158
  %v1228 = vunpack.c.l.b16 %v1159
  %v1229 = vunpack.c.l.b16 %v1160
  %v1230 = vpack.c.b16 %v1199, %v1198
  %v1231 = vpack.c.b16 %v1201, %v1200
  %v1232 = vpack.c.b16 %v1203, %v1202
  %v1233 = vpack.c.b16 %v1205, %v1204
  %v1234 = vpack.c.b16 %v1207, %v1206
  %v1235 = vpack.c.b16 %v1209, %v1208
  %v1236 = vpack.c.b16 %v1211, %v1210
  %v1237 = vpack.c.b16 %v1213, %v1212
  %v1238 = vpack.c.b16 %v1215, %v1214
  %v1239 = vpack.c.b16 %v1217, %v1216
  %v1240 = vpack.c.b16 %v1219, %v1218
  %v1241 = vpack.c.b16 %v1221, %v1220
  %v1242 = vpack.c.b16 %v1223, %v1222
  %v1243 = vpack.c.b16 %v1225, %v1224
  %v1244 = vpack.c.b16 %v1227, %v1226
  %v1245 = vpack.c.b16 %v1229, %v1228
  %1262 = vmatpush.bf16.msra.mxu0 %v1237
  %1263 = vmatpush.bf16.msra.mxu0 %v1236
  %1264 = vmatpush.bf16.msra.mxu0 %v1235
  %1265 = vmatpush.bf16.msra.mxu0 %v1234
  %1266 = vmatpush.bf16.msra.mxu0 %v1233
  %1267 = vmatpush.bf16.msra.mxu0 %v1232
  %1268 = vmatpush.bf16.msra.mxu0 %v1231
  %1269 = vmatpush.bf16.msra.mxu0 %v1230
  %1270 = vmatmul.bf16.gmra.mxu0 %v1126
  %v1271 = vpop.f32.mrf.mxu0
  %v1272 = vadd.f32 %v1164, %v1271
  %v1273 = vpop.f32.mrf.mxu0
  %1274 = vdwg.mxu0
  %1275 = vmatpush.bf16.msra.mxu0 %v1245
  %1276 = vmatpush.bf16.msra.mxu0 %v1244
  %1277 = vmatpush.bf16.msra.mxu0 %v1243
  %1278 = vmatpush.bf16.msra.mxu0 %v1242
  %1279 = vmatpush.bf16.msra.mxu0 %v1241
  %1280 = vmatpush.bf16.msra.mxu0 %v1240
  %1281 = vmatpush.bf16.msra.mxu0 %v1239
  %1282 = vmatpush.bf16.msra.mxu0 %v1238
  %1283 = vmatmul.bf16.gmra.mxu0 %v1127
  %v1284 = vpop.f32.mrf.mxu0
  %v1285 = vadd.f32 %v1272, %v1284
  %v1286 = vpop.f32.mrf.mxu0
  %1287 = vdwg.mxu0
  %v1288 = vmul.f32 %v1285, 0.5
  %v1289 = vmul.f32 %v1285, 0.70710677
  %v1290 = vmul.f32 %v1289, %v1289
  %v1291 = vmin.f32 16.0, %v1290
  %v1292 = vmul.f32 %v1291, 2.1237322e-06
  %v1293 = vadd.f32 %v1292, 0.00028619796
  %v1294 = vmul.f32 %v1291, %v1293
  %v1295 = vadd.f32 %v1294, 0.0036580483
  %v1296 = vmul.f32 %v1291, %v1295
  %v1297 = vadd.f32 %v1296, 0.05243302
  %v1298 = vmul.f32 %v1291, %v1297
  %v1299 = vadd.f32 %v1298, 0.18741608
  %v1300 = vmul.f32 %v1291, %v1299
  %v1301 = vadd.f32 %v1300, 1.1283791
  %v1302 = vmul.f32 %v1289, %v1301
  %v1303 = vmul.f32 %v1291, 3.8918573e-05
  %v1304 = vadd.f32 %v1303, 0.001143296
  %v1305 = vmul.f32 %v1291, %v1304
  %v1306 = vadd.f32 %v1305, 0.014752088
  %v1307 = vmul.f32 %v1291, %v1306
  %v1308 = vadd.f32 %v1307, 0.112945676
  %v1309 = vmul.f32 %v1291, %v1308
  %v1310 = vadd.f32 %v1309, 0.4994258
  %v1311 = vmul.f32 %v1291, %v1310
  %v1312 = vadd.f32 %v1311, 1.0
  %v1313 = vrcp.pop %v1312
  %v1314 = vmul.f32 %v1312, %v1313
  %v1315 = vsub.f32 1.0, %v1314
  %v1316 = vmul.f32 %v1313, %v1315
  %v1317 = vadd.f32 %v1313, %v1316
  %vm1318 = vweird.f32 %v1312
  %vm1319 = vweird.f32 %v1313
  %vm1320 = vmor %vm1318, %vm1319
  %v1321 = vsel %vm1320, %v1313, %v1317
  %v1322 = vand.u32 2147483647, %v1312
  %vm1323 = vcmp.eq.f32.partialorder %v1322, 8.507059e+37
  %v1324 = vand.u32 %v1312, 2147483648
  %v1325 = vor.u32 1.1754944e-38, %v1324
  %v1326 = vsel %vm1323, %v1325, %v1321
  %v1327 = vmul.f32 %v1302, %v1326
  %v1328 = vmin.f32 %v1327, 1.0
  %v1329 = vmax.f32 %v1328, -1.0
  %v1330 = vadd.f32 %v1329, 1.0
  %v1331 = vmul.f32 %v1288, %v1330
  %v1332 = vpack.c.bf16 %v1331, %v1331
  %s1333 = scalar_lea.vmem %s5, 128
  %v1334 = vld [vmem:[%s1333] sm:$0xf]
  %v1335 = vld [vmem:[%s1333 + $0x4] sm:$0xf]
  %v1336 = vld [vmem:[%s1333 + $0x8] sm:$0xf]
  %v1337 = vld [vmem:[%s1333 + $0xc] sm:$0xf]
  %v1338 = vld [vmem:[%s1333 + $0x10] sm:$0xf]
  %v1339 = vld [vmem:[%s1333 + $0x14] sm:$0xf]
  %v1340 = vld [vmem:[%s1333 + $0x18] sm:$0xf]
  %v1341 = vld [vmem:[%s1333 + $0x1c] sm:$0xf]
  %v1342 = vld [vmem:[%s1333 + $0x20] sm:$0xf]
  %v1343 = vld [vmem:[%s1333 + $0x24] sm:$0xf]
  %v1344 = vld [vmem:[%s1333 + $0x28] sm:$0xf]
  %v1345 = vld [vmem:[%s1333 + $0x2c] sm:$0xf]
  %v1346 = vld [vmem:[%s1333 + $0x30] sm:$0xf]
  %v1347 = vld [vmem:[%s1333 + $0x34] sm:$0xf]
  %v1348 = vld [vmem:[%s1333 + $0x38] sm:$0xf]
  %v1349 = vld [vmem:[%s1333 + $0x3c] sm:$0xf]
  %s1350 = scalar_lea.vmem %s6, 2
  %v1351 = vld [vmem:[%s1350] sm:$0x1]
  %v1353 = vperm.slane %v1351, 0
  %v1371 = vunpack.c.l.b16 %v1334
  %v1372 = vunpack.c.l.b16 %v1335
  %v1373 = vunpack.c.l.b16 %v1336
  %v1374 = vunpack.c.l.b16 %v1337
  %v1375 = vunpack.c.l.b16 %v1338
  %v1376 = vunpack.c.l.b16 %v1339
  %v1377 = vunpack.c.l.b16 %v1340
  %v1378 = vunpack.c.l.b16 %v1341
  %v1379 = vunpack.c.l.b16 %v1342
  %v1380 = vunpack.c.l.b16 %v1343
  %v1381 = vunpack.c.l.b16 %v1344
  %v1382 = vunpack.c.l.b16 %v1345
  %v1383 = vunpack.c.l.b16 %v1346
  %v1384 = vunpack.c.l.b16 %v1347
  %v1385 = vunpack.c.l.b16 %v1348
  %v1386 = vunpack.c.l.b16 %v1349
  %v1387 = vpack.c.b16 %v1372, %v1371
  %v1388 = vpack.c.b16 %v1374, %v1373
  %v1389 = vpack.c.b16 %v1376, %v1375
  %v1390 = vpack.c.b16 %v1378, %v1377
  %v1391 = vpack.c.b16 %v1380, %v1379
  %v1392 = vpack.c.b16 %v1382, %v1381
  %v1393 = vpack.c.b16 %v1384, %v1383
  %v1394 = vpack.c.b16 %v1386, %v1385
  %1403 = vmatpush.bf16.msra.mxu0 %v1394
  %1404 = vmatpush.bf16.msra.mxu0 %v1393
  %1405 = vmatpush.bf16.msra.mxu0 %v1392
  %1406 = vmatpush.bf16.msra.mxu0 %v1391
  %1407 = vmatpush.bf16.msra.mxu0 %v1390
  %1408 = vmatpush.bf16.msra.mxu0 %v1389
  %1409 = vmatpush.bf16.msra.mxu0 %v1388
  %1410 = vmatpush.bf16.msra.mxu0 %v1387
  %1411 = vmatmul.bf16.gmra.mxu0 %v1332
  %v1412 = vpop.f32.mrf.mxu0
  %v1413 = vadd.f32 %v1353, %v1412
  %v1414 = vpop.f32.mrf.mxu0
  %1415 = vdwg.mxu0
  %s1416 = scalar_lea.vmem %s0, 3
  %v1417 = vld [vmem:[%s1416] sm:$0x1]
  %s1418 = scalar_lea.vmem %s1, 192
  %v1419 = vld [vmem:[%s1418] sm:$0xff]
  %v1420 = vld [vmem:[%s1418 + $0x8] sm:$0xff]
  %v1421 = vld [vmem:[%s1418 + $0x10] sm:$0xff]
  %v1422 = vld [vmem:[%s1418 + $0x18] sm:$0xff]
  %v1423 = vld [vmem:[%s1418 + $0x20] sm:$0xff]
  %v1424 = vld [vmem:[%s1418 + $0x28] sm:$0xff]
  %v1425 = vld [vmem:[%s1418 + $0x30] sm:$0xff]
  %v1426 = vld [vmem:[%s1418 + $0x38] sm:$0xff]
  %s1427 = scalar_lea.vmem %s2, 6
  %v1428 = vld [vmem:[%s1427] sm:$0x3]
  %v1430 = vperm.slane %v1428, 0
  %v1431 = vperm.slane %v1428, 1
  %v1442 = vunpack.c.l.b16 %v1419
  %v1443 = vunpack.c.h.b16 %v1419
  %v1444 = vunpack.c.l.b16 %v1420
  %v1445 = vunpack.c.h.b16 %v1420
  %v1446 = vunpack.c.l.b16 %v1421
  %v1447 = vunpack.c.h.b16 %v1421
  %v1448 = vunpack.c.l.b16 %v1422
  %v1449 = vunpack.c.h.b16 %v1422
  %v1450 = vunpack.c.l.b16 %v1423
  %v1451 = vunpack.c.h.b16 %v1423
  %v1452 = vunpack.c.l.b16 %v1424
  %v1453 = vunpack.c.h.b16 %v1424
  %v1454 = vunpack.c.l.b16 %v1425
  %v1455 = vunpack.c.h.b16 %v1425
  %v1456 = vunpack.c.l.b16 %v1426
  %v1457 = vunpack.c.h.b16 %v1426
  %v1458 = vpack.c.b16 %v1444, %v1442
  %v1459 = vpack.c.b16 %v1445, %v1443
  %v1460 = vpack.c.b16 %v1448, %v1446
  %v1461 = vpack.c.b16 %v1449, %v1447
  %v1462 = vpack.c.b16 %v1452, %v1450
  %v1463 = vpack.c.b16 %v1453, %v1451
  %v1464 = vpack.c.b16 %v1456, %v1454
  %v1465 = vpack.c.b16 %v1457, %v1455
  %v1475 = vsel %vm82, %v1417, 0
  %1477 = vmatpush.bf16.msra.mxu0 0
  %1478 = vmatpush.bf16.msra.mxu0 0
  %1479 = vmatpush.bf16.msra.mxu0 0
  %1480 = vmatpush.bf16.msra.mxu0 0
  %1481 = vmatpush.bf16.msra.mxu0 %v1464
  %1482 = vmatpush.bf16.msra.mxu0 %v1462
  %1483 = vmatpush.bf16.msra.mxu0 %v1460
  %1484 = vmatpush.bf16.msra.mxu0 %v1458
  %1485 = vmatmul.bf16.gmra.mxu0 %v1475
  %v1486 = vpop.f32.mrf.mxu0
  %v1487 = vadd.f32 %v1430, %v1486
  %v1488 = vpop.f32.mrf.mxu0
  %1489 = vdwg.mxu0
  %1490 = vmatpush.bf16.msra.mxu0 0
  %1491 = vmatpush.bf16.msra.mxu0 0
  %1492 = vmatpush.bf16.msra.mxu0 0
  %1493 = vmatpush.bf16.msra.mxu0 0
  %1494 = vmatpush.bf16.msra.mxu0 %v1465
  %1495 = vmatpush.bf16.msra.mxu0 %v1463
  %1496 = vmatpush.bf16.msra.mxu0 %v1461
  %1497 = vmatpush.bf16.msra.mxu0 %v1459
  %1498 = vmatmul.bf16.gmra.mxu0 %v1475
  %v1499 = vpop.f32.mrf.mxu0
  %v1500 = vadd.f32 %v1431, %v1499
  %v1501 = vpop.f32.mrf.mxu0
  %1502 = vdwg.mxu0
  %v1503 = vmul.f32 %v1487, 0.5
  %v1504 = vmul.f32 %v1500, 0.5
  %v1505 = vmul.f32 %v1487, 0.70710677
  %v1506 = vmul.f32 %v1500, 0.70710677
  %v1507 = vmul.f32 %v1505, %v1505
  %v1508 = vmin.f32 16.0, %v1507
  %v1509 = vmul.f32 %v1508, 2.1237322e-06
  %v1510 = vadd.f32 %v1509, 0.00028619796
  %v1511 = vmul.f32 %v1508, %v1510
  %v1512 = vadd.f32 %v1511, 0.0036580483
  %v1513 = vmul.f32 %v1508, %v1512
  %v1514 = vadd.f32 %v1513, 0.05243302
  %v1515 = vmul.f32 %v1508, %v1514
  %v1516 = vadd.f32 %v1515, 0.18741608
  %v1517 = vmul.f32 %v1508, %v1516
  %v1518 = vadd.f32 %v1517, 1.1283791
  %v1519 = vmul.f32 %v1505, %v1518
  %v1520 = vmul.f32 %v1508, 3.8918573e-05
  %v1521 = vadd.f32 %v1520, 0.001143296
  %v1522 = vmul.f32 %v1508, %v1521
  %v1523 = vadd.f32 %v1522, 0.014752088
  %v1524 = vmul.f32 %v1508, %v1523
  %v1525 = vadd.f32 %v1524, 0.112945676
  %v1526 = vmul.f32 %v1508, %v1525
  %v1527 = vadd.f32 %v1526, 0.4994258
  %v1528 = vmul.f32 %v1508, %v1527
  %v1529 = vadd.f32 %v1528, 1.0
  %v1530 = vrcp.pop %v1529
  %v1531 = vmul.f32 %v1529, %v1530
  %v1532 = vsub.f32 1.0, %v1531
  %v1533 = vmul.f32 %v1530, %v1532
  %v1534 = vadd.f32 %v1530, %v1533
  %vm1535 = vweird.f32 %v1529
  %vm1536 = vweird.f32 %v1530
  %vm1537 = vmor %vm1535, %vm1536
  %v1538 = vsel %vm1537, %v1530, %v1534
  %v1539 = vand.u32 2147483647, %v1529
  %vm1540 = vcmp.eq.f32.partialorder %v1539, 8.507059e+37
  %v1541 = vand.u32 %v1529, 2147483648
  %v1542 = vor.u32 1.1754944e-38, %v1541
  %v1543 = vsel %vm1540, %v1542, %v1538
  %v1544 = vmul.f32 %v1519, %v1543
  %v1545 = vmin.f32 %v1544, 1.0
  %v1546 = vmax.f32 %v1545, -1.0
  %v1547 = vmul.f32 %v1506, %v1506
  %v1548 = vmin.f32 16.0, %v1547
  %v1549 = vmul.f32 %v1548, 2.1237322e-06
  %v1550 = vadd.f32 %v1549, 0.00028619796
  %v1551 = vmul.f32 %v1548, %v1550
  %v1552 = vadd.f32 %v1551, 0.0036580483
  %v1553 = vmul.f32 %v1548, %v1552
  %v1554 = vadd.f32 %v1553, 0.05243302
  %v1555 = vmul.f32 %v1548, %v1554
  %v1556 = vadd.f32 %v1555, 0.18741608
  %v1557 = vmul.f32 %v1548, %v1556
  %v1558 = vadd.f32 %v1557, 1.1283791
  %v1559 = vmul.f32 %v1506, %v1558
  %v1560 = vmul.f32 %v1548, 3.8918573e-05
  %v1561 = vadd.f32 %v1560, 0.001143296
  %v1562 = vmul.f32 %v1548, %v1561
  %v1563 = vadd.f32 %v1562, 0.014752088
  %v1564 = vmul.f32 %v1548, %v1563
  %v1565 = vadd.f32 %v1564, 0.112945676
  %v1566 = vmul.f32 %v1548, %v1565
  %v1567 = vadd.f32 %v1566, 0.4994258
  %v1568 = vmul.f32 %v1548, %v1567
  %v1569 = vadd.f32 %v1568, 1.0
  %v1570 = vrcp.pop %v1569
  %v1571 = vmul.f32 %v1569, %v1570
  %v1572 = vsub.f32 1.0, %v1571
  %v1573 = vmul.f32 %v1570, %v1572
  %v1574 = vadd.f32 %v1570, %v1573
  %vm1575 = vweird.f32 %v1569
  %vm1576 = vweird.f32 %v1570
  %vm1577 = vmor %vm1575, %vm1576
  %v1578 = vsel %vm1577, %v1570, %v1574
  %v1579 = vand.u32 2147483647, %v1569
  %vm1580 = vcmp.eq.f32.partialorder %v1579, 8.507059e+37
  %v1581 = vand.u32 %v1569, 2147483648
  %v1582 = vor.u32 1.1754944e-38, %v1581
  %v1583 = vsel %vm1580, %v1582, %v1578
  %v1584 = vmul.f32 %v1559, %v1583
  %v1585 = vmin.f32 %v1584, 1.0
  %v1586 = vmax.f32 %v1585, -1.0
  %v1587 = vadd.f32 %v1546, 1.0
  %v1588 = vadd.f32 %v1586, 1.0
  %v1589 = vmul.f32 %v1503, %v1587
  %v1590 = vmul.f32 %v1504, %v1588
  %v1591 = vpack.c.bf16 %v1589, %v1589
  %v1592 = vpack.c.bf16 %v1590, %v1590
  %s1593 = scalar_lea.vmem %s3, 384
  %v1594 = vld [vmem:[%s1593] sm:$0xf]
  %v1595 = vld [vmem:[%s1593 + $0x4] sm:$0xf]
  %v1596 = vld [vmem:[%s1593 + $0x8] sm:$0xf]
  %v1597 = vld [vmem:[%s1593 + $0xc] sm:$0xf]
  %v1598 = vld [vmem:[%s1593 + $0x10] sm:$0xf]
  %v1599 = vld [vmem:[%s1593 + $0x14] sm:$0xf]
  %v1600 = vld [vmem:[%s1593 + $0x18] sm:$0xf]
  %v1601 = vld [vmem:[%s1593 + $0x1c] sm:$0xf]
  %v1602 = vld [vmem:[%s1593 + $0x20] sm:$0xf]
  %v1603 = vld [vmem:[%s1593 + $0x24] sm:$0xf]
  %v1604 = vld [vmem:[%s1593 + $0x28] sm:$0xf]
  %v1605 = vld [vmem:[%s1593 + $0x2c] sm:$0xf]
  %v1606 = vld [vmem:[%s1593 + $0x30] sm:$0xf]
  %v1607 = vld [vmem:[%s1593 + $0x34] sm:$0xf]
  %v1608 = vld [vmem:[%s1593 + $0x38] sm:$0xf]
  %v1609 = vld [vmem:[%s1593 + $0x3c] sm:$0xf]
  %v1610 = vld [vmem:[%s1593 + $0x40] sm:$0xf]
  %v1611 = vld [vmem:[%s1593 + $0x44] sm:$0xf]
  %v1612 = vld [vmem:[%s1593 + $0x48] sm:$0xf]
  %v1613 = vld [vmem:[%s1593 + $0x4c] sm:$0xf]
  %v1614 = vld [vmem:[%s1593 + $0x50] sm:$0xf]
  %v1615 = vld [vmem:[%s1593 + $0x54] sm:$0xf]
  %v1616 = vld [vmem:[%s1593 + $0x58] sm:$0xf]
  %v1617 = vld [vmem:[%s1593 + $0x5c] sm:$0xf]
  %v1618 = vld [vmem:[%s1593 + $0x60] sm:$0xf]
  %v1619 = vld [vmem:[%s1593 + $0x64] sm:$0xf]
  %v1620 = vld [vmem:[%s1593 + $0x68] sm:$0xf]
  %v1621 = vld [vmem:[%s1593 + $0x6c] sm:$0xf]
  %v1622 = vld [vmem:[%s1593 + $0x70] sm:$0xf]
  %v1623 = vld [vmem:[%s1593 + $0x74] sm:$0xf]
  %v1624 = vld [vmem:[%s1593 + $0x78] sm:$0xf]
  %v1625 = vld [vmem:[%s1593 + $0x7c] sm:$0xf]
  %s1626 = scalar_lea.vmem %s4, 3
  %v1627 = vld [vmem:[%s1626] sm:$0x1]
  %v1629 = vperm.slane %v1627, 0
  %v1663 = vunpack.c.l.b16 %v1594
  %v1664 = vunpack.c.l.b16 %v1595
  %v1665 = vunpack.c.l.b16 %v1596
  %v1666 = vunpack.c.l.b16 %v1597
  %v1667 = vunpack.c.l.b16 %v1598
  %v1668 = vunpack.c.l.b16 %v1599
  %v1669 = vunpack.c.l.b16 %v1600
  %v1670 = vunpack.c.l.b16 %v1601
  %v1671 = vunpack.c.l.b16 %v1602
  %v1672 = vunpack.c.l.b16 %v1603
  %v1673 = vunpack.c.l.b16 %v1604
  %v1674 = vunpack.c.l.b16 %v1605
  %v1675 = vunpack.c.l.b16 %v1606
  %v1676 = vunpack.c.l.b16 %v1607
  %v1677 = vunpack.c.l.b16 %v1608
  %v1678 = vunpack.c.l.b16 %v1609
  %v1679 = vunpack.c.l.b16 %v1610
  %v1680 = vunpack.c.l.b16 %v1611
  %v1681 = vunpack.c.l.b16 %v1612
  %v1682 = vunpack.c.l.b16 %v1613
  %v1683 = vunpack.c.l.b16 %v1614
  %v1684 = vunpack.c.l.b16 %v1615
  %v1685 = vunpack.c.l.b16 %v1616
  %v1686 = vunpack.c.l.b16 %v1617
  %v1687 = vunpack.c.l.b16 %v1618
  %v1688 = vunpack.c.l.b16 %v1619
  %v1689 = vunpack.c.l.b16 %v1620
  %v1690 = vunpack.c.l.b16 %v1621
  %v1691 = vunpack.c.l.b16 %v1622
  %v1692 = vunpack.c.l.b16 %v1623
  %v1693 = vunpack.c.l.b16 %v1624
  %v1694 = vunpack.c.l.b16 %v1625
  %v1695 = vpack.c.b16 %v1664, %v1663
  %v1696 = vpack.c.b16 %v1666, %v1665
  %v1697 = vpack.c.b16 %v1668, %v1667
  %v1698 = vpack.c.b16 %v1670, %v1669
  %v1699 = vpack.c.b16 %v1672, %v1671
  %v1700 = vpack.c.b16 %v1674, %v1673
  %v1701 = vpack.c.b16 %v1676, %v1675
  %v1702 = vpack.c.b16 %v1678, %v1677
  %v1703 = vpack.c.b16 %v1680, %v1679
  %v1704 = vpack.c.b16 %v1682, %v1681
  %v1705 = vpack.c.b16 %v1684, %v1683
  %v1706 = vpack.c.b16 %v1686, %v1685
  %v1707 = vpack.c.b16 %v1688, %v1687
  %v1708 = vpack.c.b16 %v1690, %v1689
  %v1709 = vpack.c.b16 %v1692, %v1691
  %v1710 = vpack.c.b16 %v1694, %v1693
  %1727 = vmatpush.bf16.msra.mxu0 %v1702
  %1728 = vmatpush.bf16.msra.mxu0 %v1701
  %1729 = vmatpush.bf16.msra.mxu0 %v1700
  %1730 = vmatpush.bf16.msra.mxu0 %v1699
  %1731 = vmatpush.bf16.msra.mxu0 %v1698
  %1732 = vmatpush.bf16.msra.mxu0 %v1697
  %1733 = vmatpush.bf16.msra.mxu0 %v1696
  %1734 = vmatpush.bf16.msra.mxu0 %v1695
  %1735 = vmatmul.bf16.gmra.mxu0 %v1591
  %v1736 = vpop.f32.mrf.mxu0
  %v1737 = vadd.f32 %v1629, %v1736
  %v1738 = vpop.f32.mrf.mxu0
  %1739 = vdwg.mxu0
  %1740 = vmatpush.bf16.msra.mxu0 %v1710
  %1741 = vmatpush.bf16.msra.mxu0 %v1709
  %1742 = vmatpush.bf16.msra.mxu0 %v1708
  %1743 = vmatpush.bf16.msra.mxu0 %v1707
  %1744 = vmatpush.bf16.msra.mxu0 %v1706
  %1745 = vmatpush.bf16.msra.mxu0 %v1705
  %1746 = vmatpush.bf16.msra.mxu0 %v1704
  %1747 = vmatpush.bf16.msra.mxu0 %v1703
  %1748 = vmatmul.bf16.gmra.mxu0 %v1592
  %v1749 = vpop.f32.mrf.mxu0
  %v1750 = vadd.f32 %v1737, %v1749
  %v1751 = vpop.f32.mrf.mxu0
  %1752 = vdwg.mxu0
  %v1753 = vmul.f32 %v1750, 0.5
  %v1754 = vmul.f32 %v1750, 0.70710677
  %v1755 = vmul.f32 %v1754, %v1754
  %v1756 = vmin.f32 16.0, %v1755
  %v1757 = vmul.f32 %v1756, 2.1237322e-06
  %v1758 = vadd.f32 %v1757, 0.00028619796
  %v1759 = vmul.f32 %v1756, %v1758
  %v1760 = vadd.f32 %v1759, 0.0036580483
  %v1761 = vmul.f32 %v1756, %v1760
  %v1762 = vadd.f32 %v1761, 0.05243302
  %v1763 = vmul.f32 %v1756, %v1762
  %v1764 = vadd.f32 %v1763, 0.18741608
  %v1765 = vmul.f32 %v1756, %v1764
  %v1766 = vadd.f32 %v1765, 1.1283791
  %v1767 = vmul.f32 %v1754, %v1766
  %v1768 = vmul.f32 %v1756, 3.8918573e-05
  %v1769 = vadd.f32 %v1768, 0.001143296
  %v1770 = vmul.f32 %v1756, %v1769
  %v1771 = vadd.f32 %v1770, 0.014752088
  %v1772 = vmul.f32 %v1756, %v1771
  %v1773 = vadd.f32 %v1772, 0.112945676
  %v1774 = vmul.f32 %v1756, %v1773
  %v1775 = vadd.f32 %v1774, 0.4994258
  %v1776 = vmul.f32 %v1756, %v1775
  %v1777 = vadd.f32 %v1776, 1.0
  %v1778 = vrcp.pop %v1777
  %v1779 = vmul.f32 %v1777, %v1778
  %v1780 = vsub.f32 1.0, %v1779
  %v1781 = vmul.f32 %v1778, %v1780
  %v1782 = vadd.f32 %v1778, %v1781
  %vm1783 = vweird.f32 %v1777
  %vm1784 = vweird.f32 %v1778
  %vm1785 = vmor %vm1783, %vm1784
  %v1786 = vsel %vm1785, %v1778, %v1782
  %v1787 = vand.u32 2147483647, %v1777
  %vm1788 = vcmp.eq.f32.partialorder %v1787, 8.507059e+37
  %v1789 = vand.u32 %v1777, 2147483648
  %v1790 = vor.u32 1.1754944e-38, %v1789
  %v1791 = vsel %vm1788, %v1790, %v1786
  %v1792 = vmul.f32 %v1767, %v1791
  %v1793 = vmin.f32 %v1792, 1.0
  %v1794 = vmax.f32 %v1793, -1.0
  %v1795 = vadd.f32 %v1794, 1.0
  %v1796 = vmul.f32 %v1753, %v1795
  %v1797 = vpack.c.bf16 %v1796, %v1796
  %s1798 = scalar_lea.vmem %s5, 192
  %v1799 = vld [vmem:[%s1798] sm:$0xf]
  %v1800 = vld [vmem:[%s1798 + $0x4] sm:$0xf]
  %v1801 = vld [vmem:[%s1798 + $0x8] sm:$0xf]
  %v1802 = vld [vmem:[%s1798 + $0xc] sm:$0xf]
  %v1803 = vld [vmem:[%s1798 + $0x10] sm:$0xf]
  %v1804 = vld [vmem:[%s1798 + $0x14] sm:$0xf]
  %v1805 = vld [vmem:[%s1798 + $0x18] sm:$0xf]
  %v1806 = vld [vmem:[%s1798 + $0x1c] sm:$0xf]
  %v1807 = vld [vmem:[%s1798 + $0x20] sm:$0xf]
  %v1808 = vld [vmem:[%s1798 + $0x24] sm:$0xf]
  %v1809 = vld [vmem:[%s1798 + $0x28] sm:$0xf]
  %v1810 = vld [vmem:[%s1798 + $0x2c] sm:$0xf]
  %v1811 = vld [vmem:[%s1798 + $0x30] sm:$0xf]
  %v1812 = vld [vmem:[%s1798 + $0x34] sm:$0xf]
  %v1813 = vld [vmem:[%s1798 + $0x38] sm:$0xf]
  %v1814 = vld [vmem:[%s1798 + $0x3c] sm:$0xf]
  %s1815 = scalar_lea.vmem %s6, 3
  %v1816 = vld [vmem:[%s1815] sm:$0x1]
  %v1818 = vperm.slane %v1816, 0
  %v1836 = vunpack.c.l.b16 %v1799
  %v1837 = vunpack.c.l.b16 %v1800
  %v1838 = vunpack.c.l.b16 %v1801
  %v1839 = vunpack.c.l.b16 %v1802
  %v1840 = vunpack.c.l.b16 %v1803
  %v1841 = vunpack.c.l.b16 %v1804
  %v1842 = vunpack.c.l.b16 %v1805
  %v1843 = vunpack.c.l.b16 %v1806
  %v1844 = vunpack.c.l.b16 %v1807
  %v1845 = vunpack.c.l.b16 %v1808
  %v1846 = vunpack.c.l.b16 %v1809
  %v1847 = vunpack.c.l.b16 %v1810
  %v1848 = vunpack.c.l.b16 %v1811
  %v1849 = vunpack.c.l.b16 %v1812
  %v1850 = vunpack.c.l.b16 %v1813
  %v1851 = vunpack.c.l.b16 %v1814
  %v1852 = vpack.c.b16 %v1837, %v1836
  %v1853 = vpack.c.b16 %v1839, %v1838
  %v1854 = vpack.c.b16 %v1841, %v1840
  %v1855 = vpack.c.b16 %v1843, %v1842
  %v1856 = vpack.c.b16 %v1845, %v1844
  %v1857 = vpack.c.b16 %v1847, %v1846
  %v1858 = vpack.c.b16 %v1849, %v1848
  %v1859 = vpack.c.b16 %v1851, %v1850
  %1868 = vmatpush.bf16.msra.mxu0 %v1859
  %1869 = vmatpush.bf16.msra.mxu0 %v1858
  %1870 = vmatpush.bf16.msra.mxu0 %v1857
  %1871 = vmatpush.bf16.msra.mxu0 %v1856
  %1872 = vmatpush.bf16.msra.mxu0 %v1855
  %1873 = vmatpush.bf16.msra.mxu0 %v1854
  %1874 = vmatpush.bf16.msra.mxu0 %v1853
  %1875 = vmatpush.bf16.msra.mxu0 %v1852
  %1876 = vmatmul.bf16.gmra.mxu0 %v1797
  %v1877 = vpop.f32.mrf.mxu0
  %v1878 = vadd.f32 %v1818, %v1877
  %v1879 = vpop.f32.mrf.mxu0
  %1880 = vdwg.mxu0
  %s1881 = scalar_lea.vmem %s0, 4
  %v1882 = vld [vmem:[%s1881] sm:$0x1]
  %s1883 = scalar_lea.vmem %s1, 256
  %v1884 = vld [vmem:[%s1883] sm:$0xff]
  %v1885 = vld [vmem:[%s1883 + $0x8] sm:$0xff]
  %v1886 = vld [vmem:[%s1883 + $0x10] sm:$0xff]
  %v1887 = vld [vmem:[%s1883 + $0x18] sm:$0xff]
  %v1888 = vld [vmem:[%s1883 + $0x20] sm:$0xff]
  %v1889 = vld [vmem:[%s1883 + $0x28] sm:$0xff]
  %v1890 = vld [vmem:[%s1883 + $0x30] sm:$0xff]
  %v1891 = vld [vmem:[%s1883 + $0x38] sm:$0xff]
  %s1892 = scalar_lea.vmem %s2, 8
  %v1893 = vld [vmem:[%s1892] sm:$0x3]
  %v1895 = vperm.slane %v1893, 0
  %v1896 = vperm.slane %v1893, 1
  %v1907 = vunpack.c.l.b16 %v1884
  %v1908 = vunpack.c.h.b16 %v1884
  %v1909 = vunpack.c.l.b16 %v1885
  %v1910 = vunpack.c.h.b16 %v1885
  %v1911 = vunpack.c.l.b16 %v1886
  %v1912 = vunpack.c.h.b16 %v1886
  %v1913 = vunpack.c.l.b16 %v1887
  %v1914 = vunpack.c.h.b16 %v1887
  %v1915 = vunpack.c.l.b16 %v1888
  %v1916 = vunpack.c.h.b16 %v1888
  %v1917 = vunpack.c.l.b16 %v1889
  %v1918 = vunpack.c.h.b16 %v1889
  %v1919 = vunpack.c.l.b16 %v1890
  %v1920 = vunpack.c.h.b16 %v1890
  %v1921 = vunpack.c.l.b16 %v1891
  %v1922 = vunpack.c.h.b16 %v1891
  %v1923 = vpack.c.b16 %v1909, %v1907
  %v1924 = vpack.c.b16 %v1910, %v1908
  %v1925 = vpack.c.b16 %v1913, %v1911
  %v1926 = vpack.c.b16 %v1914, %v1912
  %v1927 = vpack.c.b16 %v1917, %v1915
  %v1928 = vpack.c.b16 %v1918, %v1916
  %v1929 = vpack.c.b16 %v1921, %v1919
  %v1930 = vpack.c.b16 %v1922, %v1920
  %v1940 = vsel %vm82, %v1882, 0
  %1942 = vmatpush.bf16.msra.mxu0 0
  %1943 = vmatpush.bf16.msra.mxu0 0
  %1944 = vmatpush.bf16.msra.mxu0 0
  %1945 = vmatpush.bf16.msra.mxu0 0
  %1946 = vmatpush.bf16.msra.mxu0 %v1929
  %1947 = vmatpush.bf16.msra.mxu0 %v1927
  %1948 = vmatpush.bf16.msra.mxu0 %v1925
  %1949 = vmatpush.bf16.msra.mxu0 %v1923
  %1950 = vmatmul.bf16.gmra.mxu0 %v1940
  %v1951 = vpop.f32.mrf.mxu0
  %v1952 = vadd.f32 %v1895, %v1951
  %v1953 = vpop.f32.mrf.mxu0
  %1954 = vdwg.mxu0
  %1955 = vmatpush.bf16.msra.mxu0 0
  %1956 = vmatpush.bf16.msra.mxu0 0
  %1957 = vmatpush.bf16.msra.mxu0 0
  %1958 = vmatpush.bf16.msra.mxu0 0
  %1959 = vmatpush.bf16.msra.mxu0 %v1930
  %1960 = vmatpush.bf16.msra.mxu0 %v1928
  %1961 = vmatpush.bf16.msra.mxu0 %v1926
  %1962 = vmatpush.bf16.msra.mxu0 %v1924
  %1963 = vmatmul.bf16.gmra.mxu0 %v1940
  %v1964 = vpop.f32.mrf.mxu0
  %v1965 = vadd.f32 %v1896, %v1964
  %v1966 = vpop.f32.mrf.mxu0
  %1967 = vdwg.mxu0
  %v1968 = vmul.f32 %v1952, 0.5
  %v1969 = vmul.f32 %v1965, 0.5
  %v1970 = vmul.f32 %v1952, 0.70710677
  %v1971 = vmul.f32 %v1965, 0.70710677
  %v1972 = vmul.f32 %v1970, %v1970
  %v1973 = vmin.f32 16.0, %v1972
  %v1974 = vmul.f32 %v1973, 2.1237322e-06
  %v1975 = vadd.f32 %v1974, 0.00028619796
  %v1976 = vmul.f32 %v1973, %v1975
  %v1977 = vadd.f32 %v1976, 0.0036580483
  %v1978 = vmul.f32 %v1973, %v1977
  %v1979 = vadd.f32 %v1978, 0.05243302
  %v1980 = vmul.f32 %v1973, %v1979
  %v1981 = vadd.f32 %v1980, 0.18741608
  %v1982 = vmul.f32 %v1973, %v1981
  %v1983 = vadd.f32 %v1982, 1.1283791
  %v1984 = vmul.f32 %v1970, %v1983
  %v1985 = vmul.f32 %v1973, 3.8918573e-05
  %v1986 = vadd.f32 %v1985, 0.001143296
  %v1987 = vmul.f32 %v1973, %v1986
  %v1988 = vadd.f32 %v1987, 0.014752088
  %v1989 = vmul.f32 %v1973, %v1988
  %v1990 = vadd.f32 %v1989, 0.112945676
  %v1991 = vmul.f32 %v1973, %v1990
  %v1992 = vadd.f32 %v1991, 0.4994258
  %v1993 = vmul.f32 %v1973, %v1992
  %v1994 = vadd.f32 %v1993, 1.0
  %v1995 = vrcp.pop %v1994
  %v1996 = vmul.f32 %v1994, %v1995
  %v1997 = vsub.f32 1.0, %v1996
  %v1998 = vmul.f32 %v1995, %v1997
  %v1999 = vadd.f32 %v1995, %v1998
  %vm2000 = vweird.f32 %v1994
  %vm2001 = vweird.f32 %v1995
  %vm2002 = vmor %vm2000, %vm2001
  %v2003 = vsel %vm2002, %v1995, %v1999
  %v2004 = vand.u32 2147483647, %v1994
  %vm2005 = vcmp.eq.f32.partialorder %v2004, 8.507059e+37
  %v2006 = vand.u32 %v1994, 2147483648
  %v2007 = vor.u32 1.1754944e-38, %v2006
  %v2008 = vsel %vm2005, %v2007, %v2003
  %v2009 = vmul.f32 %v1984, %v2008
  %v2010 = vmin.f32 %v2009, 1.0
  %v2011 = vmax.f32 %v2010, -1.0
  %v2012 = vmul.f32 %v1971, %v1971
  %v2013 = vmin.f32 16.0, %v2012
  %v2014 = vmul.f32 %v2013, 2.1237322e-06
  %v2015 = vadd.f32 %v2014, 0.00028619796
  %v2016 = vmul.f32 %v2013, %v2015
  %v2017 = vadd.f32 %v2016, 0.0036580483
  %v2018 = vmul.f32 %v2013, %v2017
  %v2019 = vadd.f32 %v2018, 0.05243302
  %v2020 = vmul.f32 %v2013, %v2019
  %v2021 = vadd.f32 %v2020, 0.18741608
  %v2022 = vmul.f32 %v2013, %v2021
  %v2023 = vadd.f32 %v2022, 1.1283791
  %v2024 = vmul.f32 %v1971, %v2023
  %v2025 = vmul.f32 %v2013, 3.8918573e-05
  %v2026 = vadd.f32 %v2025, 0.001143296
  %v2027 = vmul.f32 %v2013, %v2026
  %v2028 = vadd.f32 %v2027, 0.014752088
  %v2029 = vmul.f32 %v2013, %v2028
  %v2030 = vadd.f32 %v2029, 0.112945676
  %v2031 = vmul.f32 %v2013, %v2030
  %v2032 = vadd.f32 %v2031, 0.4994258
  %v2033 = vmul.f32 %v2013, %v2032
  %v2034 = vadd.f32 %v2033, 1.0
  %v2035 = vrcp.pop %v2034
  %v2036 = vmul.f32 %v2034, %v2035
  %v2037 = vsub.f32 1.0, %v2036
  %v2038 = vmul.f32 %v2035, %v2037
  %v2039 = vadd.f32 %v2035, %v2038
  %vm2040 = vweird.f32 %v2034
  %vm2041 = vweird.f32 %v2035
  %vm2042 = vmor %vm2040, %vm2041
  %v2043 = vsel %vm2042, %v2035, %v2039
  %v2044 = vand.u32 2147483647, %v2034
  %vm2045 = vcmp.eq.f32.partialorder %v2044, 8.507059e+37
  %v2046 = vand.u32 %v2034, 2147483648
  %v2047 = vor.u32 1.1754944e-38, %v2046
  %v2048 = vsel %vm2045, %v2047, %v2043
  %v2049 = vmul.f32 %v2024, %v2048
  %v2050 = vmin.f32 %v2049, 1.0
  %v2051 = vmax.f32 %v2050, -1.0
  %v2052 = vadd.f32 %v2011, 1.0
  %v2053 = vadd.f32 %v2051, 1.0
  %v2054 = vmul.f32 %v1968, %v2052
  %v2055 = vmul.f32 %v1969, %v2053
  %v2056 = vpack.c.bf16 %v2054, %v2054
  %v2057 = vpack.c.bf16 %v2055, %v2055
  %s2058 = scalar_lea.vmem %s3, 512
  %v2059 = vld [vmem:[%s2058] sm:$0xf]
  %v2060 = vld [vmem:[%s2058 + $0x4] sm:$0xf]
  %v2061 = vld [vmem:[%s2058 + $0x8] sm:$0xf]
  %v2062 = vld [vmem:[%s2058 + $0xc] sm:$0xf]
  %v2063 = vld [vmem:[%s2058 + $0x10] sm:$0xf]
  %v2064 = vld [vmem:[%s2058 + $0x14] sm:$0xf]
  %v2065 = vld [vmem:[%s2058 + $0x18] sm:$0xf]
  %v2066 = vld [vmem:[%s2058 + $0x1c] sm:$0xf]
  %v2067 = vld [vmem:[%s2058 + $0x20] sm:$0xf]
  %v2068 = vld [vmem:[%s2058 + $0x24] sm:$0xf]
  %v2069 = vld [vmem:[%s2058 + $0x28] sm:$0xf]
  %v2070 = vld [vmem:[%s2058 + $0x2c] sm:$0xf]
  %v2071 = vld [vmem:[%s2058 + $0x30] sm:$0xf]
  %v2072 = vld [vmem:[%s2058 + $0x34] sm:$0xf]
  %v2073 = vld [vmem:[%s2058 + $0x38] sm:$0xf]
  %v2074 = vld [vmem:[%s2058 + $0x3c] sm:$0xf]
  %v2075 = vld [vmem:[%s2058 + $0x40] sm:$0xf]
  %v2076 = vld [vmem:[%s2058 + $0x44] sm:$0xf]
  %v2077 = vld [vmem:[%s2058 + $0x48] sm:$0xf]
  %v2078 = vld [vmem:[%s2058 + $0x4c] sm:$0xf]
  %v2079 = vld [vmem:[%s2058 + $0x50] sm:$0xf]
  %v2080 = vld [vmem:[%s2058 + $0x54] sm:$0xf]
  %v2081 = vld [vmem:[%s2058 + $0x58] sm:$0xf]
  %v2082 = vld [vmem:[%s2058 + $0x5c] sm:$0xf]
  %v2083 = vld [vmem:[%s2058 + $0x60] sm:$0xf]
  %v2084 = vld [vmem:[%s2058 + $0x64] sm:$0xf]
  %v2085 = vld [vmem:[%s2058 + $0x68] sm:$0xf]
  %v2086 = vld [vmem:[%s2058 + $0x6c] sm:$0xf]
  %v2087 = vld [vmem:[%s2058 + $0x70] sm:$0xf]
  %v2088 = vld [vmem:[%s2058 + $0x74] sm:$0xf]
  %v2089 = vld [vmem:[%s2058 + $0x78] sm:$0xf]
  %v2090 = vld [vmem:[%s2058 + $0x7c] sm:$0xf]
  %s2091 = scalar_lea.vmem %s4, 4
  %v2092 = vld [vmem:[%s2091] sm:$0x1]
  %v2094 = vperm.slane %v2092, 0
  %v2128 = vunpack.c.l.b16 %v2059
  %v2129 = vunpack.c.l.b16 %v2060
  %v2130 = vunpack.c.l.b16 %v2061
  %v2131 = vunpack.c.l.b16 %v2062
  %v2132 = vunpack.c.l.b16 %v2063
  %v2133 = vunpack.c.l.b16 %v2064
  %v2134 = vunpack.c.l.b16 %v2065
  %v2135 = vunpack.c.l.b16 %v2066
  %v2136 = vunpack.c.l.b16 %v2067
  %v2137 = vunpack.c.l.b16 %v2068
  %v2138 = vunpack.c.l.b16 %v2069
  %v2139 = vunpack.c.l.b16 %v2070
  %v2140 = vunpack.c.l.b16 %v2071
  %v2141 = vunpack.c.l.b16 %v2072
  %v2142 = vunpack.c.l.b16 %v2073
  %v2143 = vunpack.c.l.b16 %v2074
  %v2144 = vunpack.c.l.b16 %v2075
  %v2145 = vunpack.c.l.b16 %v2076
  %v2146 = vunpack.c.l.b16 %v2077
  %v2147 = vunpack.c.l.b16 %v2078
  %v2148 = vunpack.c.l.b16 %v2079
  %v2149 = vunpack.c.l.b16 %v2080
  %v2150 = vunpack.c.l.b16 %v2081
  %v2151 = vunpack.c.l.b16 %v2082
  %v2152 = vunpack.c.l.b16 %v2083
  %v2153 = vunpack.c.l.b16 %v2084
  %v2154 = vunpack.c.l.b16 %v2085
  %v2155 = vunpack.c.l.b16 %v2086
  %v2156 = vunpack.c.l.b16 %v2087
  %v2157 = vunpack.c.l.b16 %v2088
  %v2158 = vunpack.c.l.b16 %v2089
  %v2159 = vunpack.c.l.b16 %v2090
  %v2160 = vpack.c.b16 %v2129, %v2128
  %v2161 = vpack.c.b16 %v2131, %v2130
  %v2162 = vpack.c.b16 %v2133, %v2132
  %v2163 = vpack.c.b16 %v2135, %v2134
  %v2164 = vpack.c.b16 %v2137, %v2136
  %v2165 = vpack.c.b16 %v2139, %v2138
  %v2166 = vpack.c.b16 %v2141, %v2140
  %v2167 = vpack.c.b16 %v2143, %v2142
  %v2168 = vpack.c.b16 %v2145, %v2144
  %v2169 = vpack.c.b16 %v2147, %v2146
  %v2170 = vpack.c.b16 %v2149, %v2148
  %v2171 = vpack.c.b16 %v2151, %v2150
  %v2172 = vpack.c.b16 %v2153, %v2152
  %v2173 = vpack.c.b16 %v2155, %v2154
  %v2174 = vpack.c.b16 %v2157, %v2156
  %v2175 = vpack.c.b16 %v2159, %v2158
  %2192 = vmatpush.bf16.msra.mxu0 %v2167
  %2193 = vmatpush.bf16.msra.mxu0 %v2166
  %2194 = vmatpush.bf16.msra.mxu0 %v2165
  %2195 = vmatpush.bf16.msra.mxu0 %v2164
  %2196 = vmatpush.bf16.msra.mxu0 %v2163
  %2197 = vmatpush.bf16.msra.mxu0 %v2162
  %2198 = vmatpush.bf16.msra.mxu0 %v2161
  %2199 = vmatpush.bf16.msra.mxu0 %v2160
  %2200 = vmatmul.bf16.gmra.mxu0 %v2056
  %v2201 = vpop.f32.mrf.mxu0
  %v2202 = vadd.f32 %v2094, %v2201
  %v2203 = vpop.f32.mrf.mxu0
  %2204 = vdwg.mxu0
  %2205 = vmatpush.bf16.msra.mxu0 %v2175
  %2206 = vmatpush.bf16.msra.mxu0 %v2174
  %2207 = vmatpush.bf16.msra.mxu0 %v2173
  %2208 = vmatpush.bf16.msra.mxu0 %v2172
  %2209 = vmatpush.bf16.msra.mxu0 %v2171
  %2210 = vmatpush.bf16.msra.mxu0 %v2170
  %2211 = vmatpush.bf16.msra.mxu0 %v2169
  %2212 = vmatpush.bf16.msra.mxu0 %v2168
  %2213 = vmatmul.bf16.gmra.mxu0 %v2057
  %v2214 = vpop.f32.mrf.mxu0
  %v2215 = vadd.f32 %v2202, %v2214
  %v2216 = vpop.f32.mrf.mxu0
  %2217 = vdwg.mxu0
  %v2218 = vmul.f32 %v2215, 0.5
  %v2219 = vmul.f32 %v2215, 0.70710677
  %v2220 = vmul.f32 %v2219, %v2219
  %v2221 = vmin.f32 16.0, %v2220
  %v2222 = vmul.f32 %v2221, 2.1237322e-06
  %v2223 = vadd.f32 %v2222, 0.00028619796
  %v2224 = vmul.f32 %v2221, %v2223
  %v2225 = vadd.f32 %v2224, 0.0036580483
  %v2226 = vmul.f32 %v2221, %v2225
  %v2227 = vadd.f32 %v2226, 0.05243302
  %v2228 = vmul.f32 %v2221, %v2227
  %v2229 = vadd.f32 %v2228, 0.18741608
  %v2230 = vmul.f32 %v2221, %v2229
  %v2231 = vadd.f32 %v2230, 1.1283791
  %v2232 = vmul.f32 %v2219, %v2231
  %v2233 = vmul.f32 %v2221, 3.8918573e-05
  %v2234 = vadd.f32 %v2233, 0.001143296
  %v2235 = vmul.f32 %v2221, %v2234
  %v2236 = vadd.f32 %v2235, 0.014752088
  %v2237 = vmul.f32 %v2221, %v2236
  %v2238 = vadd.f32 %v2237, 0.112945676
  %v2239 = vmul.f32 %v2221, %v2238
  %v2240 = vadd.f32 %v2239, 0.4994258
  %v2241 = vmul.f32 %v2221, %v2240
  %v2242 = vadd.f32 %v2241, 1.0
  %v2243 = vrcp.pop %v2242
  %v2244 = vmul.f32 %v2242, %v2243
  %v2245 = vsub.f32 1.0, %v2244
  %v2246 = vmul.f32 %v2243, %v2245
  %v2247 = vadd.f32 %v2243, %v2246
  %vm2248 = vweird.f32 %v2242
  %vm2249 = vweird.f32 %v2243
  %vm2250 = vmor %vm2248, %vm2249
  %v2251 = vsel %vm2250, %v2243, %v2247
  %v2252 = vand.u32 2147483647, %v2242
  %vm2253 = vcmp.eq.f32.partialorder %v2252, 8.507059e+37
  %v2254 = vand.u32 %v2242, 2147483648
  %v2255 = vor.u32 1.1754944e-38, %v2254
  %v2256 = vsel %vm2253, %v2255, %v2251
  %v2257 = vmul.f32 %v2232, %v2256
  %v2258 = vmin.f32 %v2257, 1.0
  %v2259 = vmax.f32 %v2258, -1.0
  %v2260 = vadd.f32 %v2259, 1.0
  %v2261 = vmul.f32 %v2218, %v2260
  %v2262 = vpack.c.bf16 %v2261, %v2261
  %s2263 = scalar_lea.vmem %s5, 256
  %v2264 = vld [vmem:[%s2263] sm:$0xf]
  %v2265 = vld [vmem:[%s2263 + $0x4] sm:$0xf]
  %v2266 = vld [vmem:[%s2263 + $0x8] sm:$0xf]
  %v2267 = vld [vmem:[%s2263 + $0xc] sm:$0xf]
  %v2268 = vld [vmem:[%s2263 + $0x10] sm:$0xf]
  %v2269 = vld [vmem:[%s2263 + $0x14] sm:$0xf]
  %v2270 = vld [vmem:[%s2263 + $0x18] sm:$0xf]
  %v2271 = vld [vmem:[%s2263 + $0x1c] sm:$0xf]
  %v2272 = vld [vmem:[%s2263 + $0x20] sm:$0xf]
  %v2273 = vld [vmem:[%s2263 + $0x24] sm:$0xf]
  %v2274 = vld [vmem:[%s2263 + $0x28] sm:$0xf]
  %v2275 = vld [vmem:[%s2263 + $0x2c] sm:$0xf]
  %v2276 = vld [vmem:[%s2263 + $0x30] sm:$0xf]
  %v2277 = vld [vmem:[%s2263 + $0x34] sm:$0xf]
  %v2278 = vld [vmem:[%s2263 + $0x38] sm:$0xf]
  %v2279 = vld [vmem:[%s2263 + $0x3c] sm:$0xf]
  %s2280 = scalar_lea.vmem %s6, 4
  %v2281 = vld [vmem:[%s2280] sm:$0x1]
  %v2283 = vperm.slane %v2281, 0
  %v2301 = vunpack.c.l.b16 %v2264
  %v2302 = vunpack.c.l.b16 %v2265
  %v2303 = vunpack.c.l.b16 %v2266
  %v2304 = vunpack.c.l.b16 %v2267
  %v2305 = vunpack.c.l.b16 %v2268
  %v2306 = vunpack.c.l.b16 %v2269
  %v2307 = vunpack.c.l.b16 %v2270
  %v2308 = vunpack.c.l.b16 %v2271
  %v2309 = vunpack.c.l.b16 %v2272
  %v2310 = vunpack.c.l.b16 %v2273
  %v2311 = vunpack.c.l.b16 %v2274
  %v2312 = vunpack.c.l.b16 %v2275
  %v2313 = vunpack.c.l.b16 %v2276
  %v2314 = vunpack.c.l.b16 %v2277
  %v2315 = vunpack.c.l.b16 %v2278
  %v2316 = vunpack.c.l.b16 %v2279
  %v2317 = vpack.c.b16 %v2302, %v2301
  %v2318 = vpack.c.b16 %v2304, %v2303
  %v2319 = vpack.c.b16 %v2306, %v2305
  %v2320 = vpack.c.b16 %v2308, %v2307
  %v2321 = vpack.c.b16 %v2310, %v2309
  %v2322 = vpack.c.b16 %v2312, %v2311
  %v2323 = vpack.c.b16 %v2314, %v2313
  %v2324 = vpack.c.b16 %v2316, %v2315
  %2333 = vmatpush.bf16.msra.mxu0 %v2324
  %2334 = vmatpush.bf16.msra.mxu0 %v2323
  %2335 = vmatpush.bf16.msra.mxu0 %v2322
  %2336 = vmatpush.bf16.msra.mxu0 %v2321
  %2337 = vmatpush.bf16.msra.mxu0 %v2320
  %2338 = vmatpush.bf16.msra.mxu0 %v2319
  %2339 = vmatpush.bf16.msra.mxu0 %v2318
  %2340 = vmatpush.bf16.msra.mxu0 %v2317
  %2341 = vmatmul.bf16.gmra.mxu0 %v2262
  %v2342 = vpop.f32.mrf.mxu0
  %v2343 = vadd.f32 %v2283, %v2342
  %v2344 = vpop.f32.mrf.mxu0
  %2345 = vdwg.mxu0
  %s2346 = scalar_lea.vmem %s0, 5
  %v2347 = vld [vmem:[%s2346] sm:$0x1]
  %s2348 = scalar_lea.vmem %s1, 320
  %v2349 = vld [vmem:[%s2348] sm:$0xff]
  %v2350 = vld [vmem:[%s2348 + $0x8] sm:$0xff]
  %v2351 = vld [vmem:[%s2348 + $0x10] sm:$0xff]
  %v2352 = vld [vmem:[%s2348 + $0x18] sm:$0xff]
  %v2353 = vld [vmem:[%s2348 + $0x20] sm:$0xff]
  %v2354 = vld [vmem:[%s2348 + $0x28] sm:$0xff]
  %v2355 = vld [vmem:[%s2348 + $0x30] sm:$0xff]
  %v2356 = vld [vmem:[%s2348 + $0x38] sm:$0xff]
  %s2357 = scalar_lea.vmem %s2, 10
  %v2358 = vld [vmem:[%s2357] sm:$0x3]
  %v2360 = vperm.slane %v2358, 0
  %v2361 = vperm.slane %v2358, 1
  %v2372 = vunpack.c.l.b16 %v2349
  %v2373 = vunpack.c.h.b16 %v2349
  %v2374 = vunpack.c.l.b16 %v2350
  %v2375 = vunpack.c.h.b16 %v2350
  %v2376 = vunpack.c.l.b16 %v2351
  %v2377 = vunpack.c.h.b16 %v2351
  %v2378 = vunpack.c.l.b16 %v2352
  %v2379 = vunpack.c.h.b16 %v2352
  %v2380 = vunpack.c.l.b16 %v2353
  %v2381 = vunpack.c.h.b16 %v2353
  %v2382 = vunpack.c.l.b16 %v2354
  %v2383 = vunpack.c.h.b16 %v2354
  %v2384 = vunpack.c.l.b16 %v2355
  %v2385 = vunpack.c.h.b16 %v2355
  %v2386 = vunpack.c.l.b16 %v2356
  %v2387 = vunpack.c.h.b16 %v2356
  %v2388 = vpack.c.b16 %v2374, %v2372
  %v2389 = vpack.c.b16 %v2375, %v2373
  %v2390 = vpack.c.b16 %v2378, %v2376
  %v2391 = vpack.c.b16 %v2379, %v2377
  %v2392 = vpack.c.b16 %v2382, %v2380
  %v2393 = vpack.c.b16 %v2383, %v2381
  %v2394 = vpack.c.b16 %v2386, %v2384
  %v2395 = vpack.c.b16 %v2387, %v2385
  %v2405 = vsel %vm82, %v2347, 0
  %2407 = vmatpush.bf16.msra.mxu0 0
  %2408 = vmatpush.bf16.msra.mxu0 0
  %2409 = vmatpush.bf16.msra.mxu0 0
  %2410 = vmatpush.bf16.msra.mxu0 0
  %2411 = vmatpush.bf16.msra.mxu0 %v2394
  %2412 = vmatpush.bf16.msra.mxu0 %v2392
  %2413 = vmatpush.bf16.msra.mxu0 %v2390
  %2414 = vmatpush.bf16.msra.mxu0 %v2388
  %2415 = vmatmul.bf16.gmra.mxu0 %v2405
  %v2416 = vpop.f32.mrf.mxu0
  %v2417 = vadd.f32 %v2360, %v2416
  %v2418 = vpop.f32.mrf.mxu0
  %2419 = vdwg.mxu0
  %2420 = vmatpush.bf16.msra.mxu0 0
  %2421 = vmatpush.bf16.msra.mxu0 0
  %2422 = vmatpush.bf16.msra.mxu0 0
  %2423 = vmatpush.bf16.msra.mxu0 0
  %2424 = vmatpush.bf16.msra.mxu0 %v2395
  %2425 = vmatpush.bf16.msra.mxu0 %v2393
  %2426 = vmatpush.bf16.msra.mxu0 %v2391
  %2427 = vmatpush.bf16.msra.mxu0 %v2389
  %2428 = vmatmul.bf16.gmra.mxu0 %v2405
  %v2429 = vpop.f32.mrf.mxu0
  %v2430 = vadd.f32 %v2361, %v2429
  %v2431 = vpop.f32.mrf.mxu0
  %2432 = vdwg.mxu0
  %v2433 = vmul.f32 %v2417, 0.5
  %v2434 = vmul.f32 %v2430, 0.5
  %v2435 = vmul.f32 %v2417, 0.70710677
  %v2436 = vmul.f32 %v2430, 0.70710677
  %v2437 = vmul.f32 %v2435, %v2435
  %v2438 = vmin.f32 16.0, %v2437
  %v2439 = vmul.f32 %v2438, 2.1237322e-06
  %v2440 = vadd.f32 %v2439, 0.00028619796
  %v2441 = vmul.f32 %v2438, %v2440
  %v2442 = vadd.f32 %v2441, 0.0036580483
  %v2443 = vmul.f32 %v2438, %v2442
  %v2444 = vadd.f32 %v2443, 0.05243302
  %v2445 = vmul.f32 %v2438, %v2444
  %v2446 = vadd.f32 %v2445, 0.18741608
  %v2447 = vmul.f32 %v2438, %v2446
  %v2448 = vadd.f32 %v2447, 1.1283791
  %v2449 = vmul.f32 %v2435, %v2448
  %v2450 = vmul.f32 %v2438, 3.8918573e-05
  %v2451 = vadd.f32 %v2450, 0.001143296
  %v2452 = vmul.f32 %v2438, %v2451
  %v2453 = vadd.f32 %v2452, 0.014752088
  %v2454 = vmul.f32 %v2438, %v2453
  %v2455 = vadd.f32 %v2454, 0.112945676
  %v2456 = vmul.f32 %v2438, %v2455
  %v2457 = vadd.f32 %v2456, 0.4994258
  %v2458 = vmul.f32 %v2438, %v2457
  %v2459 = vadd.f32 %v2458, 1.0
  %v2460 = vrcp.pop %v2459
  %v2461 = vmul.f32 %v2459, %v2460
  %v2462 = vsub.f32 1.0, %v2461
  %v2463 = vmul.f32 %v2460, %v2462
  %v2464 = vadd.f32 %v2460, %v2463
  %vm2465 = vweird.f32 %v2459
  %vm2466 = vweird.f32 %v2460
  %vm2467 = vmor %vm2465, %vm2466
  %v2468 = vsel %vm2467, %v2460, %v2464
  %v2469 = vand.u32 2147483647, %v2459
  %vm2470 = vcmp.eq.f32.partialorder %v2469, 8.507059e+37
  %v2471 = vand.u32 %v2459, 2147483648
  %v2472 = vor.u32 1.1754944e-38, %v2471
  %v2473 = vsel %vm2470, %v2472, %v2468
  %v2474 = vmul.f32 %v2449, %v2473
  %v2475 = vmin.f32 %v2474, 1.0
  %v2476 = vmax.f32 %v2475, -1.0
  %v2477 = vmul.f32 %v2436, %v2436
  %v2478 = vmin.f32 16.0, %v2477
  %v2479 = vmul.f32 %v2478, 2.1237322e-06
  %v2480 = vadd.f32 %v2479, 0.00028619796
  %v2481 = vmul.f32 %v2478, %v2480
  %v2482 = vadd.f32 %v2481, 0.0036580483
  %v2483 = vmul.f32 %v2478, %v2482
  %v2484 = vadd.f32 %v2483, 0.05243302
  %v2485 = vmul.f32 %v2478, %v2484
  %v2486 = vadd.f32 %v2485, 0.18741608
  %v2487 = vmul.f32 %v2478, %v2486
  %v2488 = vadd.f32 %v2487, 1.1283791
  %v2489 = vmul.f32 %v2436, %v2488
  %v2490 = vmul.f32 %v2478, 3.8918573e-05
  %v2491 = vadd.f32 %v2490, 0.001143296
  %v2492 = vmul.f32 %v2478, %v2491
  %v2493 = vadd.f32 %v2492, 0.014752088
  %v2494 = vmul.f32 %v2478, %v2493
  %v2495 = vadd.f32 %v2494, 0.112945676
  %v2496 = vmul.f32 %v2478, %v2495
  %v2497 = vadd.f32 %v2496, 0.4994258
  %v2498 = vmul.f32 %v2478, %v2497
  %v2499 = vadd.f32 %v2498, 1.0
  %v2500 = vrcp.pop %v2499
  %v2501 = vmul.f32 %v2499, %v2500
  %v2502 = vsub.f32 1.0, %v2501
  %v2503 = vmul.f32 %v2500, %v2502
  %v2504 = vadd.f32 %v2500, %v2503
  %vm2505 = vweird.f32 %v2499
  %vm2506 = vweird.f32 %v2500
  %vm2507 = vmor %vm2505, %vm2506
  %v2508 = vsel %vm2507, %v2500, %v2504
  %v2509 = vand.u32 2147483647, %v2499
  %vm2510 = vcmp.eq.f32.partialorder %v2509, 8.507059e+37
  %v2511 = vand.u32 %v2499, 2147483648
  %v2512 = vor.u32 1.1754944e-38, %v2511
  %v2513 = vsel %vm2510, %v2512, %v2508
  %v2514 = vmul.f32 %v2489, %v2513
  %v2515 = vmin.f32 %v2514, 1.0
  %v2516 = vmax.f32 %v2515, -1.0
  %v2517 = vadd.f32 %v2476, 1.0
  %v2518 = vadd.f32 %v2516, 1.0
  %v2519 = vmul.f32 %v2433, %v2517
  %v2520 = vmul.f32 %v2434, %v2518
  %v2521 = vpack.c.bf16 %v2519, %v2519
  %v2522 = vpack.c.bf16 %v2520, %v2520
  %s2523 = scalar_lea.vmem %s3, 640
  %v2524 = vld [vmem:[%s2523] sm:$0xf]
  %v2525 = vld [vmem:[%s2523 + $0x4] sm:$0xf]
  %v2526 = vld [vmem:[%s2523 + $0x8] sm:$0xf]
  %v2527 = vld [vmem:[%s2523 + $0xc] sm:$0xf]
  %v2528 = vld [vmem:[%s2523 + $0x10] sm:$0xf]
  %v2529 = vld [vmem:[%s2523 + $0x14] sm:$0xf]
  %v2530 = vld [vmem:[%s2523 + $0x18] sm:$0xf]
  %v2531 = vld [vmem:[%s2523 + $0x1c] sm:$0xf]
  %v2532 = vld [vmem:[%s2523 + $0x20] sm:$0xf]
  %v2533 = vld [vmem:[%s2523 + $0x24] sm:$0xf]
  %v2534 = vld [vmem:[%s2523 + $0x28] sm:$0xf]
  %v2535 = vld [vmem:[%s2523 + $0x2c] sm:$0xf]
  %v2536 = vld [vmem:[%s2523 + $0x30] sm:$0xf]
  %v2537 = vld [vmem:[%s2523 + $0x34] sm:$0xf]
  %v2538 = vld [vmem:[%s2523 + $0x38] sm:$0xf]
  %v2539 = vld [vmem:[%s2523 + $0x3c] sm:$0xf]
  %v2540 = vld [vmem:[%s2523 + $0x40] sm:$0xf]
  %v2541 = vld [vmem:[%s2523 + $0x44] sm:$0xf]
  %v2542 = vld [vmem:[%s2523 + $0x48] sm:$0xf]
  %v2543 = vld [vmem:[%s2523 + $0x4c] sm:$0xf]
  %v2544 = vld [vmem:[%s2523 + $0x50] sm:$0xf]
  %v2545 = vld [vmem:[%s2523 + $0x54] sm:$0xf]
  %v2546 = vld [vmem:[%s2523 + $0x58] sm:$0xf]
  %v2547 = vld [vmem:[%s2523 + $0x5c] sm:$0xf]
  %v2548 = vld [vmem:[%s2523 + $0x60] sm:$0xf]
  %v2549 = vld [vmem:[%s2523 + $0x64] sm:$0xf]
  %v2550 = vld [vmem:[%s2523 + $0x68] sm:$0xf]
  %v2551 = vld [vmem:[%s2523 + $0x6c] sm:$0xf]
  %v2552 = vld [vmem:[%s2523 + $0x70] sm:$0xf]
  %v2553 = vld [vmem:[%s2523 + $0x74] sm:$0xf]
  %v2554 = vld [vmem:[%s2523 + $0x78] sm:$0xf]
  %v2555 = vld [vmem:[%s2523 + $0x7c] sm:$0xf]
  %s2556 = scalar_lea.vmem %s4, 5
  %v2557 = vld [vmem:[%s2556] sm:$0x1]
  %v2559 = vperm.slane %v2557, 0
  %v2593 = vunpack.c.l.b16 %v2524
  %v2594 = vunpack.c.l.b16 %v2525
  %v2595 = vunpack.c.l.b16 %v2526
  %v2596 = vunpack.c.l.b16 %v2527
  %v2597 = vunpack.c.l.b16 %v2528
  %v2598 = vunpack.c.l.b16 %v2529
  %v2599 = vunpack.c.l.b16 %v2530
  %v2600 = vunpack.c.l.b16 %v2531
  %v2601 = vunpack.c.l.b16 %v2532
  %v2602 = vunpack.c.l.b16 %v2533
  %v2603 = vunpack.c.l.b16 %v2534
  %v2604 = vunpack.c.l.b16 %v2535
  %v2605 = vunpack.c.l.b16 %v2536
  %v2606 = vunpack.c.l.b16 %v2537
  %v2607 = vunpack.c.l.b16 %v2538
  %v2608 = vunpack.c.l.b16 %v2539
  %v2609 = vunpack.c.l.b16 %v2540
  %v2610 = vunpack.c.l.b16 %v2541
  %v2611 = vunpack.c.l.b16 %v2542
  %v2612 = vunpack.c.l.b16 %v2543
  %v2613 = vunpack.c.l.b16 %v2544
  %v2614 = vunpack.c.l.b16 %v2545
  %v2615 = vunpack.c.l.b16 %v2546
  %v2616 = vunpack.c.l.b16 %v2547
  %v2617 = vunpack.c.l.b16 %v2548
  %v2618 = vunpack.c.l.b16 %v2549
  %v2619 = vunpack.c.l.b16 %v2550
  %v2620 = vunpack.c.l.b16 %v2551
  %v2621 = vunpack.c.l.b16 %v2552
  %v2622 = vunpack.c.l.b16 %v2553
  %v2623 = vunpack.c.l.b16 %v2554
  %v2624 = vunpack.c.l.b16 %v2555
  %v2625 = vpack.c.b16 %v2594, %v2593
  %v2626 = vpack.c.b16 %v2596, %v2595
  %v2627 = vpack.c.b16 %v2598, %v2597
  %v2628 = vpack.c.b16 %v2600, %v2599
  %v2629 = vpack.c.b16 %v2602, %v2601
  %v2630 = vpack.c.b16 %v2604, %v2603
  %v2631 = vpack.c.b16 %v2606, %v2605
  %v2632 = vpack.c.b16 %v2608, %v2607
  %v2633 = vpack.c.b16 %v2610, %v2609
  %v2634 = vpack.c.b16 %v2612, %v2611
  %v2635 = vpack.c.b16 %v2614, %v2613
  %v2636 = vpack.c.b16 %v2616, %v2615
  %v2637 = vpack.c.b16 %v2618, %v2617
  %v2638 = vpack.c.b16 %v2620, %v2619
  %v2639 = vpack.c.b16 %v2622, %v2621
  %v2640 = vpack.c.b16 %v2624, %v2623
  %2657 = vmatpush.bf16.msra.mxu0 %v2632
  %2658 = vmatpush.bf16.msra.mxu0 %v2631
  %2659 = vmatpush.bf16.msra.mxu0 %v2630
  %2660 = vmatpush.bf16.msra.mxu0 %v2629
  %2661 = vmatpush.bf16.msra.mxu0 %v2628
  %2662 = vmatpush.bf16.msra.mxu0 %v2627
  %2663 = vmatpush.bf16.msra.mxu0 %v2626
  %2664 = vmatpush.bf16.msra.mxu0 %v2625
  %2665 = vmatmul.bf16.gmra.mxu0 %v2521
  %v2666 = vpop.f32.mrf.mxu0
  %v2667 = vadd.f32 %v2559, %v2666
  %v2668 = vpop.f32.mrf.mxu0
  %2669 = vdwg.mxu0
  %2670 = vmatpush.bf16.msra.mxu0 %v2640
  %2671 = vmatpush.bf16.msra.mxu0 %v2639
  %2672 = vmatpush.bf16.msra.mxu0 %v2638
  %2673 = vmatpush.bf16.msra.mxu0 %v2637
  %2674 = vmatpush.bf16.msra.mxu0 %v2636
  %2675 = vmatpush.bf16.msra.mxu0 %v2635
  %2676 = vmatpush.bf16.msra.mxu0 %v2634
  %2677 = vmatpush.bf16.msra.mxu0 %v2633
  %2678 = vmatmul.bf16.gmra.mxu0 %v2522
  %v2679 = vpop.f32.mrf.mxu0
  %v2680 = vadd.f32 %v2667, %v2679
  %v2681 = vpop.f32.mrf.mxu0
  %2682 = vdwg.mxu0
  %v2683 = vmul.f32 %v2680, 0.5
  %v2684 = vmul.f32 %v2680, 0.70710677
  %v2685 = vmul.f32 %v2684, %v2684
  %v2686 = vmin.f32 16.0, %v2685
  %v2687 = vmul.f32 %v2686, 2.1237322e-06
  %v2688 = vadd.f32 %v2687, 0.00028619796
  %v2689 = vmul.f32 %v2686, %v2688
  %v2690 = vadd.f32 %v2689, 0.0036580483
  %v2691 = vmul.f32 %v2686, %v2690
  %v2692 = vadd.f32 %v2691, 0.05243302
  %v2693 = vmul.f32 %v2686, %v2692
  %v2694 = vadd.f32 %v2693, 0.18741608
  %v2695 = vmul.f32 %v2686, %v2694
  %v2696 = vadd.f32 %v2695, 1.1283791
  %v2697 = vmul.f32 %v2684, %v2696
  %v2698 = vmul.f32 %v2686, 3.8918573e-05
  %v2699 = vadd.f32 %v2698, 0.001143296
  %v2700 = vmul.f32 %v2686, %v2699
  %v2701 = vadd.f32 %v2700, 0.014752088
  %v2702 = vmul.f32 %v2686, %v2701
  %v2703 = vadd.f32 %v2702, 0.112945676
  %v2704 = vmul.f32 %v2686, %v2703
  %v2705 = vadd.f32 %v2704, 0.4994258
  %v2706 = vmul.f32 %v2686, %v2705
  %v2707 = vadd.f32 %v2706, 1.0
  %v2708 = vrcp.pop %v2707
  %v2709 = vmul.f32 %v2707, %v2708
  %v2710 = vsub.f32 1.0, %v2709
  %v2711 = vmul.f32 %v2708, %v2710
  %v2712 = vadd.f32 %v2708, %v2711
  %vm2713 = vweird.f32 %v2707
  %vm2714 = vweird.f32 %v2708
  %vm2715 = vmor %vm2713, %vm2714
  %v2716 = vsel %vm2715, %v2708, %v2712
  %v2717 = vand.u32 2147483647, %v2707
  %vm2718 = vcmp.eq.f32.partialorder %v2717, 8.507059e+37
  %v2719 = vand.u32 %v2707, 2147483648
  %v2720 = vor.u32 1.1754944e-38, %v2719
  %v2721 = vsel %vm2718, %v2720, %v2716
  %v2722 = vmul.f32 %v2697, %v2721
  %v2723 = vmin.f32 %v2722, 1.0
  %v2724 = vmax.f32 %v2723, -1.0
  %v2725 = vadd.f32 %v2724, 1.0
  %v2726 = vmul.f32 %v2683, %v2725
  %v2727 = vpack.c.bf16 %v2726, %v2726
  %s2728 = scalar_lea.vmem %s5, 320
  %v2729 = vld [vmem:[%s2728] sm:$0xf]
  %v2730 = vld [vmem:[%s2728 + $0x4] sm:$0xf]
  %v2731 = vld [vmem:[%s2728 + $0x8] sm:$0xf]
  %v2732 = vld [vmem:[%s2728 + $0xc] sm:$0xf]
  %v2733 = vld [vmem:[%s2728 + $0x10] sm:$0xf]
  %v2734 = vld [vmem:[%s2728 + $0x14] sm:$0xf]
  %v2735 = vld [vmem:[%s2728 + $0x18] sm:$0xf]
  %v2736 = vld [vmem:[%s2728 + $0x1c] sm:$0xf]
  %v2737 = vld [vmem:[%s2728 + $0x20] sm:$0xf]
  %v2738 = vld [vmem:[%s2728 + $0x24] sm:$0xf]
  %v2739 = vld [vmem:[%s2728 + $0x28] sm:$0xf]
  %v2740 = vld [vmem:[%s2728 + $0x2c] sm:$0xf]
  %v2741 = vld [vmem:[%s2728 + $0x30] sm:$0xf]
  %v2742 = vld [vmem:[%s2728 + $0x34] sm:$0xf]
  %v2743 = vld [vmem:[%s2728 + $0x38] sm:$0xf]
  %v2744 = vld [vmem:[%s2728 + $0x3c] sm:$0xf]
  %s2745 = scalar_lea.vmem %s6, 5
  %v2746 = vld [vmem:[%s2745] sm:$0x1]
  %v2748 = vperm.slane %v2746, 0
  %v2766 = vunpack.c.l.b16 %v2729
  %v2767 = vunpack.c.l.b16 %v2730
  %v2768 = vunpack.c.l.b16 %v2731
  %v2769 = vunpack.c.l.b16 %v2732
  %v2770 = vunpack.c.l.b16 %v2733
  %v2771 = vunpack.c.l.b16 %v2734
  %v2772 = vunpack.c.l.b16 %v2735
  %v2773 = vunpack.c.l.b16 %v2736
  %v2774 = vunpack.c.l.b16 %v2737
  %v2775 = vunpack.c.l.b16 %v2738
  %v2776 = vunpack.c.l.b16 %v2739
  %v2777 = vunpack.c.l.b16 %v2740
  %v2778 = vunpack.c.l.b16 %v2741
  %v2779 = vunpack.c.l.b16 %v2742
  %v2780 = vunpack.c.l.b16 %v2743
  %v2781 = vunpack.c.l.b16 %v2744
  %v2782 = vpack.c.b16 %v2767, %v2766
  %v2783 = vpack.c.b16 %v2769, %v2768
  %v2784 = vpack.c.b16 %v2771, %v2770
  %v2785 = vpack.c.b16 %v2773, %v2772
  %v2786 = vpack.c.b16 %v2775, %v2774
  %v2787 = vpack.c.b16 %v2777, %v2776
  %v2788 = vpack.c.b16 %v2779, %v2778
  %v2789 = vpack.c.b16 %v2781, %v2780
  %2798 = vmatpush.bf16.msra.mxu0 %v2789
  %2799 = vmatpush.bf16.msra.mxu0 %v2788
  %2800 = vmatpush.bf16.msra.mxu0 %v2787
  %2801 = vmatpush.bf16.msra.mxu0 %v2786
  %2802 = vmatpush.bf16.msra.mxu0 %v2785
  %2803 = vmatpush.bf16.msra.mxu0 %v2784
  %2804 = vmatpush.bf16.msra.mxu0 %v2783
  %2805 = vmatpush.bf16.msra.mxu0 %v2782
  %2806 = vmatmul.bf16.gmra.mxu0 %v2727
  %v2807 = vpop.f32.mrf.mxu0
  %v2808 = vadd.f32 %v2748, %v2807
  %v2809 = vpop.f32.mrf.mxu0
  %2810 = vdwg.mxu0
  %s2811 = scalar_lea.vmem %s0, 6
  %v2812 = vld [vmem:[%s2811] sm:$0x1]
  %s2813 = scalar_lea.vmem %s1, 384
  %v2814 = vld [vmem:[%s2813] sm:$0xff]
  %v2815 = vld [vmem:[%s2813 + $0x8] sm:$0xff]
  %v2816 = vld [vmem:[%s2813 + $0x10] sm:$0xff]
  %v2817 = vld [vmem:[%s2813 + $0x18] sm:$0xff]
  %v2818 = vld [vmem:[%s2813 + $0x20] sm:$0xff]
  %v2819 = vld [vmem:[%s2813 + $0x28] sm:$0xff]
  %v2820 = vld [vmem:[%s2813 + $0x30] sm:$0xff]
  %v2821 = vld [vmem:[%s2813 + $0x38] sm:$0xff]
  %s2822 = scalar_lea.vmem %s2, 12
  %v2823 = vld [vmem:[%s2822] sm:$0x3]
  %v2825 = vperm.slane %v2823, 0
  %v2826 = vperm.slane %v2823, 1
  %v2837 = vunpack.c.l.b16 %v2814
  %v2838 = vunpack.c.h.b16 %v2814
  %v2839 = vunpack.c.l.b16 %v2815
  %v2840 = vunpack.c.h.b16 %v2815
  %v2841 = vunpack.c.l.b16 %v2816
  %v2842 = vunpack.c.h.b16 %v2816
  %v2843 = vunpack.c.l.b16 %v2817
  %v2844 = vunpack.c.h.b16 %v2817
  %v2845 = vunpack.c.l.b16 %v2818
  %v2846 = vunpack.c.h.b16 %v2818
  %v2847 = vunpack.c.l.b16 %v2819
  %v2848 = vunpack.c.h.b16 %v2819
  %v2849 = vunpack.c.l.b16 %v2820
  %v2850 = vunpack.c.h.b16 %v2820
  %v2851 = vunpack.c.l.b16 %v2821
  %v2852 = vunpack.c.h.b16 %v2821
  %v2853 = vpack.c.b16 %v2839, %v2837
  %v2854 = vpack.c.b16 %v2840, %v2838
  %v2855 = vpack.c.b16 %v2843, %v2841
  %v2856 = vpack.c.b16 %v2844, %v2842
  %v2857 = vpack.c.b16 %v2847, %v2845
  %v2858 = vpack.c.b16 %v2848, %v2846
  %v2859 = vpack.c.b16 %v2851, %v2849
  %v2860 = vpack.c.b16 %v2852, %v2850
  %v2870 = vsel %vm82, %v2812, 0
  %2872 = vmatpush.bf16.msra.mxu0 0
  %2873 = vmatpush.bf16.msra.mxu0 0
  %2874 = vmatpush.bf16.msra.mxu0 0
  %2875 = vmatpush.bf16.msra.mxu0 0
  %2876 = vmatpush.bf16.msra.mxu0 %v2859
  %2877 = vmatpush.bf16.msra.mxu0 %v2857
  %2878 = vmatpush.bf16.msra.mxu0 %v2855
  %2879 = vmatpush.bf16.msra.mxu0 %v2853
  %2880 = vmatmul.bf16.gmra.mxu0 %v2870
  %v2881 = vpop.f32.mrf.mxu0
  %v2882 = vadd.f32 %v2825, %v2881
  %v2883 = vpop.f32.mrf.mxu0
  %2884 = vdwg.mxu0
  %2885 = vmatpush.bf16.msra.mxu0 0
  %2886 = vmatpush.bf16.msra.mxu0 0
  %2887 = vmatpush.bf16.msra.mxu0 0
  %2888 = vmatpush.bf16.msra.mxu0 0
  %2889 = vmatpush.bf16.msra.mxu0 %v2860
  %2890 = vmatpush.bf16.msra.mxu0 %v2858
  %2891 = vmatpush.bf16.msra.mxu0 %v2856
  %2892 = vmatpush.bf16.msra.mxu0 %v2854
  %2893 = vmatmul.bf16.gmra.mxu0 %v2870
  %v2894 = vpop.f32.mrf.mxu0
  %v2895 = vadd.f32 %v2826, %v2894
  %v2896 = vpop.f32.mrf.mxu0
  %2897 = vdwg.mxu0
  %v2898 = vmul.f32 %v2882, 0.5
  %v2899 = vmul.f32 %v2895, 0.5
  %v2900 = vmul.f32 %v2882, 0.70710677
  %v2901 = vmul.f32 %v2895, 0.70710677
  %v2902 = vmul.f32 %v2900, %v2900
  %v2903 = vmin.f32 16.0, %v2902
  %v2904 = vmul.f32 %v2903, 2.1237322e-06
  %v2905 = vadd.f32 %v2904, 0.00028619796
  %v2906 = vmul.f32 %v2903, %v2905
  %v2907 = vadd.f32 %v2906, 0.0036580483
  %v2908 = vmul.f32 %v2903, %v2907
  %v2909 = vadd.f32 %v2908, 0.05243302
  %v2910 = vmul.f32 %v2903, %v2909
  %v2911 = vadd.f32 %v2910, 0.18741608
  %v2912 = vmul.f32 %v2903, %v2911
  %v2913 = vadd.f32 %v2912, 1.1283791
  %v2914 = vmul.f32 %v2900, %v2913
  %v2915 = vmul.f32 %v2903, 3.8918573e-05
  %v2916 = vadd.f32 %v2915, 0.001143296
  %v2917 = vmul.f32 %v2903, %v2916
  %v2918 = vadd.f32 %v2917, 0.014752088
  %v2919 = vmul.f32 %v2903, %v2918
  %v2920 = vadd.f32 %v2919, 0.112945676
  %v2921 = vmul.f32 %v2903, %v2920
  %v2922 = vadd.f32 %v2921, 0.4994258
  %v2923 = vmul.f32 %v2903, %v2922
  %v2924 = vadd.f32 %v2923, 1.0
  %v2925 = vrcp.pop %v2924
  %v2926 = vmul.f32 %v2924, %v2925
  %v2927 = vsub.f32 1.0, %v2926
  %v2928 = vmul.f32 %v2925, %v2927
  %v2929 = vadd.f32 %v2925, %v2928
  %vm2930 = vweird.f32 %v2924
  %vm2931 = vweird.f32 %v2925
  %vm2932 = vmor %vm2930, %vm2931
  %v2933 = vsel %vm2932, %v2925, %v2929
  %v2934 = vand.u32 2147483647, %v2924
  %vm2935 = vcmp.eq.f32.partialorder %v2934, 8.507059e+37
  %v2936 = vand.u32 %v2924, 2147483648
  %v2937 = vor.u32 1.1754944e-38, %v2936
  %v2938 = vsel %vm2935, %v2937, %v2933
  %v2939 = vmul.f32 %v2914, %v2938
  %v2940 = vmin.f32 %v2939, 1.0
  %v2941 = vmax.f32 %v2940, -1.0
  %v2942 = vmul.f32 %v2901, %v2901
  %v2943 = vmin.f32 16.0, %v2942
  %v2944 = vmul.f32 %v2943, 2.1237322e-06
  %v2945 = vadd.f32 %v2944, 0.00028619796
  %v2946 = vmul.f32 %v2943, %v2945
  %v2947 = vadd.f32 %v2946, 0.0036580483
  %v2948 = vmul.f32 %v2943, %v2947
  %v2949 = vadd.f32 %v2948, 0.05243302
  %v2950 = vmul.f32 %v2943, %v2949
  %v2951 = vadd.f32 %v2950, 0.18741608
  %v2952 = vmul.f32 %v2943, %v2951
  %v2953 = vadd.f32 %v2952, 1.1283791
  %v2954 = vmul.f32 %v2901, %v2953
  %v2955 = vmul.f32 %v2943, 3.8918573e-05
  %v2956 = vadd.f32 %v2955, 0.001143296
  %v2957 = vmul.f32 %v2943, %v2956
  %v2958 = vadd.f32 %v2957, 0.014752088
  %v2959 = vmul.f32 %v2943, %v2958
  %v2960 = vadd.f32 %v2959, 0.112945676
  %v2961 = vmul.f32 %v2943, %v2960
  %v2962 = vadd.f32 %v2961, 0.4994258
  %v2963 = vmul.f32 %v2943, %v2962
  %v2964 = vadd.f32 %v2963, 1.0
  %v2965 = vrcp.pop %v2964
  %v2966 = vmul.f32 %v2964, %v2965
  %v2967 = vsub.f32 1.0, %v2966
  %v2968 = vmul.f32 %v2965, %v2967
  %v2969 = vadd.f32 %v2965, %v2968
  %vm2970 = vweird.f32 %v2964
  %vm2971 = vweird.f32 %v2965
  %vm2972 = vmor %vm2970, %vm2971
  %v2973 = vsel %vm2972, %v2965, %v2969
  %v2974 = vand.u32 2147483647, %v2964
  %vm2975 = vcmp.eq.f32.partialorder %v2974, 8.507059e+37
  %v2976 = vand.u32 %v2964, 2147483648
  %v2977 = vor.u32 1.1754944e-38, %v2976
  %v2978 = vsel %vm2975, %v2977, %v2973
  %v2979 = vmul.f32 %v2954, %v2978
  %v2980 = vmin.f32 %v2979, 1.0
  %v2981 = vmax.f32 %v2980, -1.0
  %v2982 = vadd.f32 %v2941, 1.0
  %v2983 = vadd.f32 %v2981, 1.0
  %v2984 = vmul.f32 %v2898, %v2982
  %v2985 = vmul.f32 %v2899, %v2983
  %v2986 = vpack.c.bf16 %v2984, %v2984
  %v2987 = vpack.c.bf16 %v2985, %v2985
  %s2988 = scalar_lea.vmem %s3, 768
  %v2989 = vld [vmem:[%s2988] sm:$0xf]
  %v2990 = vld [vmem:[%s2988 + $0x4] sm:$0xf]
  %v2991 = vld [vmem:[%s2988 + $0x8] sm:$0xf]
  %v2992 = vld [vmem:[%s2988 + $0xc] sm:$0xf]
  %v2993 = vld [vmem:[%s2988 + $0x10] sm:$0xf]
  %v2994 = vld [vmem:[%s2988 + $0x14] sm:$0xf]
  %v2995 = vld [vmem:[%s2988 + $0x18] sm:$0xf]
  %v2996 = vld [vmem:[%s2988 + $0x1c] sm:$0xf]
  %v2997 = vld [vmem:[%s2988 + $0x20] sm:$0xf]
  %v2998 = vld [vmem:[%s2988 + $0x24] sm:$0xf]
  %v2999 = vld [vmem:[%s2988 + $0x28] sm:$0xf]
  %v3000 = vld [vmem:[%s2988 + $0x2c] sm:$0xf]
  %v3001 = vld [vmem:[%s2988 + $0x30] sm:$0xf]
  %v3002 = vld [vmem:[%s2988 + $0x34] sm:$0xf]
  %v3003 = vld [vmem:[%s2988 + $0x38] sm:$0xf]
  %v3004 = vld [vmem:[%s2988 + $0x3c] sm:$0xf]
  %v3005 = vld [vmem:[%s2988 + $0x40] sm:$0xf]
  %v3006 = vld [vmem:[%s2988 + $0x44] sm:$0xf]
  %v3007 = vld [vmem:[%s2988 + $0x48] sm:$0xf]
  %v3008 = vld [vmem:[%s2988 + $0x4c] sm:$0xf]
  %v3009 = vld [vmem:[%s2988 + $0x50] sm:$0xf]
  %v3010 = vld [vmem:[%s2988 + $0x54] sm:$0xf]
  %v3011 = vld [vmem:[%s2988 + $0x58] sm:$0xf]
  %v3012 = vld [vmem:[%s2988 + $0x5c] sm:$0xf]
  %v3013 = vld [vmem:[%s2988 + $0x60] sm:$0xf]
  %v3014 = vld [vmem:[%s2988 + $0x64] sm:$0xf]
  %v3015 = vld [vmem:[%s2988 + $0x68] sm:$0xf]
  %v3016 = vld [vmem:[%s2988 + $0x6c] sm:$0xf]
  %v3017 = vld [vmem:[%s2988 + $0x70] sm:$0xf]
  %v3018 = vld [vmem:[%s2988 + $0x74] sm:$0xf]
  %v3019 = vld [vmem:[%s2988 + $0x78] sm:$0xf]
  %v3020 = vld [vmem:[%s2988 + $0x7c] sm:$0xf]
  %s3021 = scalar_lea.vmem %s4, 6
  %v3022 = vld [vmem:[%s3021] sm:$0x1]
  %v3024 = vperm.slane %v3022, 0
  %v3058 = vunpack.c.l.b16 %v2989
  %v3059 = vunpack.c.l.b16 %v2990
  %v3060 = vunpack.c.l.b16 %v2991
  %v3061 = vunpack.c.l.b16 %v2992
  %v3062 = vunpack.c.l.b16 %v2993
  %v3063 = vunpack.c.l.b16 %v2994
  %v3064 = vunpack.c.l.b16 %v2995
  %v3065 = vunpack.c.l.b16 %v2996
  %v3066 = vunpack.c.l.b16 %v2997
  %v3067 = vunpack.c.l.b16 %v2998
  %v3068 = vunpack.c.l.b16 %v2999
  %v3069 = vunpack.c.l.b16 %v3000
  %v3070 = vunpack.c.l.b16 %v3001
  %v3071 = vunpack.c.l.b16 %v3002
  %v3072 = vunpack.c.l.b16 %v3003
  %v3073 = vunpack.c.l.b16 %v3004
  %v3074 = vunpack.c.l.b16 %v3005
  %v3075 = vunpack.c.l.b16 %v3006
  %v3076 = vunpack.c.l.b16 %v3007
  %v3077 = vunpack.c.l.b16 %v3008
  %v3078 = vunpack.c.l.b16 %v3009
  %v3079 = vunpack.c.l.b16 %v3010
  %v3080 = vunpack.c.l.b16 %v3011
  %v3081 = vunpack.c.l.b16 %v3012
  %v3082 = vunpack.c.l.b16 %v3013
  %v3083 = vunpack.c.l.b16 %v3014
  %v3084 = vunpack.c.l.b16 %v3015
  %v3085 = vunpack.c.l.b16 %v3016
  %v3086 = vunpack.c.l.b16 %v3017
  %v3087 = vunpack.c.l.b16 %v3018
  %v3088 = vunpack.c.l.b16 %v3019
  %v3089 = vunpack.c.l.b16 %v3020
  %v3090 = vpack.c.b16 %v3059, %v3058
  %v3091 = vpack.c.b16 %v3061, %v3060
  %v3092 = vpack.c.b16 %v3063, %v3062
  %v3093 = vpack.c.b16 %v3065, %v3064
  %v3094 = vpack.c.b16 %v3067, %v3066
  %v3095 = vpack.c.b16 %v3069, %v3068
  %v3096 = vpack.c.b16 %v3071, %v3070
  %v3097 = vpack.c.b16 %v3073, %v3072
  %v3098 = vpack.c.b16 %v3075, %v3074
  %v3099 = vpack.c.b16 %v3077, %v3076
  %v3100 = vpack.c.b16 %v3079, %v3078
  %v3101 = vpack.c.b16 %v3081, %v3080
  %v3102 = vpack.c.b16 %v3083, %v3082
  %v3103 = vpack.c.b16 %v3085, %v3084
  %v3104 = vpack.c.b16 %v3087, %v3086
  %v3105 = vpack.c.b16 %v3089, %v3088
  %3122 = vmatpush.bf16.msra.mxu0 %v3097
  %3123 = vmatpush.bf16.msra.mxu0 %v3096
  %3124 = vmatpush.bf16.msra.mxu0 %v3095
  %3125 = vmatpush.bf16.msra.mxu0 %v3094
  %3126 = vmatpush.bf16.msra.mxu0 %v3093
  %3127 = vmatpush.bf16.msra.mxu0 %v3092
  %3128 = vmatpush.bf16.msra.mxu0 %v3091
  %3129 = vmatpush.bf16.msra.mxu0 %v3090
  %3130 = vmatmul.bf16.gmra.mxu0 %v2986
  %v3131 = vpop.f32.mrf.mxu0
  %v3132 = vadd.f32 %v3024, %v3131
  %v3133 = vpop.f32.mrf.mxu0
  %3134 = vdwg.mxu0
  %3135 = vmatpush.bf16.msra.mxu0 %v3105
  %3136 = vmatpush.bf16.msra.mxu0 %v3104
  %3137 = vmatpush.bf16.msra.mxu0 %v3103
  %3138 = vmatpush.bf16.msra.mxu0 %v3102
  %3139 = vmatpush.bf16.msra.mxu0 %v3101
  %3140 = vmatpush.bf16.msra.mxu0 %v3100
  %3141 = vmatpush.bf16.msra.mxu0 %v3099
  %3142 = vmatpush.bf16.msra.mxu0 %v3098
  %3143 = vmatmul.bf16.gmra.mxu0 %v2987
  %v3144 = vpop.f32.mrf.mxu0
  %v3145 = vadd.f32 %v3132, %v3144
  %v3146 = vpop.f32.mrf.mxu0
  %3147 = vdwg.mxu0
  %v3148 = vmul.f32 %v3145, 0.5
  %v3149 = vmul.f32 %v3145, 0.70710677
  %v3150 = vmul.f32 %v3149, %v3149
  %v3151 = vmin.f32 16.0, %v3150
  %v3152 = vmul.f32 %v3151, 2.1237322e-06
  %v3153 = vadd.f32 %v3152, 0.00028619796
  %v3154 = vmul.f32 %v3151, %v3153
  %v3155 = vadd.f32 %v3154, 0.0036580483
  %v3156 = vmul.f32 %v3151, %v3155
  %v3157 = vadd.f32 %v3156, 0.05243302
  %v3158 = vmul.f32 %v3151, %v3157
  %v3159 = vadd.f32 %v3158, 0.18741608
  %v3160 = vmul.f32 %v3151, %v3159
  %v3161 = vadd.f32 %v3160, 1.1283791
  %v3162 = vmul.f32 %v3149, %v3161
  %v3163 = vmul.f32 %v3151, 3.8918573e-05
  %v3164 = vadd.f32 %v3163, 0.001143296
  %v3165 = vmul.f32 %v3151, %v3164
  %v3166 = vadd.f32 %v3165, 0.014752088
  %v3167 = vmul.f32 %v3151, %v3166
  %v3168 = vadd.f32 %v3167, 0.112945676
  %v3169 = vmul.f32 %v3151, %v3168
  %v3170 = vadd.f32 %v3169, 0.4994258
  %v3171 = vmul.f32 %v3151, %v3170
  %v3172 = vadd.f32 %v3171, 1.0
  %v3173 = vrcp.pop %v3172
  %v3174 = vmul.f32 %v3172, %v3173
  %v3175 = vsub.f32 1.0, %v3174
  %v3176 = vmul.f32 %v3173, %v3175
  %v3177 = vadd.f32 %v3173, %v3176
  %vm3178 = vweird.f32 %v3172
  %vm3179 = vweird.f32 %v3173
  %vm3180 = vmor %vm3178, %vm3179
  %v3181 = vsel %vm3180, %v3173, %v3177
  %v3182 = vand.u32 2147483647, %v3172
  %vm3183 = vcmp.eq.f32.partialorder %v3182, 8.507059e+37
  %v3184 = vand.u32 %v3172, 2147483648
  %v3185 = vor.u32 1.1754944e-38, %v3184
  %v3186 = vsel %vm3183, %v3185, %v3181
  %v3187 = vmul.f32 %v3162, %v3186
  %v3188 = vmin.f32 %v3187, 1.0
  %v3189 = vmax.f32 %v3188, -1.0
  %v3190 = vadd.f32 %v3189, 1.0
  %v3191 = vmul.f32 %v3148, %v3190
  %v3192 = vpack.c.bf16 %v3191, %v3191
  %s3193 = scalar_lea.vmem %s5, 384
  %v3194 = vld [vmem:[%s3193] sm:$0xf]
  %v3195 = vld [vmem:[%s3193 + $0x4] sm:$0xf]
  %v3196 = vld [vmem:[%s3193 + $0x8] sm:$0xf]
  %v3197 = vld [vmem:[%s3193 + $0xc] sm:$0xf]
  %v3198 = vld [vmem:[%s3193 + $0x10] sm:$0xf]
  %v3199 = vld [vmem:[%s3193 + $0x14] sm:$0xf]
  %v3200 = vld [vmem:[%s3193 + $0x18] sm:$0xf]
  %v3201 = vld [vmem:[%s3193 + $0x1c] sm:$0xf]
  %v3202 = vld [vmem:[%s3193 + $0x20] sm:$0xf]
  %v3203 = vld [vmem:[%s3193 + $0x24] sm:$0xf]
  %v3204 = vld [vmem:[%s3193 + $0x28] sm:$0xf]
  %v3205 = vld [vmem:[%s3193 + $0x2c] sm:$0xf]
  %v3206 = vld [vmem:[%s3193 + $0x30] sm:$0xf]
  %v3207 = vld [vmem:[%s3193 + $0x34] sm:$0xf]
  %v3208 = vld [vmem:[%s3193 + $0x38] sm:$0xf]
  %v3209 = vld [vmem:[%s3193 + $0x3c] sm:$0xf]
  %s3210 = scalar_lea.vmem %s6, 6
  %v3211 = vld [vmem:[%s3210] sm:$0x1]
  %v3213 = vperm.slane %v3211, 0
  %v3231 = vunpack.c.l.b16 %v3194
  %v3232 = vunpack.c.l.b16 %v3195
  %v3233 = vunpack.c.l.b16 %v3196
  %v3234 = vunpack.c.l.b16 %v3197
  %v3235 = vunpack.c.l.b16 %v3198
  %v3236 = vunpack.c.l.b16 %v3199
  %v3237 = vunpack.c.l.b16 %v3200
  %v3238 = vunpack.c.l.b16 %v3201
  %v3239 = vunpack.c.l.b16 %v3202
  %v3240 = vunpack.c.l.b16 %v3203
  %v3241 = vunpack.c.l.b16 %v3204
  %v3242 = vunpack.c.l.b16 %v3205
  %v3243 = vunpack.c.l.b16 %v3206
  %v3244 = vunpack.c.l.b16 %v3207
  %v3245 = vunpack.c.l.b16 %v3208
  %v3246 = vunpack.c.l.b16 %v3209
  %v3247 = vpack.c.b16 %v3232, %v3231
  %v3248 = vpack.c.b16 %v3234, %v3233
  %v3249 = vpack.c.b16 %v3236, %v3235
  %v3250 = vpack.c.b16 %v3238, %v3237
  %v3251 = vpack.c.b16 %v3240, %v3239
  %v3252 = vpack.c.b16 %v3242, %v3241
  %v3253 = vpack.c.b16 %v3244, %v3243
  %v3254 = vpack.c.b16 %v3246, %v3245
  %3263 = vmatpush.bf16.msra.mxu0 %v3254
  %3264 = vmatpush.bf16.msra.mxu0 %v3253
  %3265 = vmatpush.bf16.msra.mxu0 %v3252
  %3266 = vmatpush.bf16.msra.mxu0 %v3251
  %3267 = vmatpush.bf16.msra.mxu0 %v3250
  %3268 = vmatpush.bf16.msra.mxu0 %v3249
  %3269 = vmatpush.bf16.msra.mxu0 %v3248
  %3270 = vmatpush.bf16.msra.mxu0 %v3247
  %3271 = vmatmul.bf16.gmra.mxu0 %v3192
  %v3272 = vpop.f32.mrf.mxu0
  %v3273 = vadd.f32 %v3213, %v3272
  %v3274 = vpop.f32.mrf.mxu0
  %3275 = vdwg.mxu0
  %s3276 = scalar_lea.vmem %s0, 7
  %v3277 = vld [vmem:[%s3276] sm:$0x1]
  %s3278 = scalar_lea.vmem %s1, 448
  %v3279 = vld [vmem:[%s3278] sm:$0xff]
  %v3280 = vld [vmem:[%s3278 + $0x8] sm:$0xff]
  %v3281 = vld [vmem:[%s3278 + $0x10] sm:$0xff]
  %v3282 = vld [vmem:[%s3278 + $0x18] sm:$0xff]
  %v3283 = vld [vmem:[%s3278 + $0x20] sm:$0xff]
  %v3284 = vld [vmem:[%s3278 + $0x28] sm:$0xff]
  %v3285 = vld [vmem:[%s3278 + $0x30] sm:$0xff]
  %v3286 = vld [vmem:[%s3278 + $0x38] sm:$0xff]
  %s3287 = scalar_lea.vmem %s2, 14
  %v3288 = vld [vmem:[%s3287] sm:$0x3]
  %v3290 = vperm.slane %v3288, 0
  %v3291 = vperm.slane %v3288, 1
  %v3302 = vunpack.c.l.b16 %v3279
  %v3303 = vunpack.c.h.b16 %v3279
  %v3304 = vunpack.c.l.b16 %v3280
  %v3305 = vunpack.c.h.b16 %v3280
  %v3306 = vunpack.c.l.b16 %v3281
  %v3307 = vunpack.c.h.b16 %v3281
  %v3308 = vunpack.c.l.b16 %v3282
  %v3309 = vunpack.c.h.b16 %v3282
  %v3310 = vunpack.c.l.b16 %v3283
  %v3311 = vunpack.c.h.b16 %v3283
  %v3312 = vunpack.c.l.b16 %v3284
  %v3313 = vunpack.c.h.b16 %v3284
  %v3314 = vunpack.c.l.b16 %v3285
  %v3315 = vunpack.c.h.b16 %v3285
  %v3316 = vunpack.c.l.b16 %v3286
  %v3317 = vunpack.c.h.b16 %v3286
  %v3318 = vpack.c.b16 %v3304, %v3302
  %v3319 = vpack.c.b16 %v3305, %v3303
  %v3320 = vpack.c.b16 %v3308, %v3306
  %v3321 = vpack.c.b16 %v3309, %v3307
  %v3322 = vpack.c.b16 %v3312, %v3310
  %v3323 = vpack.c.b16 %v3313, %v3311
  %v3324 = vpack.c.b16 %v3316, %v3314
  %v3325 = vpack.c.b16 %v3317, %v3315
  %v3335 = vsel %vm82, %v3277, 0
  %3337 = vmatpush.bf16.msra.mxu0 0
  %3338 = vmatpush.bf16.msra.mxu0 0
  %3339 = vmatpush.bf16.msra.mxu0 0
  %3340 = vmatpush.bf16.msra.mxu0 0
  %3341 = vmatpush.bf16.msra.mxu0 %v3324
  %3342 = vmatpush.bf16.msra.mxu0 %v3322
  %3343 = vmatpush.bf16.msra.mxu0 %v3320
  %3344 = vmatpush.bf16.msra.mxu0 %v3318
  %3345 = vmatmul.bf16.gmra.mxu0 %v3335
  %v3346 = vpop.f32.mrf.mxu0
  %v3347 = vadd.f32 %v3290, %v3346
  %v3348 = vpop.f32.mrf.mxu0
  %3349 = vdwg.mxu0
  %3350 = vmatpush.bf16.msra.mxu0 0
  %3351 = vmatpush.bf16.msra.mxu0 0
  %3352 = vmatpush.bf16.msra.mxu0 0
  %3353 = vmatpush.bf16.msra.mxu0 0
  %3354 = vmatpush.bf16.msra.mxu0 %v3325
  %3355 = vmatpush.bf16.msra.mxu0 %v3323
  %3356 = vmatpush.bf16.msra.mxu0 %v3321
  %3357 = vmatpush.bf16.msra.mxu0 %v3319
  %3358 = vmatmul.bf16.gmra.mxu0 %v3335
  %v3359 = vpop.f32.mrf.mxu0
  %v3360 = vadd.f32 %v3291, %v3359
  %v3361 = vpop.f32.mrf.mxu0
  %3362 = vdwg.mxu0
  %v3363 = vmul.f32 %v3347, 0.5
  %v3364 = vmul.f32 %v3360, 0.5
  %v3365 = vmul.f32 %v3347, 0.70710677
  %v3366 = vmul.f32 %v3360, 0.70710677
  %v3367 = vmul.f32 %v3365, %v3365
  %v3368 = vmin.f32 16.0, %v3367
  %v3369 = vmul.f32 %v3368, 2.1237322e-06
  %v3370 = vadd.f32 %v3369, 0.00028619796
  %v3371 = vmul.f32 %v3368, %v3370
  %v3372 = vadd.f32 %v3371, 0.0036580483
  %v3373 = vmul.f32 %v3368, %v3372
  %v3374 = vadd.f32 %v3373, 0.05243302
  %v3375 = vmul.f32 %v3368, %v3374
  %v3376 = vadd.f32 %v3375, 0.18741608
  %v3377 = vmul.f32 %v3368, %v3376
  %v3378 = vadd.f32 %v3377, 1.1283791
  %v3379 = vmul.f32 %v3365, %v3378
  %v3380 = vmul.f32 %v3368, 3.8918573e-05
  %v3381 = vadd.f32 %v3380, 0.001143296
  %v3382 = vmul.f32 %v3368, %v3381
  %v3383 = vadd.f32 %v3382, 0.014752088
  %v3384 = vmul.f32 %v3368, %v3383
  %v3385 = vadd.f32 %v3384, 0.112945676
  %v3386 = vmul.f32 %v3368, %v3385
  %v3387 = vadd.f32 %v3386, 0.4994258
  %v3388 = vmul.f32 %v3368, %v3387
  %v3389 = vadd.f32 %v3388, 1.0
  %v3390 = vrcp.pop %v3389
  %v3391 = vmul.f32 %v3389, %v3390
  %v3392 = vsub.f32 1.0, %v3391
  %v3393 = vmul.f32 %v3390, %v3392
  %v3394 = vadd.f32 %v3390, %v3393
  %vm3395 = vweird.f32 %v3389
  %vm3396 = vweird.f32 %v3390
  %vm3397 = vmor %vm3395, %vm3396
  %v3398 = vsel %vm3397, %v3390, %v3394
  %v3399 = vand.u32 2147483647, %v3389
  %vm3400 = vcmp.eq.f32.partialorder %v3399, 8.507059e+37
  %v3401 = vand.u32 %v3389, 2147483648
  %v3402 = vor.u32 1.1754944e-38, %v3401
  %v3403 = vsel %vm3400, %v3402, %v3398
  %v3404 = vmul.f32 %v3379, %v3403
  %v3405 = vmin.f32 %v3404, 1.0
  %v3406 = vmax.f32 %v3405, -1.0
  %v3407 = vmul.f32 %v3366, %v3366
  %v3408 = vmin.f32 16.0, %v3407
  %v3409 = vmul.f32 %v3408, 2.1237322e-06
  %v3410 = vadd.f32 %v3409, 0.00028619796
  %v3411 = vmul.f32 %v3408, %v3410
  %v3412 = vadd.f32 %v3411, 0.0036580483
  %v3413 = vmul.f32 %v3408, %v3412
  %v3414 = vadd.f32 %v3413, 0.05243302
  %v3415 = vmul.f32 %v3408, %v3414
  %v3416 = vadd.f32 %v3415, 0.18741608
  %v3417 = vmul.f32 %v3408, %v3416
  %v3418 = vadd.f32 %v3417, 1.1283791
  %v3419 = vmul.f32 %v3366, %v3418
  %v3420 = vmul.f32 %v3408, 3.8918573e-05
  %v3421 = vadd.f32 %v3420, 0.001143296
  %v3422 = vmul.f32 %v3408, %v3421
  %v3423 = vadd.f32 %v3422, 0.014752088
  %v3424 = vmul.f32 %v3408, %v3423
  %v3425 = vadd.f32 %v3424, 0.112945676
  %v3426 = vmul.f32 %v3408, %v3425
  %v3427 = vadd.f32 %v3426, 0.4994258
  %v3428 = vmul.f32 %v3408, %v3427
  %v3429 = vadd.f32 %v3428, 1.0
  %v3430 = vrcp.pop %v3429
  %v3431 = vmul.f32 %v3429, %v3430
  %v3432 = vsub.f32 1.0, %v3431
  %v3433 = vmul.f32 %v3430, %v3432
  %v3434 = vadd.f32 %v3430, %v3433
  %vm3435 = vweird.f32 %v3429
  %vm3436 = vweird.f32 %v3430
  %vm3437 = vmor %vm3435, %vm3436
  %v3438 = vsel %vm3437, %v3430, %v3434
  %v3439 = vand.u32 2147483647, %v3429
  %vm3440 = vcmp.eq.f32.partialorder %v3439, 8.507059e+37
  %v3441 = vand.u32 %v3429, 2147483648
  %v3442 = vor.u32 1.1754944e-38, %v3441
  %v3443 = vsel %vm3440, %v3442, %v3438
  %v3444 = vmul.f32 %v3419, %v3443
  %v3445 = vmin.f32 %v3444, 1.0
  %v3446 = vmax.f32 %v3445, -1.0
  %v3447 = vadd.f32 %v3406, 1.0
  %v3448 = vadd.f32 %v3446, 1.0
  %v3449 = vmul.f32 %v3363, %v3447
  %v3450 = vmul.f32 %v3364, %v3448
  %v3451 = vpack.c.bf16 %v3449, %v3449
  %v3452 = vpack.c.bf16 %v3450, %v3450
  %s3453 = scalar_lea.vmem %s3, 896
  %v3454 = vld [vmem:[%s3453] sm:$0xf]
  %v3455 = vld [vmem:[%s3453 + $0x4] sm:$0xf]
  %v3456 = vld [vmem:[%s3453 + $0x8] sm:$0xf]
  %v3457 = vld [vmem:[%s3453 + $0xc] sm:$0xf]
  %v3458 = vld [vmem:[%s3453 + $0x10] sm:$0xf]
  %v3459 = vld [vmem:[%s3453 + $0x14] sm:$0xf]
  %v3460 = vld [vmem:[%s3453 + $0x18] sm:$0xf]
  %v3461 = vld [vmem:[%s3453 + $0x1c] sm:$0xf]
  %v3462 = vld [vmem:[%s3453 + $0x20] sm:$0xf]
  %v3463 = vld [vmem:[%s3453 + $0x24] sm:$0xf]
  %v3464 = vld [vmem:[%s3453 + $0x28] sm:$0xf]
  %v3465 = vld [vmem:[%s3453 + $0x2c] sm:$0xf]
  %v3466 = vld [vmem:[%s3453 + $0x30] sm:$0xf]
  %v3467 = vld [vmem:[%s3453 + $0x34] sm:$0xf]
  %v3468 = vld [vmem:[%s3453 + $0x38] sm:$0xf]
  %v3469 = vld [vmem:[%s3453 + $0x3c] sm:$0xf]
  %v3470 = vld [vmem:[%s3453 + $0x40] sm:$0xf]
  %v3471 = vld [vmem:[%s3453 + $0x44] sm:$0xf]
  %v3472 = vld [vmem:[%s3453 + $0x48] sm:$0xf]
  %v3473 = vld [vmem:[%s3453 + $0x4c] sm:$0xf]
  %v3474 = vld [vmem:[%s3453 + $0x50] sm:$0xf]
  %v3475 = vld [vmem:[%s3453 + $0x54] sm:$0xf]
  %v3476 = vld [vmem:[%s3453 + $0x58] sm:$0xf]
  %v3477 = vld [vmem:[%s3453 + $0x5c] sm:$0xf]
  %v3478 = vld [vmem:[%s3453 + $0x60] sm:$0xf]
  %v3479 = vld [vmem:[%s3453 + $0x64] sm:$0xf]
  %v3480 = vld [vmem:[%s3453 + $0x68] sm:$0xf]
  %v3481 = vld [vmem:[%s3453 + $0x6c] sm:$0xf]
  %v3482 = vld [vmem:[%s3453 + $0x70] sm:$0xf]
  %v3483 = vld [vmem:[%s3453 + $0x74] sm:$0xf]
  %v3484 = vld [vmem:[%s3453 + $0x78] sm:$0xf]
  %v3485 = vld [vmem:[%s3453 + $0x7c] sm:$0xf]
  %s3486 = scalar_lea.vmem %s4, 7
  %v3487 = vld [vmem:[%s3486] sm:$0x1]
  %v3489 = vperm.slane %v3487, 0
  %v3523 = vunpack.c.l.b16 %v3454
  %v3524 = vunpack.c.l.b16 %v3455
  %v3525 = vunpack.c.l.b16 %v3456
  %v3526 = vunpack.c.l.b16 %v3457
  %v3527 = vunpack.c.l.b16 %v3458
  %v3528 = vunpack.c.l.b16 %v3459
  %v3529 = vunpack.c.l.b16 %v3460
  %v3530 = vunpack.c.l.b16 %v3461
  %v3531 = vunpack.c.l.b16 %v3462
  %v3532 = vunpack.c.l.b16 %v3463
  %v3533 = vunpack.c.l.b16 %v3464
  %v3534 = vunpack.c.l.b16 %v3465
  %v3535 = vunpack.c.l.b16 %v3466
  %v3536 = vunpack.c.l.b16 %v3467
  %v3537 = vunpack.c.l.b16 %v3468
  %v3538 = vunpack.c.l.b16 %v3469
  %v3539 = vunpack.c.l.b16 %v3470
  %v3540 = vunpack.c.l.b16 %v3471
  %v3541 = vunpack.c.l.b16 %v3472
  %v3542 = vunpack.c.l.b16 %v3473
  %v3543 = vunpack.c.l.b16 %v3474
  %v3544 = vunpack.c.l.b16 %v3475
  %v3545 = vunpack.c.l.b16 %v3476
  %v3546 = vunpack.c.l.b16 %v3477
  %v3547 = vunpack.c.l.b16 %v3478
  %v3548 = vunpack.c.l.b16 %v3479
  %v3549 = vunpack.c.l.b16 %v3480
  %v3550 = vunpack.c.l.b16 %v3481
  %v3551 = vunpack.c.l.b16 %v3482
  %v3552 = vunpack.c.l.b16 %v3483
  %v3553 = vunpack.c.l.b16 %v3484
  %v3554 = vunpack.c.l.b16 %v3485
  %v3555 = vpack.c.b16 %v3524, %v3523
  %v3556 = vpack.c.b16 %v3526, %v3525
  %v3557 = vpack.c.b16 %v3528, %v3527
  %v3558 = vpack.c.b16 %v3530, %v3529
  %v3559 = vpack.c.b16 %v3532, %v3531
  %v3560 = vpack.c.b16 %v3534, %v3533
  %v3561 = vpack.c.b16 %v3536, %v3535
  %v3562 = vpack.c.b16 %v3538, %v3537
  %v3563 = vpack.c.b16 %v3540, %v3539
  %v3564 = vpack.c.b16 %v3542, %v3541
  %v3565 = vpack.c.b16 %v3544, %v3543
  %v3566 = vpack.c.b16 %v3546, %v3545
  %v3567 = vpack.c.b16 %v3548, %v3547
  %v3568 = vpack.c.b16 %v3550, %v3549
  %v3569 = vpack.c.b16 %v3552, %v3551
  %v3570 = vpack.c.b16 %v3554, %v3553
  %3587 = vmatpush.bf16.msra.mxu0 %v3562
  %3588 = vmatpush.bf16.msra.mxu0 %v3561
  %3589 = vmatpush.bf16.msra.mxu0 %v3560
  %3590 = vmatpush.bf16.msra.mxu0 %v3559
  %3591 = vmatpush.bf16.msra.mxu0 %v3558
  %3592 = vmatpush.bf16.msra.mxu0 %v3557
  %3593 = vmatpush.bf16.msra.mxu0 %v3556
  %3594 = vmatpush.bf16.msra.mxu0 %v3555
  %3595 = vmatmul.bf16.gmra.mxu0 %v3451
  %v3596 = vpop.f32.mrf.mxu0
  %v3597 = vadd.f32 %v3489, %v3596
  %v3598 = vpop.f32.mrf.mxu0
  %3599 = vdwg.mxu0
  %3600 = vmatpush.bf16.msra.mxu0 %v3570
  %3601 = vmatpush.bf16.msra.mxu0 %v3569
  %3602 = vmatpush.bf16.msra.mxu0 %v3568
  %3603 = vmatpush.bf16.msra.mxu0 %v3567
  %3604 = vmatpush.bf16.msra.mxu0 %v3566
  %3605 = vmatpush.bf16.msra.mxu0 %v3565
  %3606 = vmatpush.bf16.msra.mxu0 %v3564
  %3607 = vmatpush.bf16.msra.mxu0 %v3563
  %3608 = vmatmul.bf16.gmra.mxu0 %v3452
  %v3609 = vpop.f32.mrf.mxu0
  %v3610 = vadd.f32 %v3597, %v3609
  %v3611 = vpop.f32.mrf.mxu0
  %3612 = vdwg.mxu0
  %v3613 = vmul.f32 %v3610, 0.5
  %v3614 = vmul.f32 %v3610, 0.70710677
  %v3615 = vmul.f32 %v3614, %v3614
  %v3616 = vmin.f32 16.0, %v3615
  %v3617 = vmul.f32 %v3616, 2.1237322e-06
  %v3618 = vadd.f32 %v3617, 0.00028619796
  %v3619 = vmul.f32 %v3616, %v3618
  %v3620 = vadd.f32 %v3619, 0.0036580483
  %v3621 = vmul.f32 %v3616, %v3620
  %v3622 = vadd.f32 %v3621, 0.05243302
  %v3623 = vmul.f32 %v3616, %v3622
  %v3624 = vadd.f32 %v3623, 0.18741608
  %v3625 = vmul.f32 %v3616, %v3624
  %v3626 = vadd.f32 %v3625, 1.1283791
  %v3627 = vmul.f32 %v3614, %v3626
  %v3628 = vmul.f32 %v3616, 3.8918573e-05
  %v3629 = vadd.f32 %v3628, 0.001143296
  %v3630 = vmul.f32 %v3616, %v3629
  %v3631 = vadd.f32 %v3630, 0.014752088
  %v3632 = vmul.f32 %v3616, %v3631
  %v3633 = vadd.f32 %v3632, 0.112945676
  %v3634 = vmul.f32 %v3616, %v3633
  %v3635 = vadd.f32 %v3634, 0.4994258
  %v3636 = vmul.f32 %v3616, %v3635
  %v3637 = vadd.f32 %v3636, 1.0
  %v3638 = vrcp.pop %v3637
  %v3639 = vmul.f32 %v3637, %v3638
  %v3640 = vsub.f32 1.0, %v3639
  %v3641 = vmul.f32 %v3638, %v3640
  %v3642 = vadd.f32 %v3638, %v3641
  %vm3643 = vweird.f32 %v3637
  %vm3644 = vweird.f32 %v3638
  %vm3645 = vmor %vm3643, %vm3644
  %v3646 = vsel %vm3645, %v3638, %v3642
  %v3647 = vand.u32 2147483647, %v3637
  %vm3648 = vcmp.eq.f32.partialorder %v3647, 8.507059e+37
  %v3649 = vand.u32 %v3637, 2147483648
  %v3650 = vor.u32 1.1754944e-38, %v3649
  %v3651 = vsel %vm3648, %v3650, %v3646
  %v3652 = vmul.f32 %v3627, %v3651
  %v3653 = vmin.f32 %v3652, 1.0
  %v3654 = vmax.f32 %v3653, -1.0
  %v3655 = vadd.f32 %v3654, 1.0
  %v3656 = vmul.f32 %v3613, %v3655
  %v3657 = vpack.c.bf16 %v3656, %v3656
  %s3658 = scalar_lea.vmem %s5, 448
  %v3659 = vld [vmem:[%s3658] sm:$0xf]
  %v3660 = vld [vmem:[%s3658 + $0x4] sm:$0xf]
  %v3661 = vld [vmem:[%s3658 + $0x8] sm:$0xf]
  %v3662 = vld [vmem:[%s3658 + $0xc] sm:$0xf]
  %v3663 = vld [vmem:[%s3658 + $0x10] sm:$0xf]
  %v3664 = vld [vmem:[%s3658 + $0x14] sm:$0xf]
  %v3665 = vld [vmem:[%s3658 + $0x18] sm:$0xf]
  %v3666 = vld [vmem:[%s3658 + $0x1c] sm:$0xf]
  %v3667 = vld [vmem:[%s3658 + $0x20] sm:$0xf]
  %v3668 = vld [vmem:[%s3658 + $0x24] sm:$0xf]
  %v3669 = vld [vmem:[%s3658 + $0x28] sm:$0xf]
  %v3670 = vld [vmem:[%s3658 + $0x2c] sm:$0xf]
  %v3671 = vld [vmem:[%s3658 + $0x30] sm:$0xf]
  %v3672 = vld [vmem:[%s3658 + $0x34] sm:$0xf]
  %v3673 = vld [vmem:[%s3658 + $0x38] sm:$0xf]
  %v3674 = vld [vmem:[%s3658 + $0x3c] sm:$0xf]
  %s3675 = scalar_lea.vmem %s6, 7
  %v3676 = vld [vmem:[%s3675] sm:$0x1]
  %v3678 = vperm.slane %v3676, 0
  %v3696 = vunpack.c.l.b16 %v3659
  %v3697 = vunpack.c.l.b16 %v3660
  %v3698 = vunpack.c.l.b16 %v3661
  %v3699 = vunpack.c.l.b16 %v3662
  %v3700 = vunpack.c.l.b16 %v3663
  %v3701 = vunpack.c.l.b16 %v3664
  %v3702 = vunpack.c.l.b16 %v3665
  %v3703 = vunpack.c.l.b16 %v3666
  %v3704 = vunpack.c.l.b16 %v3667
  %v3705 = vunpack.c.l.b16 %v3668
  %v3706 = vunpack.c.l.b16 %v3669
  %v3707 = vunpack.c.l.b16 %v3670
  %v3708 = vunpack.c.l.b16 %v3671
  %v3709 = vunpack.c.l.b16 %v3672
  %v3710 = vunpack.c.l.b16 %v3673
  %v3711 = vunpack.c.l.b16 %v3674
  %v3712 = vpack.c.b16 %v3697, %v3696
  %v3713 = vpack.c.b16 %v3699, %v3698
  %v3714 = vpack.c.b16 %v3701, %v3700
  %v3715 = vpack.c.b16 %v3703, %v3702
  %v3716 = vpack.c.b16 %v3705, %v3704
  %v3717 = vpack.c.b16 %v3707, %v3706
  %v3718 = vpack.c.b16 %v3709, %v3708
  %v3719 = vpack.c.b16 %v3711, %v3710
  %3728 = vmatpush.bf16.msra.mxu0 %v3719
  %3729 = vmatpush.bf16.msra.mxu0 %v3718
  %3730 = vmatpush.bf16.msra.mxu0 %v3717
  %3731 = vmatpush.bf16.msra.mxu0 %v3716
  %3732 = vmatpush.bf16.msra.mxu0 %v3715
  %3733 = vmatpush.bf16.msra.mxu0 %v3714
  %3734 = vmatpush.bf16.msra.mxu0 %v3713
  %3735 = vmatpush.bf16.msra.mxu0 %v3712
  %3736 = vmatmul.bf16.gmra.mxu0 %v3657
  %v3737 = vpop.f32.mrf.mxu0
  %v3738 = vadd.f32 %v3678, %v3737
  %v3739 = vpop.f32.mrf.mxu0
  %3740 = vdwg.mxu0
  %3742 = vrot.lane.b32.xlu0 %v948, 16
  %v3743 = vpop.permute.xlu0 %3742
  %3746 = vrot.lane.b32.xlu0 %v1413, 32
  %v3747 = vpop.permute.xlu0 %3746
  %3750 = vrot.lane.b32.xlu0 %v1878, 48
  %v3751 = vpop.permute.xlu0 %3750
  %3754 = vrot.lane.b32.xlu0 %v2343, 64
  %v3755 = vpop.permute.xlu0 %3754
  %3758 = vrot.lane.b32.xlu0 %v2808, 80
  %v3759 = vpop.permute.xlu0 %3758
  %3762 = vrot.lane.b32.xlu0 %v3273, 96
  %v3763 = vpop.permute.xlu0 %3762
  %3766 = vrot.lane.b32.xlu0 %v3738, 112
  %v3767 = vpop.permute.xlu0 %3766
  %vm3769 = vcmask 130048
  %v3770 = vsel %vm3769, %v483, %v3743
  %vm3771 = vcmask 261120
  %v3772 = vsel %vm3771, %v3770, %v3747
  %vm3773 = vcmask 392192
  %v3774 = vsel %vm3773, %v3772, %v3751
  %v3775 = vsel %vm82, %v3774, %v3755
  %vm3776 = vcmask 654336
  %v3777 = vsel %vm3776, %v3775, %v3759
  %vm3778 = vcmask 785408
  %v3779 = vsel %vm3778, %v3777, %v3763
  %vm3780 = vcmask 916480
  %v3781 = vsel %vm3780, %v3779, %v3767
  %3782 = vst [vmem:[%s7] sm:$0x3] %v3781
  // Predicated region
  $region30: #{classification_head_forward.1} parent=0 // pred_check
    _
  $region31: #{classification_head_forward.1} parent=0 // pred_check_branch
    %3784 = sbr.rel (0) target = $region33
  $region32: #{classification_head_forward.1} parent=0 // pred_region
    _
  $region33: #{classification_head_forward.1} parent=0 // pred_fallthru
    _
  // Predicated region
  $region34: #{classification_head_forward.1} parent=0 // pred_check
    _
  $region35: #{classification_head_forward.1} parent=0 // pred_check_branch
    %3786 = sbr.rel (0) target = $region37
  $region36: #{classification_head_forward.1} parent=0 // pred_region
    _
  $region37: #{classification_head_forward.1} parent=0 // pred_fallthru
    _

</llo_original>
